<compile_context>
chip_gen: v7x
topology: tpu7x:2x2x1
jax: 0.10.0
libtpu: 0.0.40
codegen_flags: <defaults>
</compile_context>

<pallas_src>
import functools

import jax
import jax.numpy as jnp
from jax import lax
from jax.experimental import pallas as pl
from jax.experimental.pallas import tpu as pltpu

_LANES = 128


def _round_up(n, m):
    return ((n + m - 1) // m) * m


def _pick_block_d(depth, requested=None):
    """Largest divisor of `depth` that is <= the requested depth-tile size."""
    target = depth if requested is None else max(1, min(requested, depth))
    while depth % target:
        target -= 1
    return target


def _conv3x3x3_bn_relu_kernel(xc_ref, xm_ref, xn_ref, w_ref, scale_ref,
                              shift_ref, *rest, add_residual):
    """One (batch, depth-tile) grid step: 3x3x3 conv + folded BN (+residual) + ReLU.

    xc_ref    : (1, TD, H, W, Cp) bf16  current depth tile of the input
    xm_ref    : (1, 1,  H, W, Cp) bf16  depth plane just before the tile (halo)
    xn_ref    : (1, 1,  H, W, Cp) bf16  depth plane just after the tile (halo)
    w_ref     : (9, 3*Cp, Cp)     bf16  weights, kw folded into the contraction
    scale_ref : (1, Cp)           f32   folded BatchNorm scale
    shift_ref : (1, Cp)           f32   folded BatchNorm shift
    rest      : (res_ref?, o_ref)       optional residual tile, output tile
    """
    if add_residual:
        res_ref, o_ref = rest
    else:
        (o_ref,) = rest
        res_ref = None

    dt = pl.program_id(1)
    nd = pl.num_programs(1)
    _, td, h, w, cp = xc_ref.shape
    m = td * h * w

    # ---- assemble the zero-padded (D, H) window in VMEM (f32 staging) --------
    # Depth halo planes are masked to zero at the volume boundaries.
    keep_prev = (dt > 0).astype(jnp.float32)
    keep_next = (dt + 1 < nd).astype(jnp.float32)
    prev = (xm_ref[0, 0].astype(jnp.float32) * keep_prev)[None]      # (1, H, W, Cp)
    nxt = (xn_ref[0, 0].astype(jnp.float32) * keep_next)[None]       # (1, H, W, Cp)
    xwin = jnp.concatenate([prev, xc_ref[0].astype(jnp.float32), nxt], axis=0)
    zrow = jnp.zeros((td + 2, 1, w, cp), jnp.float32)
    xwin = jnp.concatenate([zrow, xwin, zrow], axis=1)               # (TD+2, H+2, W, Cp)

    # ---- W halo via sublane roll + mask (cheap XLU op, no unaligned stores) ---
    wi = lax.broadcasted_iota(jnp.int32, xwin.shape, 2)
    x_wm1 = jnp.where(wi >= 1, pltpu.roll(xwin, shift=1, axis=2), 0.0)        # x[..., w-1, :]
    x_wp1 = jnp.where(wi <= w - 2, pltpu.roll(xwin, shift=w - 1, axis=2), 0.0)  # x[..., w+1, :]

    # ---- 3x3x3 conv as 9 MXU matmuls with K = 3*Cp (kw folded), f32 acc ------
    acc = jnp.zeros((m, cp), jnp.float32)
    for kd in range(3):
        for kh in range(3):
            xrow = jnp.concatenate(
                [x_wm1[kd:kd + td, kh:kh + h],
                 xwin[kd:kd + td, kh:kh + h],
                 x_wp1[kd:kd + td, kh:kh + h]], axis=-1)             # (TD, H, W, 3*Cp)
            xrow = xrow.reshape(m, 3 * cp).astype(jnp.bfloat16)
            acc = acc + jnp.dot(xrow, w_ref[kd * 3 + kh],
                                preferred_element_type=jnp.float32)

    # ---- folded BatchNorm (inference) + optional residual + ReLU (f32) -------
    y = acc * scale_ref[...] + shift_ref[...]
    if res_ref is not None:
        y = y + res_ref[0].reshape(m, cp).astype(jnp.float32)
    y = jnp.maximum(y, 0.0)
    o_ref[0] = y.reshape(td, h, w, cp).astype(o_ref.dtype)           # lane-dense store


def conv3x3x3_bn_relu(x, w_folded, scale, shift, residual=None, *,
                      out_dtype=jnp.bfloat16, block_d=None):
    """Fused conv3x3x3 (stride 1, pad 1) + folded BN + optional residual + ReLU.

    x           : (N, D, H, W, Cp) bf16, channels already padded to Cp (mult of 128)
    w_folded    : (9, 3*Cp, Cp)    bf16
    scale/shift : (1, Cp)          f32
    residual    : optional (N, D, H, W, Cp) bf16, added before the final ReLU
    """
    n, d, h, w, cp = x.shape
    td = _pick_block_d(d, block_d)
    nd = d // td

    def cur_map(i, j):
        return (i, j, 0, 0, 0)

    def prev_map(i, j):  # depth plane just before the tile (clamped; masked in-kernel)
        return (i, jnp.maximum(j * td - 1, 0), 0, 0, 0)

    def next_map(i, j):  # depth plane just after the tile (clamped; masked in-kernel)
        return (i, jnp.minimum(j * td + td, d - 1), 0, 0, 0)

    tile = pl.BlockSpec((1, td, h, w, cp), cur_map)
    plane = lambda im: pl.BlockSpec((1, 1, h, w, cp), im)

    in_specs = [
        tile,                                                  # current depth tile
        plane(prev_map),                                       # depth halo (prev)
        plane(next_map),                                       # depth halo (next)
        pl.BlockSpec(w_folded.shape, lambda i, j: (0, 0, 0)),  # weights, VMEM resident
        pl.BlockSpec(scale.shape, lambda i, j: (0, 0)),        # BN scale, resident
        pl.BlockSpec(shift.shape, lambda i, j: (0, 0)),        # BN shift, resident
    ]
    args = [x, x, x, w_folded, scale, shift]
    if residual is not None:                                   # no zeros tensor is ever streamed
        in_specs.append(tile)
        args.append(residual)

    kernel = functools.partial(_conv3x3x3_bn_relu_kernel,
                               add_residual=residual is not None)

    return pl.pallas_call(
        kernel,
        grid=(n, nd),
        in_specs=in_specs,
        out_specs=tile,
        out_shape=jax.ShapeDtypeStruct((n, d, h, w, cp), out_dtype),
        compiler_params=pltpu.CompilerParams(
            dimension_semantics=("parallel", "parallel"),
            vmem_limit_bytes=32 * 1024 * 1024),
    )(*args)


def fold_bn(gamma, beta, running_mean, running_var, eps=1e-5):
    scale = gamma / jnp.sqrt(running_var + eps)
    shift = beta - running_mean * scale
    return scale, shift


def _fold_weights(w, cp):
    """(3, 3, 3, Cin, Cout) -> (9, 3*Cp, Cp) bf16, kw folded into the contraction."""
    kd, kh, kw, cin, cout = w.shape
    wp = jnp.pad(w, ((0, 0), (0, 0), (0, 0), (0, cp - cin), (0, cp - cout)))
    return wp.reshape(kd * kh, kw * cp, cp).astype(jnp.bfloat16)


def _pad_bn_vec(v, cp):
    return jnp.pad(v, (0, cp - v.shape[0])).reshape(1, cp).astype(jnp.float32)


def basic_block_forward(x, params, *, block_d=None):
    """BasicBlock.forward with stride=1, downsample=None: relu(bn2(conv2(relu(bn1(conv1(x))))) + x)."""
    n, d, h, w, c = x.shape
    planes = params["w1"].shape[-1]
    assert planes == c, "residual add requires inplanes == planes when downsample is None"
    cp = _round_up(c, _LANES)

    s1, b1 = fold_bn(params["bn1_gamma"], params["bn1_beta"],
                     params["bn1_mean"], params["bn1_var"])
    s2, b2 = fold_bn(params["bn2_gamma"], params["bn2_beta"],
                     params["bn2_mean"], params["bn2_var"])

    # Single pad op (the channel pad is needed anyway); no spatial padding is ever
    # materialized in HBM -- the halo is assembled inside the kernel.
    xp = jnp.pad(x, ((0, 0), (0, 0), (0, 0), (0, 0), (0, cp - c))).astype(jnp.bfloat16)
    w1 = _fold_weights(params["w1"], cp)
    w2 = _fold_weights(params["w2"], cp)

    # out = relu(bn1(conv1(x)))          -- no-residual kernel variant
    hmid = conv3x3x3_bn_relu(xp, w1, _pad_bn_vec(s1, cp), _pad_bn_vec(b1, cp),
                             residual=None, out_dtype=jnp.bfloat16, block_d=block_d)
    # out = relu(bn2(conv2(h)) + identity)
    out = conv3x3x3_bn_relu(hmid, w2, _pad_bn_vec(s2, cp), _pad_bn_vec(b2, cp),
                            residual=xp, out_dtype=jnp.float32, block_d=block_d)
    return out[..., :c]


def reference_forward(x, params):
    """Pure-JAX reference (lax.conv) mirroring the kernel's dtype policy (bf16 in, f32 acc)."""
    def conv(inp, w):
        return lax.conv_general_dilated(
            inp.astype(jnp.float32), w.astype(jnp.float32),
            window_strides=(1, 1, 1), padding=[(1, 1)] * 3,
            dimension_numbers=("NDHWC", "DHWIO", "NDHWC"))

    s1, b1 = fold_bn(params["bn1_gamma"], params["bn1_beta"],
                     params["bn1_mean"], params["bn1_var"])
    s2, b2 = fold_bn(params["bn2_gamma"], params["bn2_beta"],
                     params["bn2_mean"], params["bn2_var"])
    xb = x.astype(jnp.bfloat16)
    w1 = params["w1"].astype(jnp.bfloat16)
    w2 = params["w2"].astype(jnp.bfloat16)
    hmid = jnp.maximum(conv(xb, w1) * s1 + b1, 0.0).astype(jnp.bfloat16)
    out = jnp.maximum(conv(hmid, w2) * s2 + b2 + xb.astype(jnp.float32), 0.0)
    return out


if __name__ == "__main__":
    # Small shapes: batch=2, inplanes=planes=8, spatial D=H=W=8, stride=1.
    N, C, D, H, W = 2, 8, 8, 8, 8
    key = jax.random.PRNGKey(0)
    k = jax.random.split(key, 8)

    x = jax.random.normal(k[0], (N, D, H, W, C), jnp.float32)  # layout: NDHWC

    params = {
        # conv weights stored as (kD, kH, kW, Cin, Cout)
        "w1": 0.1 * jax.random.normal(k[1], (3, 3, 3, C, C), jnp.float32),
        "w2": 0.1 * jax.random.normal(k[2], (3, 3, 3, C, C), jnp.float32),
        # BN1 / BN2 parameters + running stats (deterministic synthetic init)
        "bn1_gamma": 1.0 + 0.1 * jax.random.normal(k[3], (C,), jnp.float32),
        "bn1_beta": 0.1 * jax.random.normal(k[4], (C,), jnp.float32),
        "bn1_mean": jnp.zeros((C,), jnp.float32),
        "bn1_var": jnp.ones((C,), jnp.float32),
        "bn2_gamma": 1.0 + 0.1 * jax.random.normal(k[5], (C,), jnp.float32),
        "bn2_beta": 0.1 * jax.random.normal(k[6], (C,), jnp.float32),
        "bn2_mean": jnp.zeros((C,), jnp.float32),
        "bn2_var": jnp.ones((C,), jnp.float32),
    }

    # block_d=4 -> two depth tiles per sample: exercises the cross-tile depth halo.
    out = jax.block_until_ready(basic_block_forward(x, params, block_d=4))
    ref = jax.block_until_ready(reference_forward(x, params))

    assert out.shape == (N, D, H, W, C), out.shape
    err = float(jnp.max(jnp.abs(out - ref)))
    assert jnp.allclose(out, ref, rtol=2e-2, atol=2e-2), err
    print("KERNEL_OK")
</pallas_src>

<mosaic_0001>
module attributes {stable_mosaic.version = 11 : i64} {
  func.func @_conv3x3x3_bn_relu_kernel(%arg0: i32, %arg1: i32, %arg2: memref<1x4x8x8x128xbf16, #tpu.memory_space<vmem>>, %arg3: memref<1x1x8x8x128xbf16, #tpu.memory_space<vmem>>, %arg4: memref<1x1x8x8x128xbf16, #tpu.memory_space<vmem>>, %arg5: memref<9x384x128xbf16, #tpu.memory_space<vmem>>, %arg6: memref<1x128xf32, #tpu.memory_space<vmem>>, %arg7: memref<1x128xf32, #tpu.memory_space<vmem>>, %arg8: memref<1x4x8x8x128xbf16, #tpu.memory_space<vmem>>) attributes {dimension_semantics = [#tpu.dimension_semantics<parallel>, #tpu.dimension_semantics<parallel>], iteration_bounds = array<i64: 2, 2>, scalar_prefetch = 0 : i64, scratch_operands = 0 : i64, tpu.core_type = #tpu.core_type<tc>, window_params = [{transform_indices = @transform_0, window_bounds = array<i64: 1, 4, 8, 8, 128>}, {transform_indices = @transform_1, window_bounds = array<i64: 1, 1, 8, 8, 128>}, {transform_indices = @transform_2, window_bounds = array<i64: 1, 1, 8, 8, 128>}, {pipeline_mode = #tpu.pipeline_mode<synchronous>, transform_indices = @transform_3, window_bounds = array<i64: 9, 384, 128>}, {pipeline_mode = #tpu.pipeline_mode<synchronous>, transform_indices = @transform_4, window_bounds = array<i64: 1, 128>}, {pipeline_mode = #tpu.pipeline_mode<synchronous>, transform_indices = @transform_5, window_bounds = array<i64: 1, 128>}, {transform_indices = @transform_6, window_bounds = array<i64: 1, 4, 8, 8, 128>}]} {
    %c0_i32 = arith.constant 0 : i32
    %0 = arith.cmpi sgt, %arg1, %c0_i32 : i32
    %1 = arith.extui %0 : i1 to i32
    %2 = arith.sitofp %1 : i32 to f32
    %c1_i32 = arith.constant 1 : i32
    %3 = arith.addi %arg1, %c1_i32 : i32
    %c2_i32 = arith.constant 2 : i32
    %4 = arith.cmpi slt, %3, %c2_i32 : i32
    %5 = arith.extui %4 : i1 to i32
    %6 = arith.sitofp %5 : i32 to f32
    %c0 = arith.constant 0 : index
    %c0_0 = arith.constant 0 : index
    %c0_1 = arith.constant 0 : index
    %c0_2 = arith.constant 0 : index
    %c0_3 = arith.constant 0 : index
    %7 = vector.load %arg3[%c0, %c0_0, %c0_1, %c0_2, %c0_3] : memref<1x1x8x8x128xbf16, #tpu.memory_space<vmem>>, vector<1x1x8x8x128xbf16>
    %8 = vector.shape_cast %7 : vector<1x1x8x8x128xbf16> to vector<8x8x128xbf16>
    %9 = arith.extf %8 : vector<8x8x128xbf16> to vector<8x8x128xf32>
    %10 = vector.broadcast %2 : f32 to vector<8x8x128xf32>
    %11 = arith.mulf %9, %10 : vector<8x8x128xf32>
    %12 = vector.shape_cast %11 : vector<8x8x128xf32> to vector<1x8x8x128xf32>
    %c0_4 = arith.constant 0 : index
    %c0_5 = arith.constant 0 : index
    %c0_6 = arith.constant 0 : index
    %c0_7 = arith.constant 0 : index
    %c0_8 = arith.constant 0 : index
    %13 = vector.load %arg4[%c0_4, %c0_5, %c0_6, %c0_7, %c0_8] : memref<1x1x8x8x128xbf16, #tpu.memory_space<vmem>>, vector<1x1x8x8x128xbf16>
    %14 = vector.shape_cast %13 : vector<1x1x8x8x128xbf16> to vector<8x8x128xbf16>
    %15 = arith.extf %14 : vector<8x8x128xbf16> to vector<8x8x128xf32>
    %16 = vector.broadcast %6 : f32 to vector<8x8x128xf32>
    %17 = arith.mulf %15, %16 : vector<8x8x128xf32>
    %18 = vector.shape_cast %17 : vector<8x8x128xf32> to vector<1x8x8x128xf32>
    %c0_9 = arith.constant 0 : index
    %c0_10 = arith.constant 0 : index
    %c0_11 = arith.constant 0 : index
    %c0_12 = arith.constant 0 : index
    %c0_13 = arith.constant 0 : index
    %19 = vector.load %arg2[%c0_9, %c0_10, %c0_11, %c0_12, %c0_13] : memref<1x4x8x8x128xbf16, #tpu.memory_space<vmem>>, vector<1x4x8x8x128xbf16>
    %20 = vector.shape_cast %19 : vector<1x4x8x8x128xbf16> to vector<4x8x8x128xbf16>
    %21 = arith.extf %20 : vector<4x8x8x128xbf16> to vector<4x8x8x128xf32>
    %22 = tpu.concatenate %12, %21, %18 in 0 : vector<1x8x8x128xf32>, vector<4x8x8x128xf32>, vector<1x8x8x128xf32> -> vector<6x8x8x128xf32>
    %cst = arith.constant 0.000000e+00 : f32
    %23 = vector.broadcast %cst : f32 to vector<6x1x8x128xf32>
    %24 = tpu.concatenate %23, %22, %23 in 1 : vector<6x1x8x128xf32>, vector<6x8x8x128xf32>, vector<6x1x8x128xf32> -> vector<6x10x8x128xf32>
    %25 = tpu.iota {dimensions = array<i32: 2>} : vector<6x10x8x128xi32>
    %c1_i32_14 = arith.constant 1 : i32
    %26 = vector.broadcast %c1_i32_14 : i32 to vector<6x10x8x128xi32>
    %27 = arith.cmpi sge, %25, %26 : vector<6x10x8x128xi32>
    %c1_i32_15 = arith.constant 1 : i32
    %28 = tpu.dynamic_rotate %24 by %c1_i32_15 dim 2 : vector<6x10x8x128xf32>, i32 -> vector<6x10x8x128xf32>
    %cst_16 = arith.constant 0.000000e+00 : f32
    %29 = vector.broadcast %cst_16 : f32 to vector<6x10x8x128xf32>
    %30 = arith.select %27, %28, %29 : vector<6x10x8x128xi1>, vector<6x10x8x128xf32>
    %c6_i32 = arith.constant 6 : i32
    %31 = vector.broadcast %c6_i32 : i32 to vector<6x10x8x128xi32>
    %32 = arith.cmpi sle, %25, %31 : vector<6x10x8x128xi32>
    %c7_i32 = arith.constant 7 : i32
    %33 = tpu.dynamic_rotate %24 by %c7_i32 dim 2 : vector<6x10x8x128xf32>, i32 -> vector<6x10x8x128xf32>
    %cst_17 = arith.constant 0.000000e+00 : f32
    %34 = vector.broadcast %cst_17 : f32 to vector<6x10x8x128xf32>
    %35 = arith.select %32, %33, %34 : vector<6x10x8x128xi1>, vector<6x10x8x128xf32>
    %cst_18 = arith.constant 0.000000e+00 : f32
    %36 = vector.broadcast %cst_18 : f32 to vector<256x128xf32>
    %37 = vector.extract_strided_slice %30 {offsets = [0, 0, 0, 0], sizes = [4, 8, 8, 128], strides = [1, 1, 1, 1]} : vector<6x10x8x128xf32> to vector<4x8x8x128xf32>
    %38 = vector.extract_strided_slice %24 {offsets = [0, 0, 0, 0], sizes = [4, 8, 8, 128], strides = [1, 1, 1, 1]} : vector<6x10x8x128xf32> to vector<4x8x8x128xf32>
    %39 = vector.extract_strided_slice %35 {offsets = [0, 0, 0, 0], sizes = [4, 8, 8, 128], strides = [1, 1, 1, 1]} : vector<6x10x8x128xf32> to vector<4x8x8x128xf32>
    %40 = tpu.concatenate %37, %38, %39 in 3 : vector<4x8x8x128xf32>, vector<4x8x8x128xf32>, vector<4x8x8x128xf32> -> vector<4x8x8x384xf32>
    %41 = vector.shape_cast %40 : vector<4x8x8x384xf32> to vector<256x384xf32>
    %42 = arith.truncf %41 : vector<256x384xf32> to vector<256x384xbf16>
    %c0_19 = arith.constant 0 : index
    %c0_20 = arith.constant 0 : index
    %c0_21 = arith.constant 0 : index
    %43 = vector.load %arg5[%c0_19, %c0_20, %c0_21] : memref<9x384x128xbf16, #tpu.memory_space<vmem>>, vector<1x384x128xbf16>
    %44 = vector.shape_cast %43 : vector<1x384x128xbf16> to vector<384x128xbf16>
    %cst_22 = arith.constant dense<0.000000e+00> : vector<256x128xf32>
    %45 = tpu.matmul %42, %44, %cst_22 {dimension_numbers = #tpu.dot_dimension_numbers<[1], [0], [0], [1], [0, 0, 1, 1], [], []>} : vector<256x384xbf16>, vector<384x128xbf16>, vector<256x128xf32> -> vector<256x128xf32>
    %46 = arith.addf %36, %45 : vector<256x128xf32>
    %47 = vector.extract_strided_slice %30 {offsets = [0, 1, 0, 0], sizes = [4, 8, 8, 128], strides = [1, 1, 1, 1]} : vector<6x10x8x128xf32> to vector<4x8x8x128xf32>
    %48 = vector.extract_strided_slice %24 {offsets = [0, 1, 0, 0], sizes = [4, 8, 8, 128], strides = [1, 1, 1, 1]} : vector<6x10x8x128xf32> to vector<4x8x8x128xf32>
    %49 = vector.extract_strided_slice %35 {offsets = [0, 1, 0, 0], sizes = [4, 8, 8, 128], strides = [1, 1, 1, 1]} : vector<6x10x8x128xf32> to vector<4x8x8x128xf32>
    %50 = tpu.concatenate %47, %48, %49 in 3 : vector<4x8x8x128xf32>, vector<4x8x8x128xf32>, vector<4x8x8x128xf32> -> vector<4x8x8x384xf32>
    %51 = vector.shape_cast %50 : vector<4x8x8x384xf32> to vector<256x384xf32>
    %52 = arith.truncf %51 : vector<256x384xf32> to vector<256x384xbf16>
    %c1 = arith.constant 1 : index
    %c0_23 = arith.constant 0 : index
    %c0_24 = arith.constant 0 : index
    %53 = vector.load %arg5[%c1, %c0_23, %c0_24] : memref<9x384x128xbf16, #tpu.memory_space<vmem>>, vector<1x384x128xbf16>
    %54 = vector.shape_cast %53 : vector<1x384x128xbf16> to vector<384x128xbf16>
    %cst_25 = arith.constant dense<0.000000e+00> : vector<256x128xf32>
    %55 = tpu.matmul %52, %54, %cst_25 {dimension_numbers = #tpu.dot_dimension_numbers<[1], [0], [0], [1], [0, 0, 1, 1], [], []>} : vector<256x384xbf16>, vector<384x128xbf16>, vector<256x128xf32> -> vector<256x128xf32>
    %56 = arith.addf %46, %55 : vector<256x128xf32>
    %57 = vector.extract_strided_slice %30 {offsets = [0, 2, 0, 0], sizes = [4, 8, 8, 128], strides = [1, 1, 1, 1]} : vector<6x10x8x128xf32> to vector<4x8x8x128xf32>
    %58 = vector.extract_strided_slice %24 {offsets = [0, 2, 0, 0], sizes = [4, 8, 8, 128], strides = [1, 1, 1, 1]} : vector<6x10x8x128xf32> to vector<4x8x8x128xf32>
    %59 = vector.extract_strided_slice %35 {offsets = [0, 2, 0, 0], sizes = [4, 8, 8, 128], strides = [1, 1, 1, 1]} : vector<6x10x8x128xf32> to vector<4x8x8x128xf32>
    %60 = tpu.concatenate %57, %58, %59 in 3 : vector<4x8x8x128xf32>, vector<4x8x8x128xf32>, vector<4x8x8x128xf32> -> vector<4x8x8x384xf32>
    %61 = vector.shape_cast %60 : vector<4x8x8x384xf32> to vector<256x384xf32>
    %62 = arith.truncf %61 : vector<256x384xf32> to vector<256x384xbf16>
    %c2 = arith.constant 2 : index
    %c0_26 = arith.constant 0 : index
    %c0_27 = arith.constant 0 : index
    %63 = vector.load %arg5[%c2, %c0_26, %c0_27] : memref<9x384x128xbf16, #tpu.memory_space<vmem>>, vector<1x384x128xbf16>
    %64 = vector.shape_cast %63 : vector<1x384x128xbf16> to vector<384x128xbf16>
    %cst_28 = arith.constant dense<0.000000e+00> : vector<256x128xf32>
    %65 = tpu.matmul %62, %64, %cst_28 {dimension_numbers = #tpu.dot_dimension_numbers<[1], [0], [0], [1], [0, 0, 1, 1], [], []>} : vector<256x384xbf16>, vector<384x128xbf16>, vector<256x128xf32> -> vector<256x128xf32>
    %66 = arith.addf %56, %65 : vector<256x128xf32>
    %67 = vector.extract_strided_slice %30 {offsets = [1, 0, 0, 0], sizes = [4, 8, 8, 128], strides = [1, 1, 1, 1]} : vector<6x10x8x128xf32> to vector<4x8x8x128xf32>
    %68 = vector.extract_strided_slice %24 {offsets = [1, 0, 0, 0], sizes = [4, 8, 8, 128], strides = [1, 1, 1, 1]} : vector<6x10x8x128xf32> to vector<4x8x8x128xf32>
    %69 = vector.extract_strided_slice %35 {offsets = [1, 0, 0, 0], sizes = [4, 8, 8, 128], strides = [1, 1, 1, 1]} : vector<6x10x8x128xf32> to vector<4x8x8x128xf32>
    %70 = tpu.concatenate %67, %68, %69 in 3 : vector<4x8x8x128xf32>, vector<4x8x8x128xf32>, vector<4x8x8x128xf32> -> vector<4x8x8x384xf32>
    %71 = vector.shape_cast %70 : vector<4x8x8x384xf32> to vector<256x384xf32>
    %72 = arith.truncf %71 : vector<256x384xf32> to vector<256x384xbf16>
    %c3 = arith.constant 3 : index
    %c0_29 = arith.constant 0 : index
    %c0_30 = arith.constant 0 : index
    %73 = vector.load %arg5[%c3, %c0_29, %c0_30] : memref<9x384x128xbf16, #tpu.memory_space<vmem>>, vector<1x384x128xbf16>
    %74 = vector.shape_cast %73 : vector<1x384x128xbf16> to vector<384x128xbf16>
    %cst_31 = arith.constant dense<0.000000e+00> : vector<256x128xf32>
    %75 = tpu.matmul %72, %74, %cst_31 {dimension_numbers = #tpu.dot_dimension_numbers<[1], [0], [0], [1], [0, 0, 1, 1], [], []>} : vector<256x384xbf16>, vector<384x128xbf16>, vector<256x128xf32> -> vector<256x128xf32>
    %76 = arith.addf %66, %75 : vector<256x128xf32>
    %77 = vector.extract_strided_slice %30 {offsets = [1, 1, 0, 0], sizes = [4, 8, 8, 128], strides = [1, 1, 1, 1]} : vector<6x10x8x128xf32> to vector<4x8x8x128xf32>
    %78 = vector.extract_strided_slice %24 {offsets = [1, 1, 0, 0], sizes = [4, 8, 8, 128], strides = [1, 1, 1, 1]} : vector<6x10x8x128xf32> to vector<4x8x8x128xf32>
    %79 = vector.extract_strided_slice %35 {offsets = [1, 1, 0, 0], sizes = [4, 8, 8, 128], strides = [1, 1, 1, 1]} : vector<6x10x8x128xf32> to vector<4x8x8x128xf32>
    %80 = tpu.concatenate %77, %78, %79 in 3 : vector<4x8x8x128xf32>, vector<4x8x8x128xf32>, vector<4x8x8x128xf32> -> vector<4x8x8x384xf32>
    %81 = vector.shape_cast %80 : vector<4x8x8x384xf32> to vector<256x384xf32>
    %82 = arith.truncf %81 : vector<256x384xf32> to vector<256x384xbf16>
    %c4 = arith.constant 4 : index
    %c0_32 = arith.constant 0 : index
    %c0_33 = arith.constant 0 : index
    %83 = vector.load %arg5[%c4, %c0_32, %c0_33] : memref<9x384x128xbf16, #tpu.memory_space<vmem>>, vector<1x384x128xbf16>
    %84 = vector.shape_cast %83 : vector<1x384x128xbf16> to vector<384x128xbf16>
    %cst_34 = arith.constant dense<0.000000e+00> : vector<256x128xf32>
    %85 = tpu.matmul %82, %84, %cst_34 {dimension_numbers = #tpu.dot_dimension_numbers<[1], [0], [0], [1], [0, 0, 1, 1], [], []>} : vector<256x384xbf16>, vector<384x128xbf16>, vector<256x128xf32> -> vector<256x128xf32>
    %86 = arith.addf %76, %85 : vector<256x128xf32>
    %87 = vector.extract_strided_slice %30 {offsets = [1, 2, 0, 0], sizes = [4, 8, 8, 128], strides = [1, 1, 1, 1]} : vector<6x10x8x128xf32> to vector<4x8x8x128xf32>
    %88 = vector.extract_strided_slice %24 {offsets = [1, 2, 0, 0], sizes = [4, 8, 8, 128], strides = [1, 1, 1, 1]} : vector<6x10x8x128xf32> to vector<4x8x8x128xf32>
    %89 = vector.extract_strided_slice %35 {offsets = [1, 2, 0, 0], sizes = [4, 8, 8, 128], strides = [1, 1, 1, 1]} : vector<6x10x8x128xf32> to vector<4x8x8x128xf32>
    %90 = tpu.concatenate %87, %88, %89 in 3 : vector<4x8x8x128xf32>, vector<4x8x8x128xf32>, vector<4x8x8x128xf32> -> vector<4x8x8x384xf32>
    %91 = vector.shape_cast %90 : vector<4x8x8x384xf32> to vector<256x384xf32>
    %92 = arith.truncf %91 : vector<256x384xf32> to vector<256x384xbf16>
    %c5 = arith.constant 5 : index
    %c0_35 = arith.constant 0 : index
    %c0_36 = arith.constant 0 : index
    %93 = vector.load %arg5[%c5, %c0_35, %c0_36] : memref<9x384x128xbf16, #tpu.memory_space<vmem>>, vector<1x384x128xbf16>
    %94 = vector.shape_cast %93 : vector<1x384x128xbf16> to vector<384x128xbf16>
    %cst_37 = arith.constant dense<0.000000e+00> : vector<256x128xf32>
    %95 = tpu.matmul %92, %94, %cst_37 {dimension_numbers = #tpu.dot_dimension_numbers<[1], [0], [0], [1], [0, 0, 1, 1], [], []>} : vector<256x384xbf16>, vector<384x128xbf16>, vector<256x128xf32> -> vector<256x128xf32>
    %96 = arith.addf %86, %95 : vector<256x128xf32>
    %97 = vector.extract_strided_slice %30 {offsets = [2, 0, 0, 0], sizes = [4, 8, 8, 128], strides = [1, 1, 1, 1]} : vector<6x10x8x128xf32> to vector<4x8x8x128xf32>
    %98 = vector.extract_strided_slice %24 {offsets = [2, 0, 0, 0], sizes = [4, 8, 8, 128], strides = [1, 1, 1, 1]} : vector<6x10x8x128xf32> to vector<4x8x8x128xf32>
    %99 = vector.extract_strided_slice %35 {offsets = [2, 0, 0, 0], sizes = [4, 8, 8, 128], strides = [1, 1, 1, 1]} : vector<6x10x8x128xf32> to vector<4x8x8x128xf32>
    %100 = tpu.concatenate %97, %98, %99 in 3 : vector<4x8x8x128xf32>, vector<4x8x8x128xf32>, vector<4x8x8x128xf32> -> vector<4x8x8x384xf32>
    %101 = vector.shape_cast %100 : vector<4x8x8x384xf32> to vector<256x384xf32>
    %102 = arith.truncf %101 : vector<256x384xf32> to vector<256x384xbf16>
    %c6 = arith.constant 6 : index
    %c0_38 = arith.constant 0 : index
    %c0_39 = arith.constant 0 : index
    %103 = vector.load %arg5[%c6, %c0_38, %c0_39] : memref<9x384x128xbf16, #tpu.memory_space<vmem>>, vector<1x384x128xbf16>
    %104 = vector.shape_cast %103 : vector<1x384x128xbf16> to vector<384x128xbf16>
    %cst_40 = arith.constant dense<0.000000e+00> : vector<256x128xf32>
    %105 = tpu.matmul %102, %104, %cst_40 {dimension_numbers = #tpu.dot_dimension_numbers<[1], [0], [0], [1], [0, 0, 1, 1], [], []>} : vector<256x384xbf16>, vector<384x128xbf16>, vector<256x128xf32> -> vector<256x128xf32>
    %106 = arith.addf %96, %105 : vector<256x128xf32>
    %107 = vector.extract_strided_slice %30 {offsets = [2, 1, 0, 0], sizes = [4, 8, 8, 128], strides = [1, 1, 1, 1]} : vector<6x10x8x128xf32> to vector<4x8x8x128xf32>
    %108 = vector.extract_strided_slice %24 {offsets = [2, 1, 0, 0], sizes = [4, 8, 8, 128], strides = [1, 1, 1, 1]} : vector<6x10x8x128xf32> to vector<4x8x8x128xf32>
    %109 = vector.extract_strided_slice %35 {offsets = [2, 1, 0, 0], sizes = [4, 8, 8, 128], strides = [1, 1, 1, 1]} : vector<6x10x8x128xf32> to vector<4x8x8x128xf32>
    %110 = tpu.concatenate %107, %108, %109 in 3 : vector<4x8x8x128xf32>, vector<4x8x8x128xf32>, vector<4x8x8x128xf32> -> vector<4x8x8x384xf32>
    %111 = vector.shape_cast %110 : vector<4x8x8x384xf32> to vector<256x384xf32>
    %112 = arith.truncf %111 : vector<256x384xf32> to vector<256x384xbf16>
    %c7 = arith.constant 7 : index
    %c0_41 = arith.constant 0 : index
    %c0_42 = arith.constant 0 : index
    %113 = vector.load %arg5[%c7, %c0_41, %c0_42] : memref<9x384x128xbf16, #tpu.memory_space<vmem>>, vector<1x384x128xbf16>
    %114 = vector.shape_cast %113 : vector<1x384x128xbf16> to vector<384x128xbf16>
    %cst_43 = arith.constant dense<0.000000e+00> : vector<256x128xf32>
    %115 = tpu.matmul %112, %114, %cst_43 {dimension_numbers = #tpu.dot_dimension_numbers<[1], [0], [0], [1], [0, 0, 1, 1], [], []>} : vector<256x384xbf16>, vector<384x128xbf16>, vector<256x128xf32> -> vector<256x128xf32>
    %116 = arith.addf %106, %115 : vector<256x128xf32>
    %117 = vector.extract_strided_slice %30 {offsets = [2, 2, 0, 0], sizes = [4, 8, 8, 128], strides = [1, 1, 1, 1]} : vector<6x10x8x128xf32> to vector<4x8x8x128xf32>
    %118 = vector.extract_strided_slice %24 {offsets = [2, 2, 0, 0], sizes = [4, 8, 8, 128], strides = [1, 1, 1, 1]} : vector<6x10x8x128xf32> to vector<4x8x8x128xf32>
    %119 = vector.extract_strided_slice %35 {offsets = [2, 2, 0, 0], sizes = [4, 8, 8, 128], strides = [1, 1, 1, 1]} : vector<6x10x8x128xf32> to vector<4x8x8x128xf32>
    %120 = tpu.concatenate %117, %118, %119 in 3 : vector<4x8x8x128xf32>, vector<4x8x8x128xf32>, vector<4x8x8x128xf32> -> vector<4x8x8x384xf32>
    %121 = vector.shape_cast %120 : vector<4x8x8x384xf32> to vector<256x384xf32>
    %122 = arith.truncf %121 : vector<256x384xf32> to vector<256x384xbf16>
    %c8 = arith.constant 8 : index
    %c0_44 = arith.constant 0 : index
    %c0_45 = arith.constant 0 : index
    %123 = vector.load %arg5[%c8, %c0_44, %c0_45] : memref<9x384x128xbf16, #tpu.memory_space<vmem>>, vector<1x384x128xbf16>
    %124 = vector.shape_cast %123 : vector<1x384x128xbf16> to vector<384x128xbf16>
    %cst_46 = arith.constant dense<0.000000e+00> : vector<256x128xf32>
    %125 = tpu.matmul %122, %124, %cst_46 {dimension_numbers = #tpu.dot_dimension_numbers<[1], [0], [0], [1], [0, 0, 1, 1], [], []>} : vector<256x384xbf16>, vector<384x128xbf16>, vector<256x128xf32> -> vector<256x128xf32>
    %126 = arith.addf %116, %125 : vector<256x128xf32>
    %c0_47 = arith.constant 0 : index
    %c0_48 = arith.constant 0 : index
    %127 = vector.load %arg6[%c0_47, %c0_48] : memref<1x128xf32, #tpu.memory_space<vmem>>, vector<1x128xf32>
    %128 = vector.broadcast %127 : vector<1x128xf32> to vector<256x128xf32>
    %129 = arith.mulf %126, %128 : vector<256x128xf32>
    %c0_49 = arith.constant 0 : index
    %c0_50 = arith.constant 0 : index
    %130 = vector.load %arg7[%c0_49, %c0_50] : memref<1x128xf32, #tpu.memory_space<vmem>>, vector<1x128xf32>
    %131 = vector.broadcast %130 : vector<1x128xf32> to vector<256x128xf32>
    %132 = arith.addf %129, %131 : vector<256x128xf32>
    %cst_51 = arith.constant 0.000000e+00 : f32
    %133 = vector.broadcast %cst_51 : f32 to vector<256x128xf32>
    %134 = arith.maximumf %132, %133 : vector<256x128xf32>
    %135 = vector.shape_cast %134 : vector<256x128xf32> to vector<4x8x8x128xf32>
    %136 = arith.truncf %135 : vector<4x8x8x128xf32> to vector<4x8x8x128xbf16>
    %c0_52 = arith.constant 0 : index
    %c0_53 = arith.constant 0 : index
    %c0_54 = arith.constant 0 : index
    %c0_55 = arith.constant 0 : index
    %c0_56 = arith.constant 0 : index
    %137 = vector.load %arg8[%c0_52, %c0_53, %c0_54, %c0_55, %c0_56] : memref<1x4x8x8x128xbf16, #tpu.memory_space<vmem>>, vector<1x4x8x8x128xbf16>
    %138 = vector.shape_cast %137 : vector<1x4x8x8x128xbf16> to vector<4x8x8x128xbf16>
    %139 = vector.shape_cast %136 : vector<4x8x8x128xbf16> to vector<1x4x8x8x128xbf16>
    tpu.vector_store %arg8[%c0_52, %c0_53, %c0_54, %c0_55, %c0_56], %139 {strides = array<i32>} : memref<1x4x8x8x128xbf16, #tpu.memory_space<vmem>>, vector<1x4x8x8x128xbf16>,
    return
  }
  func.func @transform_0(%arg0: i32, %arg1: i32) -> (i32, i32, i32, i32, i32) {
    %c0_i32 = arith.constant 0 : i32
    %c0_i32_0 = arith.constant 0 : i32
    %c0_i32_1 = arith.constant 0 : i32
    %c0_i32_2 = arith.constant 0 : i32
    return %arg0, %arg1, %c0_i32, %c0_i32_0, %c0_i32_1 : i32, i32, i32, i32, i32
  }
  func.func @transform_1(%arg0: i32, %arg1: i32) -> (i32, i32, i32, i32, i32) {
    %c4_i32 = arith.constant 4 : i32
    %0 = arith.muli %arg1, %c4_i32 : i32
    %c1_i32 = arith.constant 1 : i32
    %1 = arith.subi %0, %c1_i32 : i32
    %c0_i32 = arith.constant 0 : i32
    %2 = arith.maxsi %1, %c0_i32 : i32
    %c0_i32_0 = arith.constant 0 : i32
    %c0_i32_1 = arith.constant 0 : i32
    %c0_i32_2 = arith.constant 0 : i32
    %c0_i32_3 = arith.constant 0 : i32
    return %arg0, %2, %c0_i32_0, %c0_i32_1, %c0_i32_2 : i32, i32, i32, i32, i32
  }
  func.func @transform_2(%arg0: i32, %arg1: i32) -> (i32, i32, i32, i32, i32) {
    %c4_i32 = arith.constant 4 : i32
    %0 = arith.muli %arg1, %c4_i32 : i32
    %c4_i32_0 = arith.constant 4 : i32
    %1 = arith.addi %0, %c4_i32_0 : i32
    %c7_i32 = arith.constant 7 : i32
    %2 = arith.minsi %1, %c7_i32 : i32
    %c0_i32 = arith.constant 0 : i32
    %c0_i32_1 = arith.constant 0 : i32
    %c0_i32_2 = arith.constant 0 : i32
    %c0_i32_3 = arith.constant 0 : i32
    return %arg0, %2, %c0_i32, %c0_i32_1, %c0_i32_2 : i32, i32, i32, i32, i32
  }
  func.func @transform_3(%arg0: i32, %arg1: i32) -> (i32, i32, i32) {
    %c0_i32 = arith.constant 0 : i32
    %c0_i32_0 = arith.constant 0 : i32
    %c0_i32_1 = arith.constant 0 : i32
    %c0_i32_2 = arith.constant 0 : i32
    return %c0_i32, %c0_i32_0, %c0_i32_1 : i32, i32, i32
  }
  func.func @transform_4(%arg0: i32, %arg1: i32) -> (i32, i32) {
    %c0_i32 = arith.constant 0 : i32
    %c0_i32_0 = arith.constant 0 : i32
    %c0_i32_1 = arith.constant 0 : i32
    return %c0_i32, %c0_i32_0 : i32, i32
  }
  func.func @transform_5(%arg0: i32, %arg1: i32) -> (i32, i32) {
    %c0_i32 = arith.constant 0 : i32
    %c0_i32_0 = arith.constant 0 : i32
    %c0_i32_1 = arith.constant 0 : i32
    return %c0_i32, %c0_i32_0 : i32, i32
  }
  func.func @transform_6(%arg0: i32, %arg1: i32) -> (i32, i32, i32, i32, i32) {
    %c0_i32 = arith.constant 0 : i32
    %c0_i32_0 = arith.constant 0 : i32
    %c0_i32_1 = arith.constant 0 : i32
    %c0_i32_2 = arith.constant 0 : i32
    return %arg0, %arg1, %c0_i32, %c0_i32_0, %c0_i32_1 : i32, i32, i32, i32, i32
  }
}

</mosaic_0001>

<llo_original>
// kernel: tpu_custom_call.1
$region0: #{tpu_custom_call.1}
  #allocation0 [shape = 'u32[]', space=smem, size = 0x4, offset = 0x4, fixed_abs, tag = 'smem constant byte address 0x4 - core index']
  #allocation1 [shape = 'u32[144,128]{1,0:T(1,128)}', space=vmem, size = 0x12000, scoped, tag = 'internal scratch']
  %s0 = inlined_call_operand.hbm [shape: bf16[2,8,8,8,128], index: 0, kind: input, shape index: {}]
  %s1 = inlined_call_operand.hbm [shape: bf16[2,8,8,8,128], index: 1, kind: input, shape index: {}]
  %s2 = inlined_call_operand.hbm [shape: bf16[2,8,8,8,128], index: 2, kind: input, shape index: {}]
  %s3 = inlined_call_operand.hbm [shape: bf16[9,384,128], index: 3, kind: input, shape index: {}]
  %s4 = inlined_call_operand.vmem [shape: f32[1,128], index: 4, kind: input, shape index: {}]
  %s5 = inlined_call_operand.vmem [shape: f32[1,128], index: 5, kind: input, shape index: {}]
  %s6 = inlined_call_operand.hbm [shape: bf16[2,8,8,8,128], index: 6, kind: output, shape index: {}]
  %s7 = sld [smem:[#allocation0]]
  $region73: #{tpu_custom_call.1} parent=0
    _
  %s9 = ssub.s32 1, %s7
  %s10 = scalar_select 0, %s9, %s7
  $region1: #{tpu_custom_call.1} parent=0
    #allocation2 [shape = 'u8[131072]{0}', space=vmem, size = 0x20000, scoped, tag = 'input window, operand 0']
    #allocation3 [shape = 's32[2]{0}', space=sflag, size = 0x8, scoped, tag = 'scoped memory for tpu_custom_call.1']
    #allocation4 [shape = 's32[2]{0}', space=sflag, size = 0x8, scoped, tag = 'scoped memory for tpu_custom_call.1']
    #allocation5 [shape = 'u8[32768]{0}', space=vmem, size = 0x8000, scoped, tag = 'input window, operand 1']
    #allocation6 [shape = 's32[2]{0}', space=sflag, size = 0x8, scoped, tag = 'scoped memory for tpu_custom_call.1']
    #allocation7 [shape = 'u8[32768]{0}', space=vmem, size = 0x8000, scoped, tag = 'input window, operand 2']
    #allocation8 [shape = 'u8[884736]{0}', space=vmem, size = 0xd8000, scoped, tag = 'input window, operand 3, single buffered']
    #allocation9 [shape = 's32[1]{0}', space=sflag, size = 0x4, scoped, tag = 'scoped memory for tpu_custom_call.1']
    #allocation10 [shape = 'u8[131072]{0}', space=vmem, size = 0x20000, scoped, tag = 'output window, operand 0']
    %11 = vsyncpa [#allocation3], 0
    %s12 = scalar_lea.sflag [#allocation3], 1
    %13 = vsyncpa %s12, 0
    %14 = vsyncpa [#allocation6], 0
    %s15 = scalar_lea.sflag [#allocation6], 1
    %16 = vsyncpa %s15, 0
    %17 = vsyncpa [#allocation9], 0
    %18 = vsyncpa [#allocation4], 0
    %s19 = scalar_lea.sflag [#allocation4], 1
    %20 = vsyncpa %s19, 0
    loop: start=0, step=1, limit=6
    $region2: #{tpu_custom_call.1} parent=1 // loop_pre_header
      _
    $region3: #{tpu_custom_call.1} parent=1 // loop_header
      %s22 = sphi 0, %s26
      %p23 = scmp.ge.s32.totalorder %s22, 6
      %s29 = sphi 0, %s41
      %s30 = sphi 0, %s37
      %s31 = sphi 0, %s29
      %s32 = sphi 0, %s30
      %s33 = sphi 0, %s31
      %s34 = sphi 0, %s32
      %s46 = sphi 0, %s48
      %s49 = sphi 0, %s46
      %s50 = sphi 0, %s49
      %s66 = sphi 0, %s50
      %s82 = sphi 0, %s84
      %s85 = sphi 0, %s82
      %s86 = sphi 0, %s85
      %s102 = sphi 0, %s86
      %s118 = sphi 0, %s120
      %s121 = sphi 0, %s118
      %s122 = sphi 0, %s121
      %s138 = sphi 0, %s122
      %s142 = sphi 0, %s142
      %s144 = sphi 0, %s142
      %s145 = sphi 0, %s144
      %s159 = sphi 0, %s145
      %s163 = sphi 0, %s163
      %s165 = sphi 0, %s163
      %s166 = sphi 0, %s165
      %s180 = sphi 0, %s166
      %s184 = sphi 0, %s184
      %s186 = sphi 0, %s184
      %s187 = sphi 0, %s186
      %s201 = sphi 0, %s187
      %s209 = sphi 0, %s211
      %s212 = sphi 0, %s209
      %s213 = sphi 0, %s212
      %s229 = sphi 0, %s213
    $region4: #{tpu_custom_call.1} parent=1 // loop_header_branch
      %25 = sbr.rel (%p23) target = $region8
    $region5: #{tpu_custom_call.1} parent=1 // loop_body
      %s27 = ssub.s32 %s22, 1
      %s28 = ssub.s32 %s22, 2
      %s35 = sadd.s32 1, %s30
      %p36 = scmp.ge.s32.totalorder %s35, 2
      %s37 = scalar_select %p36, 0, %s35
      %s38 = sadd.s32 1, %s29
      %s39 = scalar_select %p36, %s38, %s29
      %p40 = scmp.ge.s32.totalorder %s39, 2
      %s41 = scalar_select %p40, 0, %s39
      %s42 = ssub.s32 %s29, %s41
      %s43 = ssub.s32 %s30, %s37
      %s44 = sor.u32 %s42, %s43
      %p45 = scmp.eq.s32.totalorder %s44, 0
      %s47 = sadd.s32 %s46, 1
      %s48 = scalar_select %p45, %s46, %s47
      %p51 = pneg %p45
      %p52 = scmp.eq.s32.totalorder %s22, 3
      %p53 = por %p51, %p52
      %p54 = scmp.ne.s32.totalorder %s46, %s49
      %p55 = scmp.eq.s32.totalorder %s22, 0
      %p56 = por %p54, %p55
      %p57 = scmp.ne.s32.totalorder %s46, %s49
      %p58 = scmp.eq.s32.totalorder %s27, 3
      %p59 = por %p57, %p58
      %p60 = scmp.ne.s32.totalorder %s49, %s50
      %p61 = scmp.eq.s32.totalorder %s27, 0
      %p62 = por %p60, %p61
      %p63 = scmp.ne.s32.totalorder %s49, %s50
      %p64 = scmp.eq.s32.totalorder %s28, 3
      %p65 = por %p63, %p64
      %p67 = scmp.ne.s32.totalorder %s50, %s66
      %p68 = scmp.eq.s32.totalorder %s28, 0
      %p69 = por %p67, %p68
      %s70 = smul.u32 %s30, 4
      %s71 = ssub.s32 %s70, 1
      %p72 = scmp.gt.s32.totalorder %s71, 0
      %s73 = scalar_select %p72, %s71, 0
      %s74 = smul.u32 %s37, 4
      %s75 = ssub.s32 %s74, 1
      %p76 = scmp.gt.s32.totalorder %s75, 0
      %s77 = scalar_select %p76, %s75, 0
      %s78 = ssub.s32 %s29, %s41
      %s79 = ssub.s32 %s73, %s77
      %s80 = sor.u32 %s78, %s79
      %p81 = scmp.eq.s32.totalorder %s80, 0
      %s83 = sadd.s32 %s82, 1
      %s84 = scalar_select %p81, %s82, %s83
      %p87 = pneg %p81
      %p88 = scmp.eq.s32.totalorder %s22, 3
      %p89 = por %p87, %p88
      %p90 = scmp.ne.s32.totalorder %s82, %s85
      %p91 = scmp.eq.s32.totalorder %s22, 0
      %p92 = por %p90, %p91
      %p93 = scmp.ne.s32.totalorder %s82, %s85
      %p94 = scmp.eq.s32.totalorder %s27, 3
      %p95 = por %p93, %p94
      %p96 = scmp.ne.s32.totalorder %s85, %s86
      %p97 = scmp.eq.s32.totalorder %s27, 0
      %p98 = por %p96, %p97
      %p99 = scmp.ne.s32.totalorder %s85, %s86
      %p100 = scmp.eq.s32.totalorder %s28, 3
      %p101 = por %p99, %p100
      %p103 = scmp.ne.s32.totalorder %s86, %s102
      %p104 = scmp.eq.s32.totalorder %s28, 0
      %p105 = por %p103, %p104
      %s106 = smul.u32 %s30, 4
      %s107 = sadd.s32 %s106, 4
      %p108 = scmp.lt.s32.totalorder %s107, 7
      %s109 = scalar_select %p108, %s107, 7
      %s110 = smul.u32 %s37, 4
      %s111 = sadd.s32 %s110, 4
      %p112 = scmp.lt.s32.totalorder %s111, 7
      %s113 = scalar_select %p112, %s111, 7
      %s114 = ssub.s32 %s29, %s41
      %s115 = ssub.s32 %s109, %s113
      %s116 = sor.u32 %s114, %s115
      %p117 = scmp.eq.s32.totalorder %s116, 0
      %s119 = sadd.s32 %s118, 1
      %s120 = scalar_select %p117, %s118, %s119
      %p123 = pneg %p117
      %p124 = scmp.eq.s32.totalorder %s22, 3
      %p125 = por %p123, %p124
      %p126 = scmp.ne.s32.totalorder %s118, %s121
      %p127 = scmp.eq.s32.totalorder %s22, 0
      %p128 = por %p126, %p127
      %p129 = scmp.ne.s32.totalorder %s118, %s121
      %p130 = scmp.eq.s32.totalorder %s27, 3
      %p131 = por %p129, %p130
      %p132 = scmp.ne.s32.totalorder %s121, %s122
      %p133 = scmp.eq.s32.totalorder %s27, 0
      %p134 = por %p132, %p133
      %p135 = scmp.ne.s32.totalorder %s121, %s122
      %p136 = scmp.eq.s32.totalorder %s28, 3
      %p137 = por %p135, %p136
      %p139 = scmp.ne.s32.totalorder %s122, %s138
      %p140 = scmp.eq.s32.totalorder %s28, 0
      %p141 = por %p139, %p140
      %s143 = sadd.s32 %s142, 1
      %p146 = scmp.eq.s32.totalorder %s22, 3
      %p147 = scmp.ne.s32.totalorder %s142, %s144
      %p148 = scmp.eq.s32.totalorder %s22, 0
      %p149 = por %p147, %p148
      %p150 = scmp.ne.s32.totalorder %s142, %s144
      %p151 = scmp.eq.s32.totalorder %s27, 3
      %p152 = por %p150, %p151
      %p153 = scmp.ne.s32.totalorder %s144, %s145
      %p154 = scmp.eq.s32.totalorder %s27, 0
      %p155 = por %p153, %p154
      %p156 = scmp.ne.s32.totalorder %s144, %s145
      %p157 = scmp.eq.s32.totalorder %s28, 3
      %p158 = por %p156, %p157
      %p160 = scmp.ne.s32.totalorder %s145, %s159
      %p161 = scmp.eq.s32.totalorder %s28, 0
      %p162 = por %p160, %p161
      %s164 = sadd.s32 %s163, 1
      %p167 = scmp.eq.s32.totalorder %s22, 3
      %p168 = scmp.ne.s32.totalorder %s163, %s165
      %p169 = scmp.eq.s32.totalorder %s22, 0
      %p170 = por %p168, %p169
      %p171 = scmp.ne.s32.totalorder %s163, %s165
      %p172 = scmp.eq.s32.totalorder %s27, 3
      %p173 = por %p171, %p172
      %p174 = scmp.ne.s32.totalorder %s165, %s166
      %p175 = scmp.eq.s32.totalorder %s27, 0
      %p176 = por %p174, %p175
      %p177 = scmp.ne.s32.totalorder %s165, %s166
      %p178 = scmp.eq.s32.totalorder %s28, 3
      %p179 = por %p177, %p178
      %p181 = scmp.ne.s32.totalorder %s166, %s180
      %p182 = scmp.eq.s32.totalorder %s28, 0
      %p183 = por %p181, %p182
      %s185 = sadd.s32 %s184, 1
      %p188 = scmp.eq.s32.totalorder %s22, 3
      %p189 = scmp.ne.s32.totalorder %s184, %s186
      %p190 = scmp.eq.s32.totalorder %s22, 0
      %p191 = por %p189, %p190
      %p192 = scmp.ne.s32.totalorder %s184, %s186
      %p193 = scmp.eq.s32.totalorder %s27, 3
      %p194 = por %p192, %p193
      %p195 = scmp.ne.s32.totalorder %s186, %s187
      %p196 = scmp.eq.s32.totalorder %s27, 0
      %p197 = por %p195, %p196
      %p198 = scmp.ne.s32.totalorder %s186, %s187
      %p199 = scmp.eq.s32.totalorder %s28, 3
      %p200 = por %p198, %p199
      %p202 = scmp.ne.s32.totalorder %s187, %s201
      %p203 = scmp.eq.s32.totalorder %s28, 0
      %p204 = por %p202, %p203
      %s205 = ssub.s32 %s29, %s41
      %s206 = ssub.s32 %s30, %s37
      %s207 = sor.u32 %s205, %s206
      %p208 = scmp.eq.s32.totalorder %s207, 0
      %s210 = sadd.s32 %s209, 1
      %s211 = scalar_select %p208, %s209, %s210
      %p214 = pneg %p208
      %p215 = scmp.eq.s32.totalorder %s22, 3
      %p216 = por %p214, %p215
      %p217 = scmp.ne.s32.totalorder %s209, %s212
      %p218 = scmp.eq.s32.totalorder %s22, 0
      %p219 = por %p217, %p218
      %p220 = scmp.ne.s32.totalorder %s209, %s212
      %p221 = scmp.eq.s32.totalorder %s27, 3
      %p222 = por %p220, %p221
      %p223 = scmp.ne.s32.totalorder %s212, %s213
      %p224 = scmp.eq.s32.totalorder %s27, 0
      %p225 = por %p223, %p224
      %p226 = scmp.ne.s32.totalorder %s212, %s213
      %p227 = scmp.eq.s32.totalorder %s28, 3
      %p228 = por %p226, %p227
      %p230 = scmp.ne.s32.totalorder %s213, %s229
      %p231 = scmp.eq.s32.totalorder %s28, 0
      %p232 = por %p230, %p231
      %p233 = scmp.le.s32.totalorder 1, %s22
      %p234 = scmp.lt.s32.totalorder %s22, 5
      %p235 = pnand %p233, %p234
      %p236 = pneg %p235
      // Predicated region
      $region9: #{tpu_custom_call.1} parent=5 // pred_check
        _
      $region10: #{tpu_custom_call.1} parent=5 // pred_check_branch
        %238 = sbr.rel (%p235) target = $region12
      $region11: #{tpu_custom_call.1} parent=5 // pred_region
        %s239 = ssub.s32 %s22, 1
        // Predicated region
        $region13: #{tpu_custom_call.1} parent=11 // pred_check
          %p240 = pneg %p155
        $region14: #{tpu_custom_call.1} parent=11 // pred_check_branch
          %242 = sbr.rel (%p240) target = $region16
        $region15: #{tpu_custom_call.1} parent=11 // pred_region
          %s244 = ssub.s32 27648, 27648
          %245 = vsyncadd [#allocation9], %s244
          %s246 = sshll.u32 [#allocation8], 4
          %s247 = int_to_ptr.vmem [resolvable:$true] %s246
          %252 = dma.hbm_to_vmem [thread:$0]  %s3, 27648, %s247, [#allocation9], 64, 64, 4
        $region16: #{tpu_custom_call.1} parent=11 // pred_fallthru
          _
        // Predicated region
        $region17: #{tpu_custom_call.1} parent=11 // pred_check
          %p253 = pneg %p176
        $region18: #{tpu_custom_call.1} parent=11 // pred_check_branch
          %255 = sbr.rel (%p253) target = $region20
        $region19: #{tpu_custom_call.1} parent=11 // pred_region
          _
        $region20: #{tpu_custom_call.1} parent=11 // pred_fallthru
          _
        // Predicated region
        $region21: #{tpu_custom_call.1} parent=11 // pred_check
          %p256 = pneg %p197
        $region22: #{tpu_custom_call.1} parent=11 // pred_check_branch
          %258 = sbr.rel (%p256) target = $region24
        $region23: #{tpu_custom_call.1} parent=11 // pred_region
          _
        $region24: #{tpu_custom_call.1} parent=11 // pred_fallthru
          _
      $region12: #{tpu_custom_call.1} parent=5 // pred_fallthru
        _
      %p259 = scmp.lt.s32.totalorder %s22, 4
      // Predicated region
      $region25: #{tpu_custom_call.1} parent=5 // pred_check
        %p260 = pneg %p259
      $region26: #{tpu_custom_call.1} parent=5 // pred_check_branch
        %262 = sbr.rel (%p260) target = $region28
      $region27: #{tpu_custom_call.1} parent=5 // pred_region
        // Predicated region
        $region29: #{tpu_custom_call.1} parent=27 // pred_check
          %p263 = pneg %p56
        $region30: #{tpu_custom_call.1} parent=27 // pred_check_branch
          %265 = sbr.rel (%p263) target = $region32
        $region31: #{tpu_custom_call.1} parent=27 // pred_region
          %s266 = sand.u32 %s46, 1
          %s267 = scalar_lea.sflag [#allocation3], %s266
          %s268 = sand.u32 %s46, 1
          %s269 = smul.addr %s268, 128
          %s270 = scalar_lea.vmem [#allocation2], %s269
          %s271 = smul.u32 4, %s30
          %s273 = ssub.s32 2048, 2048
          %274 = vsyncadd %s267, %s273
          %s275 = smul.addr %s271, 8
          %s276 = smul.addr %s29, 64
          %s277 = sadd.s32 %s275, %s276
          %s278 = smul.addr %s277, 64
          %s279 = scalar_lea.hbm %s0, %s278
          %s280 = sshll.u32 %s270, 4
          %s281 = int_to_ptr.vmem [resolvable:$true] %s280
          %286 = dma.hbm_to_vmem [thread:$0]  %s279, 2048, %s281, %s267, 64, 64, 4
        $region32: #{tpu_custom_call.1} parent=27 // pred_fallthru
          _
        // Predicated region
        $region33: #{tpu_custom_call.1} parent=27 // pred_check
          %p287 = pneg %p92
        $region34: #{tpu_custom_call.1} parent=27 // pred_check_branch
          %289 = sbr.rel (%p287) target = $region36
        $region35: #{tpu_custom_call.1} parent=27 // pred_region
          %s290 = sand.u32 %s22, 1
          %s291 = scalar_lea.sflag [#allocation6], %s290
          %s292 = sand.u32 %s82, 1
          %s293 = smul.addr %s292, 32
          %s294 = scalar_lea.vmem [#allocation5], %s293
          %s295 = smul.u32 %s30, 4
          %s296 = ssub.s32 %s295, 1
          %p297 = scmp.gt.s32.totalorder %s296, 0
          %s298 = scalar_select %p297, %s296, 0
          %s300 = ssub.s32 512, 512
          %301 = vsyncadd %s291, %s300
          %s302 = smul.addr %s298, 8
          %s303 = smul.addr %s29, 64
          %s304 = sadd.s32 %s302, %s303
          %s305 = smul.addr %s304, 64
          %s306 = scalar_lea.hbm %s1, %s305
          %s307 = sshll.u32 %s294, 4
          %s308 = int_to_ptr.vmem [resolvable:$true] %s307
          %313 = dma.hbm_to_vmem [thread:$0]  %s306, 512, %s308, %s291, 64, 64, 4
        $region36: #{tpu_custom_call.1} parent=27 // pred_fallthru
          _
        // Predicated region
        $region37: #{tpu_custom_call.1} parent=27 // pred_check
          %p314 = pneg %p128
        $region38: #{tpu_custom_call.1} parent=27 // pred_check_branch
          %316 = sbr.rel (%p314) target = $region40
        $region39: #{tpu_custom_call.1} parent=27 // pred_region
          %s317 = sand.u32 %s22, 1
          %s318 = scalar_lea.sflag [#allocation6], %s317
          %s319 = sand.u32 %s118, 1
          %s320 = smul.addr %s319, 32
          %s321 = scalar_lea.vmem [#allocation7], %s320
          %s322 = smul.u32 %s30, 4
          %s323 = sadd.s32 %s322, 4
          %p324 = scmp.lt.s32.totalorder %s323, 7
          %s325 = scalar_select %p324, %s323, 7
          %s327 = ssub.s32 512, 512
          %328 = vsyncadd %s318, %s327
          %s329 = smul.addr %s325, 8
          %s330 = smul.addr %s29, 64
          %s331 = sadd.s32 %s329, %s330
          %s332 = smul.addr %s331, 64
          %s333 = scalar_lea.hbm %s2, %s332
          %s334 = sshll.u32 %s321, 4
          %s335 = int_to_ptr.vmem [resolvable:$true] %s334
          %340 = dma.hbm_to_vmem [thread:$0]  %s333, 512, %s335, %s318, 64, 64, 4
        $region40: #{tpu_custom_call.1} parent=27 // pred_fallthru
          _
      $region28: #{tpu_custom_call.1} parent=5 // pred_fallthru
        _
      %p341 = scmp.le.s32.totalorder 1, %s22
      %p342 = scmp.lt.s32.totalorder %s22, 5
      %p343 = pnand %p341, %p342
      %p344 = pneg %p343
      // Predicated region
      $region41: #{tpu_custom_call.1} parent=5 // pred_check
        _
      $region42: #{tpu_custom_call.1} parent=5 // pred_check_branch
        %346 = sbr.rel (%p343) target = $region44
      $region43: #{tpu_custom_call.1} parent=5 // pred_region
        %s347 = ssub.s32 %s22, 1
        %s348 = sand.u32 %s49, 1
        %s349 = scalar_lea.sflag [#allocation3], %s348
        %s350 = sand.u32 %s49, 1
        %s351 = smul.addr %s350, 128
        %s352 = scalar_lea.vmem [#allocation2], %s351
        // Predicated region
        $region45: #{tpu_custom_call.1} parent=43 // pred_check
          %p353 = pneg %p62
        $region46: #{tpu_custom_call.1} parent=43 // pred_check_branch
          %355 = sbr.rel (%p353) target = $region48
        $region47: #{tpu_custom_call.1} parent=43 // pred_region
          %356 = dma.done %s349, 2048
        $region48: #{tpu_custom_call.1} parent=43 // pred_fallthru
          _
        %s357 = sand.u32 %s27, 1
        %s358 = scalar_lea.sflag [#allocation6], %s357
        %s359 = sand.u32 %s85, 1
        %s360 = smul.addr %s359, 32
        %s361 = scalar_lea.vmem [#allocation5], %s360
        // Predicated region
        $region49: #{tpu_custom_call.1} parent=43 // pred_check
          %p362 = pneg %p98
        $region50: #{tpu_custom_call.1} parent=43 // pred_check_branch
          %364 = sbr.rel (%p362) target = $region52
        $region51: #{tpu_custom_call.1} parent=43 // pred_region
          %365 = dma.done %s358, 512
        $region52: #{tpu_custom_call.1} parent=43 // pred_fallthru
          _
        %s366 = sand.u32 %s27, 1
        %s367 = scalar_lea.sflag [#allocation6], %s366
        %s368 = sand.u32 %s121, 1
        %s369 = smul.addr %s368, 32
        %s370 = scalar_lea.vmem [#allocation7], %s369
        // Predicated region
        $region53: #{tpu_custom_call.1} parent=43 // pred_check
          %p371 = pneg %p134
        $region54: #{tpu_custom_call.1} parent=43 // pred_check_branch
          %373 = sbr.rel (%p371) target = $region56
        $region55: #{tpu_custom_call.1} parent=43 // pred_region
          %374 = dma.done %s367, 512
        $region56: #{tpu_custom_call.1} parent=43 // pred_fallthru
          _
        // Predicated region
        $region57: #{tpu_custom_call.1} parent=43 // pred_check
          %p375 = pneg %p155
        $region58: #{tpu_custom_call.1} parent=43 // pred_check_branch
          %377 = sbr.rel (%p375) target = $region60
        $region59: #{tpu_custom_call.1} parent=43 // pred_region
          %378 = dma.done [#allocation9], 27648
        $region60: #{tpu_custom_call.1} parent=43 // pred_fallthru
          _
        %s379 = sand.u32 %s49, 1
        %s380 = scalar_lea.sflag [#allocation3], %s379
        %s381 = sand.u32 %s49, 1
        %s382 = smul.addr %s381, 128
        %s383 = scalar_lea.vmem [#allocation2], %s382
        %p384 = pneg %p62
        %p385 = pneg %p59
        %s386 = sand.u32 %s27, 1
        %s387 = scalar_lea.sflag [#allocation6], %s386
        %s388 = sand.u32 %s85, 1
        %s389 = smul.addr %s388, 32
        %s390 = scalar_lea.vmem [#allocation5], %s389
        %p391 = pneg %p98
        %p392 = pneg %p95
        %s393 = sand.u32 %s27, 1
        %s394 = scalar_lea.sflag [#allocation6], %s393
        %s395 = sand.u32 %s121, 1
        %s396 = smul.addr %s395, 32
        %s397 = scalar_lea.vmem [#allocation7], %s396
        %p398 = pneg %p134
        %p399 = pneg %p131
        %p400 = pneg %p155
        %p401 = pneg %p152
        %p402 = pneg %p176
        %p403 = pneg %p173
        %p404 = pneg %p197
        %p405 = pneg %p194
        %p406 = pneg %p225
        %p407 = pneg %p222
        %s408 = sand.u32 %s212, 1
        %s409 = scalar_lea.sflag [#allocation4], %s408
        %s410 = sand.u32 %s212, 1
        %s411 = smul.addr %s410, 128
        %s412 = scalar_lea.vmem [#allocation10], %s411
        %s413 = smul.u32 4, %s32
        %s414 = smul.u32 %s32, 4
        %s415 = ssub.s32 %s414, 1
        %p416 = scmp.gt.s32.totalorder %s415, 0
        %s417 = scalar_select %p416, %s415, 0
        %s418 = smul.u32 %s32, 4
        %s419 = sadd.s32 %s418, 4
        %p420 = scmp.lt.s32.totalorder %s419, 7
        %s421 = scalar_select %p420, %s419, 7
        %s422 = smul.u32 4, %s32
        %p424 = scmp.gt.s32.totalorder %s32, 0
        %s425 = scalar_select %p424, 1, 0
        %s426 = scvt.s32.f32 %s425
        %s427 = sadd.s32 %s32, 1
        %p428 = scmp.lt.s32.totalorder %s427, 2
        %s429 = scalar_select %p428, 1, 0
        %s430 = scvt.s32.f32 %s429
        %v431 = vld [vmem:[%s361] sm:$0xf]
        %v432 = vld [vmem:[%s361 + $0x4] sm:$0xf]
        %v433 = vld [vmem:[%s361 + $0x8] sm:$0xf]
        %v434 = vld [vmem:[%s361 + $0xc] sm:$0xf]
        %v435 = vld [vmem:[%s361 + $0x10] sm:$0xf]
        %v436 = vld [vmem:[%s361 + $0x14] sm:$0xf]
        %v437 = vld [vmem:[%s361 + $0x18] sm:$0xf]
        %v438 = vld [vmem:[%s361 + $0x1c] sm:$0xf]
        %v439 = vunpack.c.l.bf16 %v431
        %v440 = vunpack.c.l.bf16 %v432
        %v441 = vunpack.c.l.bf16 %v433
        %v442 = vunpack.c.l.bf16 %v434
        %v443 = vunpack.c.l.bf16 %v435
        %v444 = vunpack.c.l.bf16 %v436
        %v445 = vunpack.c.l.bf16 %v437
        %v446 = vunpack.c.l.bf16 %v438
        %v447 = vstv %s426
        %v448 = vmul.f32 %v439, %v447
        %v449 = vmul.f32 %v440, %v447
        %v450 = vmul.f32 %v441, %v447
        %v451 = vmul.f32 %v442, %v447
        %v452 = vmul.f32 %v443, %v447
        %v453 = vmul.f32 %v444, %v447
        %v454 = vmul.f32 %v445, %v447
        %v455 = vmul.f32 %v446, %v447
        %v456 = vld [vmem:[%s370] sm:$0xf]
        %v457 = vld [vmem:[%s370 + $0x4] sm:$0xf]
        %v458 = vld [vmem:[%s370 + $0x8] sm:$0xf]
        %v459 = vld [vmem:[%s370 + $0xc] sm:$0xf]
        %v460 = vld [vmem:[%s370 + $0x10] sm:$0xf]
        %v461 = vld [vmem:[%s370 + $0x14] sm:$0xf]
        %v462 = vld [vmem:[%s370 + $0x18] sm:$0xf]
        %v463 = vld [vmem:[%s370 + $0x1c] sm:$0xf]
        %v464 = vunpack.c.l.bf16 %v456
        %v465 = vunpack.c.l.bf16 %v457
        %v466 = vunpack.c.l.bf16 %v458
        %v467 = vunpack.c.l.bf16 %v459
        %v468 = vunpack.c.l.bf16 %v460
        %v469 = vunpack.c.l.bf16 %v461
        %v470 = vunpack.c.l.bf16 %v462
        %v471 = vunpack.c.l.bf16 %v463
        %v472 = vstv %s430
        %v473 = vmul.f32 %v464, %v472
        %v474 = vmul.f32 %v465, %v472
        %v475 = vmul.f32 %v466, %v472
        %v476 = vmul.f32 %v467, %v472
        %v477 = vmul.f32 %v468, %v472
        %v478 = vmul.f32 %v469, %v472
        %v479 = vmul.f32 %v470, %v472
        %v480 = vmul.f32 %v471, %v472
        %v481 = vld [vmem:[%s352] sm:$0xf]
        %v482 = vld [vmem:[%s352 + $0x4] sm:$0xf]
        %v483 = vld [vmem:[%s352 + $0x8] sm:$0xf]
        %v484 = vld [vmem:[%s352 + $0xc] sm:$0xf]
        %v485 = vld [vmem:[%s352 + $0x10] sm:$0xf]
        %v486 = vld [vmem:[%s352 + $0x14] sm:$0xf]
        %v487 = vld [vmem:[%s352 + $0x18] sm:$0xf]
        %v488 = vld [vmem:[%s352 + $0x1c] sm:$0xf]
        %v489 = vld [vmem:[%s352 + $0x20] sm:$0xf]
        %v490 = vld [vmem:[%s352 + $0x24] sm:$0xf]
        %v491 = vld [vmem:[%s352 + $0x28] sm:$0xf]
        %v492 = vld [vmem:[%s352 + $0x2c] sm:$0xf]
        %v493 = vld [vmem:[%s352 + $0x30] sm:$0xf]
        %v494 = vld [vmem:[%s352 + $0x34] sm:$0xf]
        %v495 = vld [vmem:[%s352 + $0x38] sm:$0xf]
        %v496 = vld [vmem:[%s352 + $0x3c] sm:$0xf]
        %v497 = vld [vmem:[%s352 + $0x40] sm:$0xf]
        %v498 = vld [vmem:[%s352 + $0x44] sm:$0xf]
        %v499 = vld [vmem:[%s352 + $0x48] sm:$0xf]
        %v500 = vld [vmem:[%s352 + $0x4c] sm:$0xf]
        %v501 = vld [vmem:[%s352 + $0x50] sm:$0xf]
        %v502 = vld [vmem:[%s352 + $0x54] sm:$0xf]
        %v503 = vld [vmem:[%s352 + $0x58] sm:$0xf]
        %v504 = vld [vmem:[%s352 + $0x5c] sm:$0xf]
        %v505 = vld [vmem:[%s352 + $0x60] sm:$0xf]
        %v506 = vld [vmem:[%s352 + $0x64] sm:$0xf]
        %v507 = vld [vmem:[%s352 + $0x68] sm:$0xf]
        %v508 = vld [vmem:[%s352 + $0x6c] sm:$0xf]
        %v509 = vld [vmem:[%s352 + $0x70] sm:$0xf]
        %v510 = vld [vmem:[%s352 + $0x74] sm:$0xf]
        %v511 = vld [vmem:[%s352 + $0x78] sm:$0xf]
        %v512 = vld [vmem:[%s352 + $0x7c] sm:$0xf]
        %v513 = vunpack.c.l.bf16 %v481
        %v514 = vunpack.c.l.bf16 %v482
        %v515 = vunpack.c.l.bf16 %v483
        %v516 = vunpack.c.l.bf16 %v484
        %v517 = vunpack.c.l.bf16 %v485
        %v518 = vunpack.c.l.bf16 %v486
        %v519 = vunpack.c.l.bf16 %v487
        %v520 = vunpack.c.l.bf16 %v488
        %v521 = vunpack.c.l.bf16 %v489
        %v522 = vunpack.c.l.bf16 %v490
        %v523 = vunpack.c.l.bf16 %v491
        %v524 = vunpack.c.l.bf16 %v492
        %v525 = vunpack.c.l.bf16 %v493
        %v526 = vunpack.c.l.bf16 %v494
        %v527 = vunpack.c.l.bf16 %v495
        %v528 = vunpack.c.l.bf16 %v496
        %v529 = vunpack.c.l.bf16 %v497
        %v530 = vunpack.c.l.bf16 %v498
        %v531 = vunpack.c.l.bf16 %v499
        %v532 = vunpack.c.l.bf16 %v500
        %v533 = vunpack.c.l.bf16 %v501
        %v534 = vunpack.c.l.bf16 %v502
        %v535 = vunpack.c.l.bf16 %v503
        %v536 = vunpack.c.l.bf16 %v504
        %v537 = vunpack.c.l.bf16 %v505
        %v538 = vunpack.c.l.bf16 %v506
        %v539 = vunpack.c.l.bf16 %v507
        %v540 = vunpack.c.l.bf16 %v508
        %v541 = vunpack.c.l.bf16 %v509
        %v542 = vunpack.c.l.bf16 %v510
        %v543 = vunpack.c.l.bf16 %v511
        %v544 = vunpack.c.l.bf16 %v512
        %v545 = vlaneseq
        %v546 = vshrl.u32 %v545, 7
        %vm547 = vcmp.ge.s32.totalorder %v546, 1
        %v548 = vrot.slane %v448, 7
        %v549 = vrot.slane %v449, 7
        %v550 = vrot.slane %v450, 7
        %v551 = vrot.slane %v451, 7
        %v552 = vrot.slane %v452, 7
        %v553 = vrot.slane %v453, 7
        %v554 = vrot.slane %v454, 7
        %v555 = vrot.slane %v455, 7
        %v556 = vrot.slane %v513, 7
        %v557 = vrot.slane %v514, 7
        %v558 = vrot.slane %v515, 7
        %v559 = vrot.slane %v516, 7
        %v560 = vrot.slane %v517, 7
        %v561 = vrot.slane %v518, 7
        %v562 = vrot.slane %v519, 7
        %v563 = vrot.slane %v520, 7
        %v564 = vrot.slane %v521, 7
        %v565 = vrot.slane %v522, 7
        %v566 = vrot.slane %v523, 7
        %v567 = vrot.slane %v524, 7
        %v568 = vrot.slane %v525, 7
        %v569 = vrot.slane %v526, 7
        %v570 = vrot.slane %v527, 7
        %v571 = vrot.slane %v528, 7
        %v572 = vrot.slane %v529, 7
        %v573 = vrot.slane %v530, 7
        %v574 = vrot.slane %v531, 7
        %v575 = vrot.slane %v532, 7
        %v576 = vrot.slane %v533, 7
        %v577 = vrot.slane %v534, 7
        %v578 = vrot.slane %v535, 7
        %v579 = vrot.slane %v536, 7
        %v580 = vrot.slane %v537, 7
        %v581 = vrot.slane %v538, 7
        %v582 = vrot.slane %v539, 7
        %v583 = vrot.slane %v540, 7
        %v584 = vrot.slane %v541, 7
        %v585 = vrot.slane %v542, 7
        %v586 = vrot.slane %v543, 7
        %v587 = vrot.slane %v544, 7
        %v588 = vrot.slane %v473, 7
        %v589 = vrot.slane %v474, 7
        %v590 = vrot.slane %v475, 7
        %v591 = vrot.slane %v476, 7
        %v592 = vrot.slane %v477, 7
        %v593 = vrot.slane %v478, 7
        %v594 = vrot.slane %v479, 7
        %v595 = vrot.slane %v480, 7
        %v596 = vsel %vm547, 0.0, 0.0
        %v597 = vsel %vm547, %v548, 0.0
        %v598 = vsel %vm547, %v549, 0.0
        %v599 = vsel %vm547, %v550, 0.0
        %v600 = vsel %vm547, %v551, 0.0
        %v601 = vsel %vm547, %v552, 0.0
        %v602 = vsel %vm547, %v553, 0.0
        %v603 = vsel %vm547, %v554, 0.0
        %v604 = vsel %vm547, %v555, 0.0
        %v605 = vsel %vm547, %v556, 0.0
        %v606 = vsel %vm547, %v557, 0.0
        %v607 = vsel %vm547, %v558, 0.0
        %v608 = vsel %vm547, %v559, 0.0
        %v609 = vsel %vm547, %v560, 0.0
        %v610 = vsel %vm547, %v561, 0.0
        %v611 = vsel %vm547, %v562, 0.0
        %v612 = vsel %vm547, %v563, 0.0
        %v613 = vsel %vm547, %v564, 0.0
        %v614 = vsel %vm547, %v565, 0.0
        %v615 = vsel %vm547, %v566, 0.0
        %v616 = vsel %vm547, %v567, 0.0
        %v617 = vsel %vm547, %v568, 0.0
        %v618 = vsel %vm547, %v569, 0.0
        %v619 = vsel %vm547, %v570, 0.0
        %v620 = vsel %vm547, %v571, 0.0
        %v621 = vsel %vm547, %v572, 0.0
        %v622 = vsel %vm547, %v573, 0.0
        %v623 = vsel %vm547, %v574, 0.0
        %v624 = vsel %vm547, %v575, 0.0
        %v625 = vsel %vm547, %v576, 0.0
        %v626 = vsel %vm547, %v577, 0.0
        %v627 = vsel %vm547, %v578, 0.0
        %v628 = vsel %vm547, %v579, 0.0
        %v629 = vsel %vm547, %v580, 0.0
        %v630 = vsel %vm547, %v581, 0.0
        %v631 = vsel %vm547, %v582, 0.0
        %v632 = vsel %vm547, %v583, 0.0
        %v633 = vsel %vm547, %v584, 0.0
        %v634 = vsel %vm547, %v585, 0.0
        %v635 = vsel %vm547, %v586, 0.0
        %v636 = vsel %vm547, %v587, 0.0
        %v637 = vsel %vm547, %v588, 0.0
        %v638 = vsel %vm547, %v589, 0.0
        %v639 = vsel %vm547, %v590, 0.0
        %v640 = vsel %vm547, %v591, 0.0
        %v641 = vsel %vm547, %v592, 0.0
        %v642 = vsel %vm547, %v593, 0.0
        %v643 = vsel %vm547, %v594, 0.0
        %v644 = vsel %vm547, %v595, 0.0
        %vm645 = vcmp.le.s32.totalorder %v546, 6
        %v646 = vrot.slane %v448, 1
        %v647 = vrot.slane %v449, 1
        %v648 = vrot.slane %v450, 1
        %v649 = vrot.slane %v451, 1
        %v650 = vrot.slane %v452, 1
        %v651 = vrot.slane %v453, 1
        %v652 = vrot.slane %v454, 1
        %v653 = vrot.slane %v455, 1
        %v654 = vrot.slane %v513, 1
        %v655 = vrot.slane %v514, 1
        %v656 = vrot.slane %v515, 1
        %v657 = vrot.slane %v516, 1
        %v658 = vrot.slane %v517, 1
        %v659 = vrot.slane %v518, 1
        %v660 = vrot.slane %v519, 1
        %v661 = vrot.slane %v520, 1
        %v662 = vrot.slane %v521, 1
        %v663 = vrot.slane %v522, 1
        %v664 = vrot.slane %v523, 1
        %v665 = vrot.slane %v524, 1
        %v666 = vrot.slane %v525, 1
        %v667 = vrot.slane %v526, 1
        %v668 = vrot.slane %v527, 1
        %v669 = vrot.slane %v528, 1
        %v670 = vrot.slane %v529, 1
        %v671 = vrot.slane %v530, 1
        %v672 = vrot.slane %v531, 1
        %v673 = vrot.slane %v532, 1
        %v674 = vrot.slane %v533, 1
        %v675 = vrot.slane %v534, 1
        %v676 = vrot.slane %v535, 1
        %v677 = vrot.slane %v536, 1
        %v678 = vrot.slane %v537, 1
        %v679 = vrot.slane %v538, 1
        %v680 = vrot.slane %v539, 1
        %v681 = vrot.slane %v540, 1
        %v682 = vrot.slane %v541, 1
        %v683 = vrot.slane %v542, 1
        %v684 = vrot.slane %v543, 1
        %v685 = vrot.slane %v544, 1
        %v686 = vrot.slane %v473, 1
        %v687 = vrot.slane %v474, 1
        %v688 = vrot.slane %v475, 1
        %v689 = vrot.slane %v476, 1
        %v690 = vrot.slane %v477, 1
        %v691 = vrot.slane %v478, 1
        %v692 = vrot.slane %v479, 1
        %v693 = vrot.slane %v480, 1
        %v694 = vsel %vm645, 0.0, 0.0
        %v695 = vsel %vm645, %v646, 0.0
        %v696 = vsel %vm645, %v647, 0.0
        %v697 = vsel %vm645, %v648, 0.0
        %v698 = vsel %vm645, %v649, 0.0
        %v699 = vsel %vm645, %v650, 0.0
        %v700 = vsel %vm645, %v651, 0.0
        %v701 = vsel %vm645, %v652, 0.0
        %v702 = vsel %vm645, %v653, 0.0
        %v703 = vsel %vm645, %v654, 0.0
        %v704 = vsel %vm645, %v655, 0.0
        %v705 = vsel %vm645, %v656, 0.0
        %v706 = vsel %vm645, %v657, 0.0
        %v707 = vsel %vm645, %v658, 0.0
        %v708 = vsel %vm645, %v659, 0.0
        %v709 = vsel %vm645, %v660, 0.0
        %v710 = vsel %vm645, %v661, 0.0
        %v711 = vsel %vm645, %v662, 0.0
        %v712 = vsel %vm645, %v663, 0.0
        %v713 = vsel %vm645, %v664, 0.0
        %v714 = vsel %vm645, %v665, 0.0
        %v715 = vsel %vm645, %v666, 0.0
        %v716 = vsel %vm645, %v667, 0.0
        %v717 = vsel %vm645, %v668, 0.0
        %v718 = vsel %vm645, %v669, 0.0
        %v719 = vsel %vm645, %v670, 0.0
        %v720 = vsel %vm645, %v671, 0.0
        %v721 = vsel %vm645, %v672, 0.0
        %v722 = vsel %vm645, %v673, 0.0
        %v723 = vsel %vm645, %v674, 0.0
        %v724 = vsel %vm645, %v675, 0.0
        %v725 = vsel %vm645, %v676, 0.0
        %v726 = vsel %vm645, %v677, 0.0
        %v727 = vsel %vm645, %v678, 0.0
        %v728 = vsel %vm645, %v679, 0.0
        %v729 = vsel %vm645, %v680, 0.0
        %v730 = vsel %vm645, %v681, 0.0
        %v731 = vsel %vm645, %v682, 0.0
        %v732 = vsel %vm645, %v683, 0.0
        %v733 = vsel %vm645, %v684, 0.0
        %v734 = vsel %vm645, %v685, 0.0
        %v735 = vsel %vm645, %v686, 0.0
        %v736 = vsel %vm645, %v687, 0.0
        %v737 = vsel %vm645, %v688, 0.0
        %v738 = vsel %vm645, %v689, 0.0
        %v739 = vsel %vm645, %v690, 0.0
        %v740 = vsel %vm645, %v691, 0.0
        %v741 = vsel %vm645, %v692, 0.0
        %v742 = vsel %vm645, %v693, 0.0
        %v743 = vpack.c.bf16 %v597, %v596
        %v744 = vpack.c.bf16 %v448, 0.0
        %v745 = vpack.c.bf16 %v695, %v694
        %v746 = vpack.c.bf16 %v599, %v598
        %v747 = vpack.c.bf16 %v450, %v449
        %v748 = vpack.c.bf16 %v697, %v696
        %v749 = vpack.c.bf16 %v601, %v600
        %v750 = vpack.c.bf16 %v452, %v451
        %v751 = vpack.c.bf16 %v699, %v698
        %v752 = vpack.c.bf16 %v603, %v602
        %v753 = vpack.c.bf16 %v454, %v453
        %v754 = vpack.c.bf16 %v701, %v700
        %v755 = vpack.c.bf16 %v605, %v596
        %v756 = vpack.c.bf16 %v513, 0.0
        %v757 = vpack.c.bf16 %v703, %v694
        %v758 = vpack.c.bf16 %v607, %v606
        %v759 = vpack.c.bf16 %v515, %v514
        %v760 = vpack.c.bf16 %v705, %v704
        %v761 = vpack.c.bf16 %v609, %v608
        %v762 = vpack.c.bf16 %v517, %v516
        %v763 = vpack.c.bf16 %v707, %v706
        %v764 = vpack.c.bf16 %v611, %v610
        %v765 = vpack.c.bf16 %v519, %v518
        %v766 = vpack.c.bf16 %v709, %v708
        %v767 = vpack.c.bf16 %v613, %v596
        %v768 = vpack.c.bf16 %v521, 0.0
        %v769 = vpack.c.bf16 %v711, %v694
        %v770 = vpack.c.bf16 %v615, %v614
        %v771 = vpack.c.bf16 %v523, %v522
        %v772 = vpack.c.bf16 %v713, %v712
        %v773 = vpack.c.bf16 %v617, %v616
        %v774 = vpack.c.bf16 %v525, %v524
        %v775 = vpack.c.bf16 %v715, %v714
        %v776 = vpack.c.bf16 %v619, %v618
        %v777 = vpack.c.bf16 %v527, %v526
        %v778 = vpack.c.bf16 %v717, %v716
        %v779 = vpack.c.bf16 %v621, %v596
        %v780 = vpack.c.bf16 %v529, 0.0
        %v781 = vpack.c.bf16 %v719, %v694
        %v782 = vpack.c.bf16 %v623, %v622
        %v783 = vpack.c.bf16 %v531, %v530
        %v784 = vpack.c.bf16 %v721, %v720
        %v785 = vpack.c.bf16 %v625, %v624
        %v786 = vpack.c.bf16 %v533, %v532
        %v787 = vpack.c.bf16 %v723, %v722
        %v788 = vpack.c.bf16 %v627, %v626
        %v789 = vpack.c.bf16 %v535, %v534
        %v790 = vpack.c.bf16 %v725, %v724
        %v791 = vld [vmem:[#allocation8] sm:$0xf]
        %v792 = vld [vmem:[#allocation8 + $0x4] sm:$0xf]
        %v793 = vld [vmem:[#allocation8 + $0x8] sm:$0xf]
        %v794 = vld [vmem:[#allocation8 + $0xc] sm:$0xf]
        %v795 = vld [vmem:[#allocation8 + $0x10] sm:$0xf]
        %v796 = vld [vmem:[#allocation8 + $0x14] sm:$0xf]
        %v797 = vld [vmem:[#allocation8 + $0x18] sm:$0xf]
        %v798 = vld [vmem:[#allocation8 + $0x1c] sm:$0xf]
        %v799 = vld [vmem:[#allocation8 + $0x20] sm:$0xf]
        %v800 = vld [vmem:[#allocation8 + $0x24] sm:$0xf]
        %v801 = vld [vmem:[#allocation8 + $0x28] sm:$0xf]
        %v802 = vld [vmem:[#allocation8 + $0x2c] sm:$0xf]
        %v803 = vld [vmem:[#allocation8 + $0x30] sm:$0xf]
        %v804 = vld [vmem:[#allocation8 + $0x34] sm:$0xf]
        %v805 = vld [vmem:[#allocation8 + $0x38] sm:$0xf]
        %v806 = vld [vmem:[#allocation8 + $0x3c] sm:$0xf]
        %v807 = vld [vmem:[#allocation8 + $0x40] sm:$0xf]
        %v808 = vld [vmem:[#allocation8 + $0x44] sm:$0xf]
        %v809 = vld [vmem:[#allocation8 + $0x48] sm:$0xf]
        %v810 = vld [vmem:[#allocation8 + $0x4c] sm:$0xf]
        %v811 = vld [vmem:[#allocation8 + $0x50] sm:$0xf]
        %v812 = vld [vmem:[#allocation8 + $0x54] sm:$0xf]
        %v813 = vld [vmem:[#allocation8 + $0x58] sm:$0xf]
        %v814 = vld [vmem:[#allocation8 + $0x5c] sm:$0xf]
        %v815 = vld [vmem:[#allocation8 + $0x60] sm:$0xf]
        %v816 = vld [vmem:[#allocation8 + $0x64] sm:$0xf]
        %v817 = vld [vmem:[#allocation8 + $0x68] sm:$0xf]
        %v818 = vld [vmem:[#allocation8 + $0x6c] sm:$0xf]
        %v819 = vld [vmem:[#allocation8 + $0x70] sm:$0xf]
        %v820 = vld [vmem:[#allocation8 + $0x74] sm:$0xf]
        %v821 = vld [vmem:[#allocation8 + $0x78] sm:$0xf]
        %v822 = vld [vmem:[#allocation8 + $0x7c] sm:$0xf]
        %v823 = vld [vmem:[#allocation8 + $0x80] sm:$0xf]
        %v824 = vld [vmem:[#allocation8 + $0x84] sm:$0xf]
        %v825 = vld [vmem:[#allocation8 + $0x88] sm:$0xf]
        %v826 = vld [vmem:[#allocation8 + $0x8c] sm:$0xf]
        %v827 = vld [vmem:[#allocation8 + $0x90] sm:$0xf]
        %v828 = vld [vmem:[#allocation8 + $0x94] sm:$0xf]
        %v829 = vld [vmem:[#allocation8 + $0x98] sm:$0xf]
        %v830 = vld [vmem:[#allocation8 + $0x9c] sm:$0xf]
        %v831 = vld [vmem:[#allocation8 + $0xa0] sm:$0xf]
        %v832 = vld [vmem:[#allocation8 + $0xa4] sm:$0xf]
        %v833 = vld [vmem:[#allocation8 + $0xa8] sm:$0xf]
        %v834 = vld [vmem:[#allocation8 + $0xac] sm:$0xf]
        %v835 = vld [vmem:[#allocation8 + $0xb0] sm:$0xf]
        %v836 = vld [vmem:[#allocation8 + $0xb4] sm:$0xf]
        %v837 = vld [vmem:[#allocation8 + $0xb8] sm:$0xf]
        %v838 = vld [vmem:[#allocation8 + $0xbc] sm:$0xf]
        %v839 = vpack.c.bf16 %v598, %v597
        %v840 = vpack.c.bf16 %v449, %v448
        %v841 = vpack.c.bf16 %v696, %v695
        %v842 = vpack.c.bf16 %v600, %v599
        %v843 = vpack.c.bf16 %v451, %v450
        %v844 = vpack.c.bf16 %v698, %v697
        %v845 = vpack.c.bf16 %v602, %v601
        %v846 = vpack.c.bf16 %v453, %v452
        %v847 = vpack.c.bf16 %v700, %v699
        %v848 = vpack.c.bf16 %v604, %v603
        %v849 = vpack.c.bf16 %v455, %v454
        %v850 = vpack.c.bf16 %v702, %v701
        %v851 = vpack.c.bf16 %v606, %v605
        %v852 = vpack.c.bf16 %v514, %v513
        %v853 = vpack.c.bf16 %v704, %v703
        %v854 = vpack.c.bf16 %v608, %v607
        %v855 = vpack.c.bf16 %v516, %v515
        %v856 = vpack.c.bf16 %v706, %v705
        %v857 = vpack.c.bf16 %v610, %v609
        %v858 = vpack.c.bf16 %v518, %v517
        %v859 = vpack.c.bf16 %v708, %v707
        %v860 = vpack.c.bf16 %v612, %v611
        %v861 = vpack.c.bf16 %v520, %v519
        %v862 = vpack.c.bf16 %v710, %v709
        %v863 = vpack.c.bf16 %v614, %v613
        %v864 = vpack.c.bf16 %v522, %v521
        %v865 = vpack.c.bf16 %v712, %v711
        %v866 = vpack.c.bf16 %v616, %v615
        %v867 = vpack.c.bf16 %v524, %v523
        %v868 = vpack.c.bf16 %v714, %v713
        %v869 = vpack.c.bf16 %v618, %v617
        %v870 = vpack.c.bf16 %v526, %v525
        %v871 = vpack.c.bf16 %v716, %v715
        %v872 = vpack.c.bf16 %v620, %v619
        %v873 = vpack.c.bf16 %v528, %v527
        %v874 = vpack.c.bf16 %v718, %v717
        %v875 = vpack.c.bf16 %v622, %v621
        %v876 = vpack.c.bf16 %v530, %v529
        %v877 = vpack.c.bf16 %v720, %v719
        %v878 = vpack.c.bf16 %v624, %v623
        %v879 = vpack.c.bf16 %v532, %v531
        %v880 = vpack.c.bf16 %v722, %v721
        %v881 = vpack.c.bf16 %v626, %v625
        %v882 = vpack.c.bf16 %v534, %v533
        %v883 = vpack.c.bf16 %v724, %v723
        %v884 = vpack.c.bf16 %v628, %v627
        %v885 = vpack.c.bf16 %v536, %v535
        %v886 = vpack.c.bf16 %v726, %v725
        %s887 = scalar_lea.vmem [#allocation8], 192
        %v888 = vld [vmem:[%s887] sm:$0xf]
        %v889 = vld [vmem:[%s887 + $0x4] sm:$0xf]
        %v890 = vld [vmem:[%s887 + $0x8] sm:$0xf]
        %v891 = vld [vmem:[%s887 + $0xc] sm:$0xf]
        %v892 = vld [vmem:[%s887 + $0x10] sm:$0xf]
        %v893 = vld [vmem:[%s887 + $0x14] sm:$0xf]
        %v894 = vld [vmem:[%s887 + $0x18] sm:$0xf]
        %v895 = vld [vmem:[%s887 + $0x1c] sm:$0xf]
        %v896 = vld [vmem:[%s887 + $0x20] sm:$0xf]
        %v897 = vld [vmem:[%s887 + $0x24] sm:$0xf]
        %v898 = vld [vmem:[%s887 + $0x28] sm:$0xf]
        %v899 = vld [vmem:[%s887 + $0x2c] sm:$0xf]
        %v900 = vld [vmem:[%s887 + $0x30] sm:$0xf]
        %v901 = vld [vmem:[%s887 + $0x34] sm:$0xf]
        %v902 = vld [vmem:[%s887 + $0x38] sm:$0xf]
        %v903 = vld [vmem:[%s887 + $0x3c] sm:$0xf]
        %v904 = vld [vmem:[%s887 + $0x40] sm:$0xf]
        %v905 = vld [vmem:[%s887 + $0x44] sm:$0xf]
        %v906 = vld [vmem:[%s887 + $0x48] sm:$0xf]
        %v907 = vld [vmem:[%s887 + $0x4c] sm:$0xf]
        %v908 = vld [vmem:[%s887 + $0x50] sm:$0xf]
        %v909 = vld [vmem:[%s887 + $0x54] sm:$0xf]
        %v910 = vld [vmem:[%s887 + $0x58] sm:$0xf]
        %v911 = vld [vmem:[%s887 + $0x5c] sm:$0xf]
        %v912 = vld [vmem:[%s887 + $0x60] sm:$0xf]
        %v913 = vld [vmem:[%s887 + $0x64] sm:$0xf]
        %v914 = vld [vmem:[%s887 + $0x68] sm:$0xf]
        %v915 = vld [vmem:[%s887 + $0x6c] sm:$0xf]
        %v916 = vld [vmem:[%s887 + $0x70] sm:$0xf]
        %v917 = vld [vmem:[%s887 + $0x74] sm:$0xf]
        %v918 = vld [vmem:[%s887 + $0x78] sm:$0xf]
        %v919 = vld [vmem:[%s887 + $0x7c] sm:$0xf]
        %v920 = vld [vmem:[%s887 + $0x80] sm:$0xf]
        %v921 = vld [vmem:[%s887 + $0x84] sm:$0xf]
        %v922 = vld [vmem:[%s887 + $0x88] sm:$0xf]
        %v923 = vld [vmem:[%s887 + $0x8c] sm:$0xf]
        %v924 = vld [vmem:[%s887 + $0x90] sm:$0xf]
        %v925 = vld [vmem:[%s887 + $0x94] sm:$0xf]
        %v926 = vld [vmem:[%s887 + $0x98] sm:$0xf]
        %v927 = vld [vmem:[%s887 + $0x9c] sm:$0xf]
        %v928 = vld [vmem:[%s887 + $0xa0] sm:$0xf]
        %v929 = vld [vmem:[%s887 + $0xa4] sm:$0xf]
        %v930 = vld [vmem:[%s887 + $0xa8] sm:$0xf]
        %v931 = vld [vmem:[%s887 + $0xac] sm:$0xf]
        %v932 = vld [vmem:[%s887 + $0xb0] sm:$0xf]
        %v933 = vld [vmem:[%s887 + $0xb4] sm:$0xf]
        %v934 = vld [vmem:[%s887 + $0xb8] sm:$0xf]
        %v935 = vld [vmem:[%s887 + $0xbc] sm:$0xf]
        %v984 = vunpack.c.l.b16 %v888
        %v985 = vunpack.c.l.b16 %v889
        %v986 = vunpack.c.l.b16 %v890
        %v987 = vunpack.c.l.b16 %v891
        %v988 = vunpack.c.l.b16 %v892
        %v989 = vunpack.c.l.b16 %v893
        %v990 = vunpack.c.l.b16 %v894
        %v991 = vunpack.c.l.b16 %v895
        %v992 = vunpack.c.l.b16 %v896
        %v993 = vunpack.c.l.b16 %v897
        %v994 = vunpack.c.l.b16 %v898
        %v995 = vunpack.c.l.b16 %v899
        %v996 = vunpack.c.l.b16 %v900
        %v997 = vunpack.c.l.b16 %v901
        %v998 = vunpack.c.l.b16 %v902
        %v999 = vunpack.c.l.b16 %v903
        %v1000 = vunpack.c.l.b16 %v904
        %v1001 = vunpack.c.l.b16 %v905
        %v1002 = vunpack.c.l.b16 %v906
        %v1003 = vunpack.c.l.b16 %v907
        %v1004 = vunpack.c.l.b16 %v908
        %v1005 = vunpack.c.l.b16 %v909
        %v1006 = vunpack.c.l.b16 %v910
        %v1007 = vunpack.c.l.b16 %v911
        %v1008 = vunpack.c.l.b16 %v912
        %v1009 = vunpack.c.l.b16 %v913
        %v1010 = vunpack.c.l.b16 %v914
        %v1011 = vunpack.c.l.b16 %v915
        %v1012 = vunpack.c.l.b16 %v916
        %v1013 = vunpack.c.l.b16 %v917
        %v1014 = vunpack.c.l.b16 %v918
        %v1015 = vunpack.c.l.b16 %v919
        %v1016 = vunpack.c.l.b16 %v920
        %v1017 = vunpack.c.l.b16 %v921
        %v1018 = vunpack.c.l.b16 %v922
        %v1019 = vunpack.c.l.b16 %v923
        %v1020 = vunpack.c.l.b16 %v924
        %v1021 = vunpack.c.l.b16 %v925
        %v1022 = vunpack.c.l.b16 %v926
        %v1023 = vunpack.c.l.b16 %v927
        %v1024 = vunpack.c.l.b16 %v928
        %v1025 = vunpack.c.l.b16 %v929
        %v1026 = vunpack.c.l.b16 %v930
        %v1027 = vunpack.c.l.b16 %v931
        %v1028 = vunpack.c.l.b16 %v932
        %v1029 = vunpack.c.l.b16 %v933
        %v1030 = vunpack.c.l.b16 %v934
        %v1031 = vunpack.c.l.b16 %v935
        %v1032 = vpack.c.b16 %v985, %v984
        %v1033 = vpack.c.b16 %v987, %v986
        %v1034 = vpack.c.b16 %v989, %v988
        %v1035 = vpack.c.b16 %v991, %v990
        %v1036 = vpack.c.b16 %v993, %v992
        %v1037 = vpack.c.b16 %v995, %v994
        %v1038 = vpack.c.b16 %v997, %v996
        %v1039 = vpack.c.b16 %v999, %v998
        %v1040 = vpack.c.b16 %v1001, %v1000
        %v1041 = vpack.c.b16 %v1003, %v1002
        %v1042 = vpack.c.b16 %v1005, %v1004
        %v1043 = vpack.c.b16 %v1007, %v1006
        %v1044 = vpack.c.b16 %v1009, %v1008
        %v1045 = vpack.c.b16 %v1011, %v1010
        %v1046 = vpack.c.b16 %v1013, %v1012
        %v1047 = vpack.c.b16 %v1015, %v1014
        %v1048 = vpack.c.b16 %v1017, %v1016
        %v1049 = vpack.c.b16 %v1019, %v1018
        %v1050 = vpack.c.b16 %v1021, %v1020
        %v1051 = vpack.c.b16 %v1023, %v1022
        %v1052 = vpack.c.b16 %v1025, %v1024
        %v1053 = vpack.c.b16 %v1027, %v1026
        %v1054 = vpack.c.b16 %v1029, %v1028
        %v1055 = vpack.c.b16 %v1031, %v1030
        %1080 = vmatprep.subr.bf16.mxu0 0
        %1081 = vmatpush1.bf16.msra.mxu0 %v1032
        %1082 = vmatprep.subr.bf16.mxu0 0
        %1083 = vmatpush1.bf16.msra.mxu0 %v1033
        %1084 = vmatprep.subr.bf16.mxu0 0
        %1085 = vmatpush1.bf16.msra.mxu0 %v1034
        %1086 = vmatprep.subr.bf16.mxu0 0
        %1087 = vmatpush1.bf16.msra.mxu0 %v1035
        %1088 = vmatprep.subr.bf16.mxu0 0
        %1089 = vmatpush1.bf16.msra.mxu0 %v1036
        %1090 = vmatprep.subr.bf16.mxu0 0
        %1091 = vmatpush1.bf16.msra.mxu0 %v1037
        %1092 = vmatprep.subr.bf16.mxu0 0
        %1093 = vmatpush1.bf16.msra.mxu0 %v1038
        %1094 = vmatprep.subr.bf16.mxu0 0
        %1095 = vmatpush1.bf16.msra.mxu0 %v1039
        %1096 = vmatprep.subr.bf16.mxu0 0
        %1097 = vmatpush1.bf16.msra.mxu0 %v1040
        %1098 = vmatprep.subr.bf16.mxu0 0
        %1099 = vmatpush1.bf16.msra.mxu0 %v1041
        %1100 = vmatprep.subr.bf16.mxu0 0
        %1101 = vmatpush1.bf16.msra.mxu0 %v1042
        %1102 = vmatprep.subr.bf16.mxu0 0
        %1103 = vmatpush1.bf16.msra.mxu0 %v1043
        %1104 = vmatprep.subr.bf16.mxu0 0
        %1105 = vmatpush1.bf16.msra.mxu0 %v1044
        %1106 = vmatprep.subr.bf16.mxu0 0
        %1107 = vmatpush1.bf16.msra.mxu0 %v1045
        %1108 = vmatprep.subr.bf16.mxu0 0
        %1109 = vmatpush1.bf16.msra.mxu0 %v1046
        %1110 = vmatprep.subr.bf16.mxu0 0
        %1111 = vmatpush1.bf16.msra.mxu0 %v1047
        %1112 = vmatprep.mubr.bf16.mxu0 %v840
        %1113 = vmatmul.mubr.bf16.gmra.mrb[0].mxu0 %v839
        %v1114 = vpop.f32.mrb[0].mxu0
        %v1115 = vadd.f32 0.0, %v1114
        %v1116 = vpop.f32.mrb[0].mxu0
        %v1117 = vpop.f32.mrb[0].mxu0
        %v1118 = vadd.f32 0.0, %v1117
        %v1119 = vpop.f32.mrb[0].mxu0
        %1120 = vmatprep.mubr.bf16.mxu0 %v843
        %1121 = vmatmul.mubr.bf16.gmra.mrb[0].mxu0 %v842
        %v1122 = vpop.f32.mrb[0].mxu0
        %v1123 = vadd.f32 0.0, %v1122
        %v1124 = vpop.f32.mrb[0].mxu0
        %v1125 = vpop.f32.mrb[0].mxu0
        %v1126 = vadd.f32 0.0, %v1125
        %v1127 = vpop.f32.mrb[0].mxu0
        %1128 = vmatprep.mubr.bf16.mxu0 %v846
        %1129 = vmatmul.mubr.bf16.gmra.mrb[0].mxu0 %v845
        %v1130 = vpop.f32.mrb[0].mxu0
        %v1131 = vadd.f32 0.0, %v1130
        %v1132 = vpop.f32.mrb[0].mxu0
        %v1133 = vpop.f32.mrb[0].mxu0
        %v1134 = vadd.f32 0.0, %v1133
        %v1135 = vpop.f32.mrb[0].mxu0
        %1136 = vmatprep.mubr.bf16.mxu0 %v849
        %1137 = vmatmul.mubr.bf16.gmra.mrb[0].mxu0 %v848
        %v1138 = vpop.f32.mrb[0].mxu0
        %v1139 = vadd.f32 0.0, %v1138
        %v1140 = vpop.f32.mrb[0].mxu0
        %v1141 = vpop.f32.mrb[0].mxu0
        %v1142 = vadd.f32 0.0, %v1141
        %v1143 = vpop.f32.mrb[0].mxu0
        %1144 = vmatprep.mubr.bf16.mxu0 %v852
        %1145 = vmatmul.mubr.bf16.gmra.mrb[0].mxu0 %v851
        %v1146 = vpop.f32.mrb[0].mxu0
        %v1147 = vadd.f32 0.0, %v1146
        %v1148 = vpop.f32.mrb[0].mxu0
        %v1149 = vpop.f32.mrb[0].mxu0
        %v1150 = vadd.f32 0.0, %v1149
        %v1151 = vpop.f32.mrb[0].mxu0
        %1152 = vmatprep.mubr.bf16.mxu0 %v855
        %1153 = vmatmul.mubr.bf16.gmra.mrb[0].mxu0 %v854
        %v1154 = vpop.f32.mrb[0].mxu0
        %v1155 = vadd.f32 0.0, %v1154
        %v1156 = vpop.f32.mrb[0].mxu0
        %v1157 = vpop.f32.mrb[0].mxu0
        %v1158 = vadd.f32 0.0, %v1157
        %v1159 = vpop.f32.mrb[0].mxu0
        %1160 = vmatprep.mubr.bf16.mxu0 %v858
        %1161 = vmatmul.mubr.bf16.gmra.mrb[0].mxu0 %v857
        %v1162 = vpop.f32.mrb[0].mxu0
        %v1163 = vadd.f32 0.0, %v1162
        %v1164 = vpop.f32.mrb[0].mxu0
        %v1165 = vpop.f32.mrb[0].mxu0
        %v1166 = vadd.f32 0.0, %v1165
        %v1167 = vpop.f32.mrb[0].mxu0
        %1168 = vmatprep.mubr.bf16.mxu0 %v861
        %1169 = vmatmul.mubr.bf16.gmra.mrb[0].mxu0 %v860
        %v1170 = vpop.f32.mrb[0].mxu0
        %v1171 = vadd.f32 0.0, %v1170
        %v1172 = vpop.f32.mrb[0].mxu0
        %v1173 = vpop.f32.mrb[0].mxu0
        %v1174 = vadd.f32 0.0, %v1173
        %v1175 = vpop.f32.mrb[0].mxu0
        %1176 = vmatprep.mubr.bf16.mxu0 %v864
        %1177 = vmatmul.mubr.bf16.gmra.mrb[0].mxu0 %v863
        %v1178 = vpop.f32.mrb[0].mxu0
        %v1179 = vadd.f32 0.0, %v1178
        %v1180 = vpop.f32.mrb[0].mxu0
        %v1181 = vpop.f32.mrb[0].mxu0
        %v1182 = vadd.f32 0.0, %v1181
        %v1183 = vpop.f32.mrb[0].mxu0
        %1184 = vmatprep.mubr.bf16.mxu0 %v867
        %1185 = vmatmul.mubr.bf16.gmra.mrb[0].mxu0 %v866
        %v1186 = vpop.f32.mrb[0].mxu0
        %v1187 = vadd.f32 0.0, %v1186
        %v1188 = vpop.f32.mrb[0].mxu0
        %v1189 = vpop.f32.mrb[0].mxu0
        %v1190 = vadd.f32 0.0, %v1189
        %v1191 = vpop.f32.mrb[0].mxu0
        %1192 = vmatprep.mubr.bf16.mxu0 %v870
        %1193 = vmatmul.mubr.bf16.gmra.mrb[0].mxu0 %v869
        %v1194 = vpop.f32.mrb[0].mxu0
        %v1195 = vadd.f32 0.0, %v1194
        %v1196 = vpop.f32.mrb[0].mxu0
        %v1197 = vpop.f32.mrb[0].mxu0
        %v1198 = vadd.f32 0.0, %v1197
        %v1199 = vpop.f32.mrb[0].mxu0
        %1200 = vmatprep.mubr.bf16.mxu0 %v873
        %1201 = vmatmul.mubr.bf16.gmra.mrb[0].mxu0 %v872
        %v1202 = vpop.f32.mrb[0].mxu0
        %v1203 = vadd.f32 0.0, %v1202
        %v1204 = vpop.f32.mrb[0].mxu0
        %v1205 = vpop.f32.mrb[0].mxu0
        %v1206 = vadd.f32 0.0, %v1205
        %v1207 = vpop.f32.mrb[0].mxu0
        %1208 = vmatprep.mubr.bf16.mxu0 %v876
        %1209 = vmatmul.mubr.bf16.gmra.mrb[0].mxu0 %v875
        %v1210 = vpop.f32.mrb[0].mxu0
        %v1211 = vadd.f32 0.0, %v1210
        %v1212 = vpop.f32.mrb[0].mxu0
        %v1213 = vpop.f32.mrb[0].mxu0
        %v1214 = vadd.f32 0.0, %v1213
        %v1215 = vpop.f32.mrb[0].mxu0
        %1216 = vmatprep.mubr.bf16.mxu0 %v879
        %1217 = vmatmul.mubr.bf16.gmra.mrb[0].mxu0 %v878
        %v1218 = vpop.f32.mrb[0].mxu0
        %v1219 = vadd.f32 0.0, %v1218
        %v1220 = vpop.f32.mrb[0].mxu0
        %v1221 = vpop.f32.mrb[0].mxu0
        %v1222 = vadd.f32 0.0, %v1221
        %v1223 = vpop.f32.mrb[0].mxu0
        %1224 = vmatprep.mubr.bf16.mxu0 %v882
        %1225 = vmatmul.mubr.bf16.gmra.mrb[0].mxu0 %v881
        %v1226 = vpop.f32.mrb[0].mxu0
        %v1227 = vadd.f32 0.0, %v1226
        %v1228 = vpop.f32.mrb[0].mxu0
        %v1229 = vpop.f32.mrb[0].mxu0
        %v1230 = vadd.f32 0.0, %v1229
        %v1231 = vpop.f32.mrb[0].mxu0
        %1232 = vmatprep.mubr.bf16.mxu0 %v885
        %1233 = vmatmul.mubr.bf16.gmra.mrb[0].mxu0 %v884
        %v1234 = vpop.f32.mrb[0].mxu0
        %v1235 = vadd.f32 0.0, %v1234
        %v1236 = vpop.f32.mrb[0].mxu0
        %v1237 = vpop.f32.mrb[0].mxu0
        %v1238 = vadd.f32 0.0, %v1237
        %v1239 = vpop.f32.mrb[0].mxu0
        %1240 = vdwg.mxu0
        %1241 = vmatprep.subr.bf16.mxu0 0
        %1242 = vmatpush1.bf16.msra.mxu0 %v1048
        %1243 = vmatprep.subr.bf16.mxu0 0
        %1244 = vmatpush1.bf16.msra.mxu0 %v1049
        %1245 = vmatprep.subr.bf16.mxu0 0
        %1246 = vmatpush1.bf16.msra.mxu0 %v1050
        %1247 = vmatprep.subr.bf16.mxu0 0
        %1248 = vmatpush1.bf16.msra.mxu0 %v1051
        %1249 = vmatprep.subr.bf16.mxu0 0
        %1250 = vmatpush1.bf16.msra.mxu0 %v1052
        %1251 = vmatprep.subr.bf16.mxu0 0
        %1252 = vmatpush1.bf16.msra.mxu0 %v1053
        %1253 = vmatprep.subr.bf16.mxu0 0
        %1254 = vmatpush1.bf16.msra.mxu0 %v1054
        %1255 = vmatprep.subr.bf16.mxu0 0
        %1256 = vmatpush1.bf16.msra.mxu0 %v1055
        %1257 = vmatprep.subr.bf16.mxu0 0
        %1258 = vmatpush1.bf16.msra.mxu0 0
        %1259 = vmatprep.subr.bf16.mxu0 0
        %1260 = vmatpush1.bf16.msra.mxu0 0
        %1261 = vmatprep.subr.bf16.mxu0 0
        %1262 = vmatpush1.bf16.msra.mxu0 0
        %1263 = vmatprep.subr.bf16.mxu0 0
        %1264 = vmatpush1.bf16.msra.mxu0 0
        %1265 = vmatprep.subr.bf16.mxu0 0
        %1266 = vmatpush1.bf16.msra.mxu0 0
        %1267 = vmatprep.subr.bf16.mxu0 0
        %1268 = vmatpush1.bf16.msra.mxu0 0
        %1269 = vmatprep.subr.bf16.mxu0 0
        %1270 = vmatpush1.bf16.msra.mxu0 0
        %1271 = vmatprep.subr.bf16.mxu0 0
        %1272 = vmatpush1.bf16.msra.mxu0 0
        %1273 = vmatprep.mubr.bf16.mxu0 0
        %1274 = vmatmul.mubr.bf16.gmra.mrb[0].mxu0 %v841
        %v1275 = vpop.f32.mrb[0].mxu0
        %v1276 = vadd.f32 %v1115, %v1275
        %v1277 = vpop.f32.mrb[0].mxu0
        %v1278 = vpop.f32.mrb[0].mxu0
        %v1279 = vadd.f32 %v1118, %v1278
        %v1280 = vpop.f32.mrb[0].mxu0
        %1281 = vmatprep.mubr.bf16.mxu0 0
        %1282 = vmatmul.mubr.bf16.gmra.mrb[0].mxu0 %v844
        %v1283 = vpop.f32.mrb[0].mxu0
        %v1284 = vadd.f32 %v1123, %v1283
        %v1285 = vpop.f32.mrb[0].mxu0
        %v1286 = vpop.f32.mrb[0].mxu0
        %v1287 = vadd.f32 %v1126, %v1286
        %v1288 = vpop.f32.mrb[0].mxu0
        %1289 = vmatprep.mubr.bf16.mxu0 0
        %1290 = vmatmul.mubr.bf16.gmra.mrb[0].mxu0 %v847
        %v1291 = vpop.f32.mrb[0].mxu0
        %v1292 = vadd.f32 %v1131, %v1291
        %v1293 = vpop.f32.mrb[0].mxu0
        %v1294 = vpop.f32.mrb[0].mxu0
        %v1295 = vadd.f32 %v1134, %v1294
        %v1296 = vpop.f32.mrb[0].mxu0
        %1297 = vmatprep.mubr.bf16.mxu0 0
        %1298 = vmatmul.mubr.bf16.gmra.mrb[0].mxu0 %v850
        %v1299 = vpop.f32.mrb[0].mxu0
        %v1300 = vadd.f32 %v1139, %v1299
        %v1301 = vpop.f32.mrb[0].mxu0
        %v1302 = vpop.f32.mrb[0].mxu0
        %v1303 = vadd.f32 %v1142, %v1302
        %v1304 = vpop.f32.mrb[0].mxu0
        %1305 = vmatprep.mubr.bf16.mxu0 0
        %1306 = vmatmul.mubr.bf16.gmra.mrb[0].mxu0 %v853
        %v1307 = vpop.f32.mrb[0].mxu0
        %v1308 = vadd.f32 %v1147, %v1307
        %v1309 = vpop.f32.mrb[0].mxu0
        %v1310 = vpop.f32.mrb[0].mxu0
        %v1311 = vadd.f32 %v1150, %v1310
        %v1312 = vpop.f32.mrb[0].mxu0
        %1313 = vmatprep.mubr.bf16.mxu0 0
        %1314 = vmatmul.mubr.bf16.gmra.mrb[0].mxu0 %v856
        %v1315 = vpop.f32.mrb[0].mxu0
        %v1316 = vadd.f32 %v1155, %v1315
        %v1317 = vpop.f32.mrb[0].mxu0
        %v1318 = vpop.f32.mrb[0].mxu0
        %v1319 = vadd.f32 %v1158, %v1318
        %v1320 = vpop.f32.mrb[0].mxu0
        %1321 = vmatprep.mubr.bf16.mxu0 0
        %1322 = vmatmul.mubr.bf16.gmra.mrb[0].mxu0 %v859
        %v1323 = vpop.f32.mrb[0].mxu0
        %v1324 = vadd.f32 %v1163, %v1323
        %v1325 = vpop.f32.mrb[0].mxu0
        %v1326 = vpop.f32.mrb[0].mxu0
        %v1327 = vadd.f32 %v1166, %v1326
        %v1328 = vpop.f32.mrb[0].mxu0
        %1329 = vmatprep.mubr.bf16.mxu0 0
        %1330 = vmatmul.mubr.bf16.gmra.mrb[0].mxu0 %v862
        %v1331 = vpop.f32.mrb[0].mxu0
        %v1332 = vadd.f32 %v1171, %v1331
        %v1333 = vpop.f32.mrb[0].mxu0
        %v1334 = vpop.f32.mrb[0].mxu0
        %v1335 = vadd.f32 %v1174, %v1334
        %v1336 = vpop.f32.mrb[0].mxu0
        %1337 = vmatprep.mubr.bf16.mxu0 0
        %1338 = vmatmul.mubr.bf16.gmra.mrb[0].mxu0 %v865
        %v1339 = vpop.f32.mrb[0].mxu0
        %v1340 = vadd.f32 %v1179, %v1339
        %v1341 = vpop.f32.mrb[0].mxu0
        %v1342 = vpop.f32.mrb[0].mxu0
        %v1343 = vadd.f32 %v1182, %v1342
        %v1344 = vpop.f32.mrb[0].mxu0
        %1345 = vmatprep.mubr.bf16.mxu0 0
        %1346 = vmatmul.mubr.bf16.gmra.mrb[0].mxu0 %v868
        %v1347 = vpop.f32.mrb[0].mxu0
        %v1348 = vadd.f32 %v1187, %v1347
        %v1349 = vpop.f32.mrb[0].mxu0
        %v1350 = vpop.f32.mrb[0].mxu0
        %v1351 = vadd.f32 %v1190, %v1350
        %v1352 = vpop.f32.mrb[0].mxu0
        %1353 = vmatprep.mubr.bf16.mxu0 0
        %1354 = vmatmul.mubr.bf16.gmra.mrb[0].mxu0 %v871
        %v1355 = vpop.f32.mrb[0].mxu0
        %v1356 = vadd.f32 %v1195, %v1355
        %v1357 = vpop.f32.mrb[0].mxu0
        %v1358 = vpop.f32.mrb[0].mxu0
        %v1359 = vadd.f32 %v1198, %v1358
        %v1360 = vpop.f32.mrb[0].mxu0
        %1361 = vmatprep.mubr.bf16.mxu0 0
        %1362 = vmatmul.mubr.bf16.gmra.mrb[0].mxu0 %v874
        %v1363 = vpop.f32.mrb[0].mxu0
        %v1364 = vadd.f32 %v1203, %v1363
        %v1365 = vpop.f32.mrb[0].mxu0
        %v1366 = vpop.f32.mrb[0].mxu0
        %v1367 = vadd.f32 %v1206, %v1366
        %v1368 = vpop.f32.mrb[0].mxu0
        %1369 = vmatprep.mubr.bf16.mxu0 0
        %1370 = vmatmul.mubr.bf16.gmra.mrb[0].mxu0 %v877
        %v1371 = vpop.f32.mrb[0].mxu0
        %v1372 = vadd.f32 %v1211, %v1371
        %v1373 = vpop.f32.mrb[0].mxu0
        %v1374 = vpop.f32.mrb[0].mxu0
        %v1375 = vadd.f32 %v1214, %v1374
        %v1376 = vpop.f32.mrb[0].mxu0
        %1377 = vmatprep.mubr.bf16.mxu0 0
        %1378 = vmatmul.mubr.bf16.gmra.mrb[0].mxu0 %v880
        %v1379 = vpop.f32.mrb[0].mxu0
        %v1380 = vadd.f32 %v1219, %v1379
        %v1381 = vpop.f32.mrb[0].mxu0
        %v1382 = vpop.f32.mrb[0].mxu0
        %v1383 = vadd.f32 %v1222, %v1382
        %v1384 = vpop.f32.mrb[0].mxu0
        %1385 = vmatprep.mubr.bf16.mxu0 0
        %1386 = vmatmul.mubr.bf16.gmra.mrb[0].mxu0 %v883
        %v1387 = vpop.f32.mrb[0].mxu0
        %v1388 = vadd.f32 %v1227, %v1387
        %v1389 = vpop.f32.mrb[0].mxu0
        %v1390 = vpop.f32.mrb[0].mxu0
        %v1391 = vadd.f32 %v1230, %v1390
        %v1392 = vpop.f32.mrb[0].mxu0
        %1393 = vmatprep.mubr.bf16.mxu0 0
        %1394 = vmatmul.mubr.bf16.gmra.mrb[0].mxu0 %v886
        %v1395 = vpop.f32.mrb[0].mxu0
        %v1396 = vadd.f32 %v1235, %v1395
        %v1397 = vpop.f32.mrb[0].mxu0
        %v1398 = vpop.f32.mrb[0].mxu0
        %v1399 = vadd.f32 %v1238, %v1398
        %v1400 = vpop.f32.mrb[0].mxu0
        %1401 = vdwg.mxu0
        %v1450 = vunpack.c.l.b16 %v791
        %v1451 = vunpack.c.l.b16 %v792
        %v1452 = vunpack.c.l.b16 %v793
        %v1453 = vunpack.c.l.b16 %v794
        %v1454 = vunpack.c.l.b16 %v795
        %v1455 = vunpack.c.l.b16 %v796
        %v1456 = vunpack.c.l.b16 %v797
        %v1457 = vunpack.c.l.b16 %v798
        %v1458 = vunpack.c.l.b16 %v799
        %v1459 = vunpack.c.l.b16 %v800
        %v1460 = vunpack.c.l.b16 %v801
        %v1461 = vunpack.c.l.b16 %v802
        %v1462 = vunpack.c.l.b16 %v803
        %v1463 = vunpack.c.l.b16 %v804
        %v1464 = vunpack.c.l.b16 %v805
        %v1465 = vunpack.c.l.b16 %v806
        %v1466 = vunpack.c.l.b16 %v807
        %v1467 = vunpack.c.l.b16 %v808
        %v1468 = vunpack.c.l.b16 %v809
        %v1469 = vunpack.c.l.b16 %v810
        %v1470 = vunpack.c.l.b16 %v811
        %v1471 = vunpack.c.l.b16 %v812
        %v1472 = vunpack.c.l.b16 %v813
        %v1473 = vunpack.c.l.b16 %v814
        %v1474 = vunpack.c.l.b16 %v815
        %v1475 = vunpack.c.l.b16 %v816
        %v1476 = vunpack.c.l.b16 %v817
        %v1477 = vunpack.c.l.b16 %v818
        %v1478 = vunpack.c.l.b16 %v819
        %v1479 = vunpack.c.l.b16 %v820
        %v1480 = vunpack.c.l.b16 %v821
        %v1481 = vunpack.c.l.b16 %v822
        %v1482 = vunpack.c.l.b16 %v823
        %v1483 = vunpack.c.l.b16 %v824
        %v1484 = vunpack.c.l.b16 %v825
        %v1485 = vunpack.c.l.b16 %v826
        %v1486 = vunpack.c.l.b16 %v827
        %v1487 = vunpack.c.l.b16 %v828
        %v1488 = vunpack.c.l.b16 %v829
        %v1489 = vunpack.c.l.b16 %v830
        %v1490 = vunpack.c.l.b16 %v831
        %v1491 = vunpack.c.l.b16 %v832
        %v1492 = vunpack.c.l.b16 %v833
        %v1493 = vunpack.c.l.b16 %v834
        %v1494 = vunpack.c.l.b16 %v835
        %v1495 = vunpack.c.l.b16 %v836
        %v1496 = vunpack.c.l.b16 %v837
        %v1497 = vunpack.c.l.b16 %v838
        %v1498 = vpack.c.b16 %v1451, %v1450
        %v1499 = vpack.c.b16 %v1453, %v1452
        %v1500 = vpack.c.b16 %v1455, %v1454
        %v1501 = vpack.c.b16 %v1457, %v1456
        %v1502 = vpack.c.b16 %v1459, %v1458
        %v1503 = vpack.c.b16 %v1461, %v1460
        %v1504 = vpack.c.b16 %v1463, %v1462
        %v1505 = vpack.c.b16 %v1465, %v1464
        %v1506 = vpack.c.b16 %v1467, %v1466
        %v1507 = vpack.c.b16 %v1469, %v1468
        %v1508 = vpack.c.b16 %v1471, %v1470
        %v1509 = vpack.c.b16 %v1473, %v1472
        %v1510 = vpack.c.b16 %v1475, %v1474
        %v1511 = vpack.c.b16 %v1477, %v1476
        %v1512 = vpack.c.b16 %v1479, %v1478
        %v1513 = vpack.c.b16 %v1481, %v1480
        %v1514 = vpack.c.b16 %v1483, %v1482
        %v1515 = vpack.c.b16 %v1485, %v1484
        %v1516 = vpack.c.b16 %v1487, %v1486
        %v1517 = vpack.c.b16 %v1489, %v1488
        %v1518 = vpack.c.b16 %v1491, %v1490
        %v1519 = vpack.c.b16 %v1493, %v1492
        %v1520 = vpack.c.b16 %v1495, %v1494
        %v1521 = vpack.c.b16 %v1497, %v1496
        %1546 = vmatprep.subr.bf16.mxu0 0
        %1547 = vmatpush1.bf16.msra.mxu0 %v1498
        %1548 = vmatprep.subr.bf16.mxu0 0
        %1549 = vmatpush1.bf16.msra.mxu0 %v1499
        %1550 = vmatprep.subr.bf16.mxu0 0
        %1551 = vmatpush1.bf16.msra.mxu0 %v1500
        %1552 = vmatprep.subr.bf16.mxu0 0
        %1553 = vmatpush1.bf16.msra.mxu0 %v1501
        %1554 = vmatprep.subr.bf16.mxu0 0
        %1555 = vmatpush1.bf16.msra.mxu0 %v1502
        %1556 = vmatprep.subr.bf16.mxu0 0
        %1557 = vmatpush1.bf16.msra.mxu0 %v1503
        %1558 = vmatprep.subr.bf16.mxu0 0
        %1559 = vmatpush1.bf16.msra.mxu0 %v1504
        %1560 = vmatprep.subr.bf16.mxu0 0
        %1561 = vmatpush1.bf16.msra.mxu0 %v1505
        %1562 = vmatprep.subr.bf16.mxu0 0
        %1563 = vmatpush1.bf16.msra.mxu0 %v1506
        %1564 = vmatprep.subr.bf16.mxu0 0
        %1565 = vmatpush1.bf16.msra.mxu0 %v1507
        %1566 = vmatprep.subr.bf16.mxu0 0
        %1567 = vmatpush1.bf16.msra.mxu0 %v1508
        %1568 = vmatprep.subr.bf16.mxu0 0
        %1569 = vmatpush1.bf16.msra.mxu0 %v1509
        %1570 = vmatprep.subr.bf16.mxu0 0
        %1571 = vmatpush1.bf16.msra.mxu0 %v1510
        %1572 = vmatprep.subr.bf16.mxu0 0
        %1573 = vmatpush1.bf16.msra.mxu0 %v1511
        %1574 = vmatprep.subr.bf16.mxu0 0
        %1575 = vmatpush1.bf16.msra.mxu0 %v1512
        %1576 = vmatprep.subr.bf16.mxu0 0
        %1577 = vmatpush1.bf16.msra.mxu0 %v1513
        %1578 = vmatprep.mubr.bf16.mxu0 %v744
        %1579 = vmatmul.mubr.bf16.gmra.mrb[0].mxu0 %v743
        %v1580 = vpop.f32.mrb[0].mxu0
        %v1581 = vadd.f32 %v1276, %v1580
        %v1582 = vpop.f32.mrb[0].mxu0
        %v1583 = vpop.f32.mrb[0].mxu0
        %v1584 = vadd.f32 %v1279, %v1583
        %v1585 = vpop.f32.mrb[0].mxu0
        %1586 = vmatprep.mubr.bf16.mxu0 %v747
        %1587 = vmatmul.mubr.bf16.gmra.mrb[0].mxu0 %v746
        %v1588 = vpop.f32.mrb[0].mxu0
        %v1589 = vadd.f32 %v1284, %v1588
        %v1590 = vpop.f32.mrb[0].mxu0
        %v1591 = vpop.f32.mrb[0].mxu0
        %v1592 = vadd.f32 %v1287, %v1591
        %v1593 = vpop.f32.mrb[0].mxu0
        %1594 = vmatprep.mubr.bf16.mxu0 %v750
        %1595 = vmatmul.mubr.bf16.gmra.mrb[0].mxu0 %v749
        %v1596 = vpop.f32.mrb[0].mxu0
        %v1597 = vadd.f32 %v1292, %v1596
        %v1598 = vpop.f32.mrb[0].mxu0
        %v1599 = vpop.f32.mrb[0].mxu0
        %v1600 = vadd.f32 %v1295, %v1599
        %v1601 = vpop.f32.mrb[0].mxu0
        %1602 = vmatprep.mubr.bf16.mxu0 %v753
        %1603 = vmatmul.mubr.bf16.gmra.mrb[0].mxu0 %v752
        %v1604 = vpop.f32.mrb[0].mxu0
        %v1605 = vadd.f32 %v1300, %v1604
        %v1606 = vpop.f32.mrb[0].mxu0
        %v1607 = vpop.f32.mrb[0].mxu0
        %v1608 = vadd.f32 %v1303, %v1607
        %v1609 = vpop.f32.mrb[0].mxu0
        %1610 = vmatprep.mubr.bf16.mxu0 %v756
        %1611 = vmatmul.mubr.bf16.gmra.mrb[0].mxu0 %v755
        %v1612 = vpop.f32.mrb[0].mxu0
        %v1613 = vadd.f32 %v1308, %v1612
        %v1614 = vpop.f32.mrb[0].mxu0
        %v1615 = vpop.f32.mrb[0].mxu0
        %v1616 = vadd.f32 %v1311, %v1615
        %v1617 = vpop.f32.mrb[0].mxu0
        %1618 = vmatprep.mubr.bf16.mxu0 %v759
        %1619 = vmatmul.mubr.bf16.gmra.mrb[0].mxu0 %v758
        %v1620 = vpop.f32.mrb[0].mxu0
        %v1621 = vadd.f32 %v1316, %v1620
        %v1622 = vpop.f32.mrb[0].mxu0
        %v1623 = vpop.f32.mrb[0].mxu0
        %v1624 = vadd.f32 %v1319, %v1623
        %v1625 = vpop.f32.mrb[0].mxu0
        %1626 = vmatprep.mubr.bf16.mxu0 %v762
        %1627 = vmatmul.mubr.bf16.gmra.mrb[0].mxu0 %v761
        %v1628 = vpop.f32.mrb[0].mxu0
        %v1629 = vadd.f32 %v1324, %v1628
        %v1630 = vpop.f32.mrb[0].mxu0
        %v1631 = vpop.f32.mrb[0].mxu0
        %v1632 = vadd.f32 %v1327, %v1631
        %v1633 = vpop.f32.mrb[0].mxu0
        %1634 = vmatprep.mubr.bf16.mxu0 %v765
        %1635 = vmatmul.mubr.bf16.gmra.mrb[0].mxu0 %v764
        %v1636 = vpop.f32.mrb[0].mxu0
        %v1637 = vadd.f32 %v1332, %v1636
        %v1638 = vpop.f32.mrb[0].mxu0
        %v1639 = vpop.f32.mrb[0].mxu0
        %v1640 = vadd.f32 %v1335, %v1639
        %v1641 = vpop.f32.mrb[0].mxu0
        %1642 = vmatprep.mubr.bf16.mxu0 %v768
        %1643 = vmatmul.mubr.bf16.gmra.mrb[0].mxu0 %v767
        %v1644 = vpop.f32.mrb[0].mxu0
        %v1645 = vadd.f32 %v1340, %v1644
        %v1646 = vpop.f32.mrb[0].mxu0
        %v1647 = vpop.f32.mrb[0].mxu0
        %v1648 = vadd.f32 %v1343, %v1647
        %v1649 = vpop.f32.mrb[0].mxu0
        %1650 = vmatprep.mubr.bf16.mxu0 %v771
        %1651 = vmatmul.mubr.bf16.gmra.mrb[0].mxu0 %v770
        %v1652 = vpop.f32.mrb[0].mxu0
        %v1653 = vadd.f32 %v1348, %v1652
        %v1654 = vpop.f32.mrb[0].mxu0
        %v1655 = vpop.f32.mrb[0].mxu0
        %v1656 = vadd.f32 %v1351, %v1655
        %v1657 = vpop.f32.mrb[0].mxu0
        %1658 = vmatprep.mubr.bf16.mxu0 %v774
        %1659 = vmatmul.mubr.bf16.gmra.mrb[0].mxu0 %v773
        %v1660 = vpop.f32.mrb[0].mxu0
        %v1661 = vadd.f32 %v1356, %v1660
        %v1662 = vpop.f32.mrb[0].mxu0
        %v1663 = vpop.f32.mrb[0].mxu0
        %v1664 = vadd.f32 %v1359, %v1663
        %v1665 = vpop.f32.mrb[0].mxu0
        %1666 = vmatprep.mubr.bf16.mxu0 %v777
        %1667 = vmatmul.mubr.bf16.gmra.mrb[0].mxu0 %v776
        %v1668 = vpop.f32.mrb[0].mxu0
        %v1669 = vadd.f32 %v1364, %v1668
        %v1670 = vpop.f32.mrb[0].mxu0
        %v1671 = vpop.f32.mrb[0].mxu0
        %v1672 = vadd.f32 %v1367, %v1671
        %v1673 = vpop.f32.mrb[0].mxu0
        %1674 = vmatprep.mubr.bf16.mxu0 %v780
        %1675 = vmatmul.mubr.bf16.gmra.mrb[0].mxu0 %v779
        %v1676 = vpop.f32.mrb[0].mxu0
        %v1677 = vadd.f32 %v1372, %v1676
        %v1678 = vpop.f32.mrb[0].mxu0
        %v1679 = vpop.f32.mrb[0].mxu0
        %v1680 = vadd.f32 %v1375, %v1679
        %v1681 = vpop.f32.mrb[0].mxu0
        %1682 = vmatprep.mubr.bf16.mxu0 %v783
        %1683 = vmatmul.mubr.bf16.gmra.mrb[0].mxu0 %v782
        %v1684 = vpop.f32.mrb[0].mxu0
        %v1685 = vadd.f32 %v1380, %v1684
        %v1686 = vpop.f32.mrb[0].mxu0
        %v1687 = vpop.f32.mrb[0].mxu0
        %v1688 = vadd.f32 %v1383, %v1687
        %v1689 = vpop.f32.mrb[0].mxu0
        %1690 = vmatprep.mubr.bf16.mxu0 %v786
        %1691 = vmatmul.mubr.bf16.gmra.mrb[0].mxu0 %v785
        %v1692 = vpop.f32.mrb[0].mxu0
        %v1693 = vadd.f32 %v1388, %v1692
        %v1694 = vpop.f32.mrb[0].mxu0
        %v1695 = vpop.f32.mrb[0].mxu0
        %v1696 = vadd.f32 %v1391, %v1695
        %v1697 = vpop.f32.mrb[0].mxu0
        %1698 = vmatprep.mubr.bf16.mxu0 %v789
        %1699 = vmatmul.mubr.bf16.gmra.mrb[0].mxu0 %v788
        %v1700 = vpop.f32.mrb[0].mxu0
        %v1701 = vadd.f32 %v1396, %v1700
        %v1702 = vpop.f32.mrb[0].mxu0
        %v1703 = vpop.f32.mrb[0].mxu0
        %v1704 = vadd.f32 %v1399, %v1703
        %v1705 = vpop.f32.mrb[0].mxu0
        %1706 = vdwg.mxu0
        %1707 = vmatprep.subr.bf16.mxu0 0
        %1708 = vmatpush1.bf16.msra.mxu0 %v1514
        %1709 = vmatprep.subr.bf16.mxu0 0
        %1710 = vmatpush1.bf16.msra.mxu0 %v1515
        %1711 = vmatprep.subr.bf16.mxu0 0
        %1712 = vmatpush1.bf16.msra.mxu0 %v1516
        %1713 = vmatprep.subr.bf16.mxu0 0
        %1714 = vmatpush1.bf16.msra.mxu0 %v1517
        %1715 = vmatprep.subr.bf16.mxu0 0
        %1716 = vmatpush1.bf16.msra.mxu0 %v1518
        %1717 = vmatprep.subr.bf16.mxu0 0
        %1718 = vmatpush1.bf16.msra.mxu0 %v1519
        %1719 = vmatprep.subr.bf16.mxu0 0
        %1720 = vmatpush1.bf16.msra.mxu0 %v1520
        %1721 = vmatprep.subr.bf16.mxu0 0
        %1722 = vmatpush1.bf16.msra.mxu0 %v1521
        %1723 = vmatprep.subr.bf16.mxu0 0
        %1724 = vmatpush1.bf16.msra.mxu0 0
        %1725 = vmatprep.subr.bf16.mxu0 0
        %1726 = vmatpush1.bf16.msra.mxu0 0
        %1727 = vmatprep.subr.bf16.mxu0 0
        %1728 = vmatpush1.bf16.msra.mxu0 0
        %1729 = vmatprep.subr.bf16.mxu0 0
        %1730 = vmatpush1.bf16.msra.mxu0 0
        %1731 = vmatprep.subr.bf16.mxu0 0
        %1732 = vmatpush1.bf16.msra.mxu0 0
        %1733 = vmatprep.subr.bf16.mxu0 0
        %1734 = vmatpush1.bf16.msra.mxu0 0
        %1735 = vmatprep.subr.bf16.mxu0 0
        %1736 = vmatpush1.bf16.msra.mxu0 0
        %1737 = vmatprep.subr.bf16.mxu0 0
        %1738 = vmatpush1.bf16.msra.mxu0 0
        %1739 = vmatprep.mubr.bf16.mxu0 0
        %1740 = vmatmul.mubr.bf16.gmra.mrb[0].mxu0 %v745
        %v1741 = vpop.f32.mrb[0].mxu0
        %v1742 = vadd.f32 %v1581, %v1741
        %v1743 = vpop.f32.mrb[0].mxu0
        %v1744 = vpop.f32.mrb[0].mxu0
        %v1745 = vadd.f32 %v1584, %v1744
        %v1746 = vpop.f32.mrb[0].mxu0
        %1747 = vmatprep.mubr.bf16.mxu0 0
        %1748 = vmatmul.mubr.bf16.gmra.mrb[0].mxu0 %v748
        %v1749 = vpop.f32.mrb[0].mxu0
        %v1750 = vadd.f32 %v1589, %v1749
        %v1751 = vpop.f32.mrb[0].mxu0
        %v1752 = vpop.f32.mrb[0].mxu0
        %v1753 = vadd.f32 %v1592, %v1752
        %v1754 = vpop.f32.mrb[0].mxu0
        %1755 = vmatprep.mubr.bf16.mxu0 0
        %1756 = vmatmul.mubr.bf16.gmra.mrb[0].mxu0 %v751
        %v1757 = vpop.f32.mrb[0].mxu0
        %v1758 = vadd.f32 %v1597, %v1757
        %v1759 = vpop.f32.mrb[0].mxu0
        %v1760 = vpop.f32.mrb[0].mxu0
        %v1761 = vadd.f32 %v1600, %v1760
        %v1762 = vpop.f32.mrb[0].mxu0
        %1763 = vmatprep.mubr.bf16.mxu0 0
        %1764 = vmatmul.mubr.bf16.gmra.mrb[0].mxu0 %v754
        %v1765 = vpop.f32.mrb[0].mxu0
        %v1766 = vadd.f32 %v1605, %v1765
        %v1767 = vpop.f32.mrb[0].mxu0
        %v1768 = vpop.f32.mrb[0].mxu0
        %v1769 = vadd.f32 %v1608, %v1768
        %v1770 = vpop.f32.mrb[0].mxu0
        %1771 = vmatprep.mubr.bf16.mxu0 0
        %1772 = vmatmul.mubr.bf16.gmra.mrb[0].mxu0 %v757
        %v1773 = vpop.f32.mrb[0].mxu0
        %v1774 = vadd.f32 %v1613, %v1773
        %v1775 = vpop.f32.mrb[0].mxu0
        %v1776 = vpop.f32.mrb[0].mxu0
        %v1777 = vadd.f32 %v1616, %v1776
        %v1778 = vpop.f32.mrb[0].mxu0
        %1779 = vmatprep.mubr.bf16.mxu0 0
        %1780 = vmatmul.mubr.bf16.gmra.mrb[0].mxu0 %v760
        %v1781 = vpop.f32.mrb[0].mxu0
        %v1782 = vadd.f32 %v1621, %v1781
        %v1783 = vpop.f32.mrb[0].mxu0
        %v1784 = vpop.f32.mrb[0].mxu0
        %v1785 = vadd.f32 %v1624, %v1784
        %v1786 = vpop.f32.mrb[0].mxu0
        %1787 = vmatprep.mubr.bf16.mxu0 0
        %1788 = vmatmul.mubr.bf16.gmra.mrb[0].mxu0 %v763
        %v1789 = vpop.f32.mrb[0].mxu0
        %v1790 = vadd.f32 %v1629, %v1789
        %v1791 = vpop.f32.mrb[0].mxu0
        %v1792 = vpop.f32.mrb[0].mxu0
        %v1793 = vadd.f32 %v1632, %v1792
        %v1794 = vpop.f32.mrb[0].mxu0
        %1795 = vmatprep.mubr.bf16.mxu0 0
        %1796 = vmatmul.mubr.bf16.gmra.mrb[0].mxu0 %v766
        %v1797 = vpop.f32.mrb[0].mxu0
        %v1798 = vadd.f32 %v1637, %v1797
        %v1799 = vpop.f32.mrb[0].mxu0
        %v1800 = vpop.f32.mrb[0].mxu0
        %v1801 = vadd.f32 %v1640, %v1800
        %v1802 = vpop.f32.mrb[0].mxu0
        %1803 = vmatprep.mubr.bf16.mxu0 0
        %1804 = vmatmul.mubr.bf16.gmra.mrb[0].mxu0 %v769
        %v1805 = vpop.f32.mrb[0].mxu0
        %v1806 = vadd.f32 %v1645, %v1805
        %v1807 = vpop.f32.mrb[0].mxu0
        %v1808 = vpop.f32.mrb[0].mxu0
        %v1809 = vadd.f32 %v1648, %v1808
        %v1810 = vpop.f32.mrb[0].mxu0
        %1811 = vmatprep.mubr.bf16.mxu0 0
        %1812 = vmatmul.mubr.bf16.gmra.mrb[0].mxu0 %v772
        %v1813 = vpop.f32.mrb[0].mxu0
        %v1814 = vadd.f32 %v1653, %v1813
        %v1815 = vpop.f32.mrb[0].mxu0
        %v1816 = vpop.f32.mrb[0].mxu0
        %v1817 = vadd.f32 %v1656, %v1816
        %v1818 = vpop.f32.mrb[0].mxu0
        %1819 = vmatprep.mubr.bf16.mxu0 0
        %1820 = vmatmul.mubr.bf16.gmra.mrb[0].mxu0 %v775
        %v1821 = vpop.f32.mrb[0].mxu0
        %v1822 = vadd.f32 %v1661, %v1821
        %v1823 = vpop.f32.mrb[0].mxu0
        %v1824 = vpop.f32.mrb[0].mxu0
        %v1825 = vadd.f32 %v1664, %v1824
        %v1826 = vpop.f32.mrb[0].mxu0
        %1827 = vmatprep.mubr.bf16.mxu0 0
        %1828 = vmatmul.mubr.bf16.gmra.mrb[0].mxu0 %v778
        %v1829 = vpop.f32.mrb[0].mxu0
        %v1830 = vadd.f32 %v1669, %v1829
        %v1831 = vpop.f32.mrb[0].mxu0
        %v1832 = vpop.f32.mrb[0].mxu0
        %v1833 = vadd.f32 %v1672, %v1832
        %v1834 = vpop.f32.mrb[0].mxu0
        %1835 = vmatprep.mubr.bf16.mxu0 0
        %1836 = vmatmul.mubr.bf16.gmra.mrb[0].mxu0 %v781
        %v1837 = vpop.f32.mrb[0].mxu0
        %v1838 = vadd.f32 %v1677, %v1837
        %v1839 = vpop.f32.mrb[0].mxu0
        %v1840 = vpop.f32.mrb[0].mxu0
        %v1841 = vadd.f32 %v1680, %v1840
        %v1842 = vpop.f32.mrb[0].mxu0
        %1843 = vmatprep.mubr.bf16.mxu0 0
        %1844 = vmatmul.mubr.bf16.gmra.mrb[0].mxu0 %v784
        %v1845 = vpop.f32.mrb[0].mxu0
        %v1846 = vadd.f32 %v1685, %v1845
        %v1847 = vpop.f32.mrb[0].mxu0
        %v1848 = vpop.f32.mrb[0].mxu0
        %v1849 = vadd.f32 %v1688, %v1848
        %v1850 = vpop.f32.mrb[0].mxu0
        %1851 = vmatprep.mubr.bf16.mxu0 0
        %1852 = vmatmul.mubr.bf16.gmra.mrb[0].mxu0 %v787
        %v1853 = vpop.f32.mrb[0].mxu0
        %v1854 = vadd.f32 %v1693, %v1853
        %v1855 = vpop.f32.mrb[0].mxu0
        %v1856 = vpop.f32.mrb[0].mxu0
        %v1857 = vadd.f32 %v1696, %v1856
        %v1858 = vpop.f32.mrb[0].mxu0
        %1859 = vmatprep.mubr.bf16.mxu0 0
        %1860 = vmatmul.mubr.bf16.gmra.mrb[0].mxu0 %v790
        %v1861 = vpop.f32.mrb[0].mxu0
        %v1862 = vadd.f32 %v1701, %v1861
        %v1863 = vpop.f32.mrb[0].mxu0
        %v1864 = vpop.f32.mrb[0].mxu0
        %v1865 = vadd.f32 %v1704, %v1864
        %v1866 = vpop.f32.mrb[0].mxu0
        %1867 = vdwg.mxu0
        %v1868 = vpack.c.bf16 %v596, %v604
        %v1869 = vpack.c.bf16 0.0, %v455
        %v1870 = vpack.c.bf16 %v694, %v702
        %v1871 = vpack.c.bf16 %v596, %v612
        %v1872 = vpack.c.bf16 0.0, %v520
        %v1873 = vpack.c.bf16 %v694, %v710
        %v1874 = vpack.c.bf16 %v596, %v620
        %v1875 = vpack.c.bf16 0.0, %v528
        %v1876 = vpack.c.bf16 %v694, %v718
        %v1877 = vpack.c.bf16 %v596, %v628
        %v1878 = vpack.c.bf16 0.0, %v536
        %v1879 = vpack.c.bf16 %v694, %v726
        %s1880 = scalar_lea.vmem [#allocation8], 384
        %v1881 = vld [vmem:[%s1880] sm:$0xf]
        %v1882 = vld [vmem:[%s1880 + $0x4] sm:$0xf]
        %v1883 = vld [vmem:[%s1880 + $0x8] sm:$0xf]
        %v1884 = vld [vmem:[%s1880 + $0xc] sm:$0xf]
        %v1885 = vld [vmem:[%s1880 + $0x10] sm:$0xf]
        %v1886 = vld [vmem:[%s1880 + $0x14] sm:$0xf]
        %v1887 = vld [vmem:[%s1880 + $0x18] sm:$0xf]
        %v1888 = vld [vmem:[%s1880 + $0x1c] sm:$0xf]
        %v1889 = vld [vmem:[%s1880 + $0x20] sm:$0xf]
        %v1890 = vld [vmem:[%s1880 + $0x24] sm:$0xf]
        %v1891 = vld [vmem:[%s1880 + $0x28] sm:$0xf]
        %v1892 = vld [vmem:[%s1880 + $0x2c] sm:$0xf]
        %v1893 = vld [vmem:[%s1880 + $0x30] sm:$0xf]
        %v1894 = vld [vmem:[%s1880 + $0x34] sm:$0xf]
        %v1895 = vld [vmem:[%s1880 + $0x38] sm:$0xf]
        %v1896 = vld [vmem:[%s1880 + $0x3c] sm:$0xf]
        %v1897 = vld [vmem:[%s1880 + $0x40] sm:$0xf]
        %v1898 = vld [vmem:[%s1880 + $0x44] sm:$0xf]
        %v1899 = vld [vmem:[%s1880 + $0x48] sm:$0xf]
        %v1900 = vld [vmem:[%s1880 + $0x4c] sm:$0xf]
        %v1901 = vld [vmem:[%s1880 + $0x50] sm:$0xf]
        %v1902 = vld [vmem:[%s1880 + $0x54] sm:$0xf]
        %v1903 = vld [vmem:[%s1880 + $0x58] sm:$0xf]
        %v1904 = vld [vmem:[%s1880 + $0x5c] sm:$0xf]
        %v1905 = vld [vmem:[%s1880 + $0x60] sm:$0xf]
        %v1906 = vld [vmem:[%s1880 + $0x64] sm:$0xf]
        %v1907 = vld [vmem:[%s1880 + $0x68] sm:$0xf]
        %v1908 = vld [vmem:[%s1880 + $0x6c] sm:$0xf]
        %v1909 = vld [vmem:[%s1880 + $0x70] sm:$0xf]
        %v1910 = vld [vmem:[%s1880 + $0x74] sm:$0xf]
        %v1911 = vld [vmem:[%s1880 + $0x78] sm:$0xf]
        %v1912 = vld [vmem:[%s1880 + $0x7c] sm:$0xf]
        %v1913 = vld [vmem:[%s1880 + $0x80] sm:$0xf]
        %v1914 = vld [vmem:[%s1880 + $0x84] sm:$0xf]
        %v1915 = vld [vmem:[%s1880 + $0x88] sm:$0xf]
        %v1916 = vld [vmem:[%s1880 + $0x8c] sm:$0xf]
        %v1917 = vld [vmem:[%s1880 + $0x90] sm:$0xf]
        %v1918 = vld [vmem:[%s1880 + $0x94] sm:$0xf]
        %v1919 = vld [vmem:[%s1880 + $0x98] sm:$0xf]
        %v1920 = vld [vmem:[%s1880 + $0x9c] sm:$0xf]
        %v1921 = vld [vmem:[%s1880 + $0xa0] sm:$0xf]
        %v1922 = vld [vmem:[%s1880 + $0xa4] sm:$0xf]
        %v1923 = vld [vmem:[%s1880 + $0xa8] sm:$0xf]
        %v1924 = vld [vmem:[%s1880 + $0xac] sm:$0xf]
        %v1925 = vld [vmem:[%s1880 + $0xb0] sm:$0xf]
        %v1926 = vld [vmem:[%s1880 + $0xb4] sm:$0xf]
        %v1927 = vld [vmem:[%s1880 + $0xb8] sm:$0xf]
        %v1928 = vld [vmem:[%s1880 + $0xbc] sm:$0xf]
        %v1977 = vunpack.c.l.b16 %v1881
        %v1978 = vunpack.c.l.b16 %v1882
        %v1979 = vunpack.c.l.b16 %v1883
        %v1980 = vunpack.c.l.b16 %v1884
        %v1981 = vunpack.c.l.b16 %v1885
        %v1982 = vunpack.c.l.b16 %v1886
        %v1983 = vunpack.c.l.b16 %v1887
        %v1984 = vunpack.c.l.b16 %v1888
        %v1985 = vunpack.c.l.b16 %v1889
        %v1986 = vunpack.c.l.b16 %v1890
        %v1987 = vunpack.c.l.b16 %v1891
        %v1988 = vunpack.c.l.b16 %v1892
        %v1989 = vunpack.c.l.b16 %v1893
        %v1990 = vunpack.c.l.b16 %v1894
        %v1991 = vunpack.c.l.b16 %v1895
        %v1992 = vunpack.c.l.b16 %v1896
        %v1993 = vunpack.c.l.b16 %v1897
        %v1994 = vunpack.c.l.b16 %v1898
        %v1995 = vunpack.c.l.b16 %v1899
        %v1996 = vunpack.c.l.b16 %v1900
        %v1997 = vunpack.c.l.b16 %v1901
        %v1998 = vunpack.c.l.b16 %v1902
        %v1999 = vunpack.c.l.b16 %v1903
        %v2000 = vunpack.c.l.b16 %v1904
        %v2001 = vunpack.c.l.b16 %v1905
        %v2002 = vunpack.c.l.b16 %v1906
        %v2003 = vunpack.c.l.b16 %v1907
        %v2004 = vunpack.c.l.b16 %v1908
        %v2005 = vunpack.c.l.b16 %v1909
        %v2006 = vunpack.c.l.b16 %v1910
        %v2007 = vunpack.c.l.b16 %v1911
        %v2008 = vunpack.c.l.b16 %v1912
        %v2009 = vunpack.c.l.b16 %v1913
        %v2010 = vunpack.c.l.b16 %v1914
        %v2011 = vunpack.c.l.b16 %v1915
        %v2012 = vunpack.c.l.b16 %v1916
        %v2013 = vunpack.c.l.b16 %v1917
        %v2014 = vunpack.c.l.b16 %v1918
        %v2015 = vunpack.c.l.b16 %v1919
        %v2016 = vunpack.c.l.b16 %v1920
        %v2017 = vunpack.c.l.b16 %v1921
        %v2018 = vunpack.c.l.b16 %v1922
        %v2019 = vunpack.c.l.b16 %v1923
        %v2020 = vunpack.c.l.b16 %v1924
        %v2021 = vunpack.c.l.b16 %v1925
        %v2022 = vunpack.c.l.b16 %v1926
        %v2023 = vunpack.c.l.b16 %v1927
        %v2024 = vunpack.c.l.b16 %v1928
        %v2025 = vpack.c.b16 %v1978, %v1977
        %v2026 = vpack.c.b16 %v1980, %v1979
        %v2027 = vpack.c.b16 %v1982, %v1981
        %v2028 = vpack.c.b16 %v1984, %v1983
        %v2029 = vpack.c.b16 %v1986, %v1985
        %v2030 = vpack.c.b16 %v1988, %v1987
        %v2031 = vpack.c.b16 %v1990, %v1989
        %v2032 = vpack.c.b16 %v1992, %v1991
        %v2033 = vpack.c.b16 %v1994, %v1993
        %v2034 = vpack.c.b16 %v1996, %v1995
        %v2035 = vpack.c.b16 %v1998, %v1997
        %v2036 = vpack.c.b16 %v2000, %v1999
        %v2037 = vpack.c.b16 %v2002, %v2001
        %v2038 = vpack.c.b16 %v2004, %v2003
        %v2039 = vpack.c.b16 %v2006, %v2005
        %v2040 = vpack.c.b16 %v2008, %v2007
        %v2041 = vpack.c.b16 %v2010, %v2009
        %v2042 = vpack.c.b16 %v2012, %v2011
        %v2043 = vpack.c.b16 %v2014, %v2013
        %v2044 = vpack.c.b16 %v2016, %v2015
        %v2045 = vpack.c.b16 %v2018, %v2017
        %v2046 = vpack.c.b16 %v2020, %v2019
        %v2047 = vpack.c.b16 %v2022, %v2021
        %v2048 = vpack.c.b16 %v2024, %v2023
        %2073 = vmatprep.subr.bf16.mxu0 0
        %2074 = vmatpush1.bf16.msra.mxu0 %v2025
        %2075 = vmatprep.subr.bf16.mxu0 0
        %2076 = vmatpush1.bf16.msra.mxu0 %v2026
        %2077 = vmatprep.subr.bf16.mxu0 0
        %2078 = vmatpush1.bf16.msra.mxu0 %v2027
        %2079 = vmatprep.subr.bf16.mxu0 0
        %2080 = vmatpush1.bf16.msra.mxu0 %v2028
        %2081 = vmatprep.subr.bf16.mxu0 0
        %2082 = vmatpush1.bf16.msra.mxu0 %v2029
        %2083 = vmatprep.subr.bf16.mxu0 0
        %2084 = vmatpush1.bf16.msra.mxu0 %v2030
        %2085 = vmatprep.subr.bf16.mxu0 0
        %2086 = vmatpush1.bf16.msra.mxu0 %v2031
        %2087 = vmatprep.subr.bf16.mxu0 0
        %2088 = vmatpush1.bf16.msra.mxu0 %v2032
        %2089 = vmatprep.subr.bf16.mxu0 0
        %2090 = vmatpush1.bf16.msra.mxu0 %v2033
        %2091 = vmatprep.subr.bf16.mxu0 0
        %2092 = vmatpush1.bf16.msra.mxu0 %v2034
        %2093 = vmatprep.subr.bf16.mxu0 0
        %2094 = vmatpush1.bf16.msra.mxu0 %v2035
        %2095 = vmatprep.subr.bf16.mxu0 0
        %2096 = vmatpush1.bf16.msra.mxu0 %v2036
        %2097 = vmatprep.subr.bf16.mxu0 0
        %2098 = vmatpush1.bf16.msra.mxu0 %v2037
        %2099 = vmatprep.subr.bf16.mxu0 0
        %2100 = vmatpush1.bf16.msra.mxu0 %v2038
        %2101 = vmatprep.subr.bf16.mxu0 0
        %2102 = vmatpush1.bf16.msra.mxu0 %v2039
        %2103 = vmatprep.subr.bf16.mxu0 0
        %2104 = vmatpush1.bf16.msra.mxu0 %v2040
        %2105 = vmatprep.mubr.bf16.mxu0 %v747
        %2106 = vmatmul.mubr.bf16.gmra.mrb[0].mxu0 %v746
        %v2107 = vpop.f32.mrb[0].mxu0
        %v2108 = vadd.f32 0.0, %v2107
        %v2109 = vpop.f32.mrb[0].mxu0
        %v2110 = vpop.f32.mrb[0].mxu0
        %v2111 = vadd.f32 0.0, %v2110
        %v2112 = vpop.f32.mrb[0].mxu0
        %2113 = vmatprep.mubr.bf16.mxu0 %v750
        %2114 = vmatmul.mubr.bf16.gmra.mrb[0].mxu0 %v749
        %v2115 = vpop.f32.mrb[0].mxu0
        %v2116 = vadd.f32 0.0, %v2115
        %v2117 = vpop.f32.mrb[0].mxu0
        %v2118 = vpop.f32.mrb[0].mxu0
        %v2119 = vadd.f32 0.0, %v2118
        %v2120 = vpop.f32.mrb[0].mxu0
        %2121 = vmatprep.mubr.bf16.mxu0 %v753
        %2122 = vmatmul.mubr.bf16.gmra.mrb[0].mxu0 %v752
        %v2123 = vpop.f32.mrb[0].mxu0
        %v2124 = vadd.f32 0.0, %v2123
        %v2125 = vpop.f32.mrb[0].mxu0
        %v2126 = vpop.f32.mrb[0].mxu0
        %v2127 = vadd.f32 0.0, %v2126
        %v2128 = vpop.f32.mrb[0].mxu0
        %2129 = vmatprep.mubr.bf16.mxu0 %v1869
        %2130 = vmatmul.mubr.bf16.gmra.mrb[0].mxu0 %v1868
        %v2131 = vpop.f32.mrb[0].mxu0
        %v2132 = vadd.f32 0.0, %v2131
        %v2133 = vpop.f32.mrb[0].mxu0
        %v2134 = vpop.f32.mrb[0].mxu0
        %v2135 = vadd.f32 0.0, %v2134
        %v2136 = vpop.f32.mrb[0].mxu0
        %2137 = vmatprep.mubr.bf16.mxu0 %v759
        %2138 = vmatmul.mubr.bf16.gmra.mrb[0].mxu0 %v758
        %v2139 = vpop.f32.mrb[0].mxu0
        %v2140 = vadd.f32 0.0, %v2139
        %v2141 = vpop.f32.mrb[0].mxu0
        %v2142 = vpop.f32.mrb[0].mxu0
        %v2143 = vadd.f32 0.0, %v2142
        %v2144 = vpop.f32.mrb[0].mxu0
        %2145 = vmatprep.mubr.bf16.mxu0 %v762
        %2146 = vmatmul.mubr.bf16.gmra.mrb[0].mxu0 %v761
        %v2147 = vpop.f32.mrb[0].mxu0
        %v2148 = vadd.f32 0.0, %v2147
        %v2149 = vpop.f32.mrb[0].mxu0
        %v2150 = vpop.f32.mrb[0].mxu0
        %v2151 = vadd.f32 0.0, %v2150
        %v2152 = vpop.f32.mrb[0].mxu0
        %2153 = vmatprep.mubr.bf16.mxu0 %v765
        %2154 = vmatmul.mubr.bf16.gmra.mrb[0].mxu0 %v764
        %v2155 = vpop.f32.mrb[0].mxu0
        %v2156 = vadd.f32 0.0, %v2155
        %v2157 = vpop.f32.mrb[0].mxu0
        %v2158 = vpop.f32.mrb[0].mxu0
        %v2159 = vadd.f32 0.0, %v2158
        %v2160 = vpop.f32.mrb[0].mxu0
        %2161 = vmatprep.mubr.bf16.mxu0 %v1872
        %2162 = vmatmul.mubr.bf16.gmra.mrb[0].mxu0 %v1871
        %v2163 = vpop.f32.mrb[0].mxu0
        %v2164 = vadd.f32 0.0, %v2163
        %v2165 = vpop.f32.mrb[0].mxu0
        %v2166 = vpop.f32.mrb[0].mxu0
        %v2167 = vadd.f32 0.0, %v2166
        %v2168 = vpop.f32.mrb[0].mxu0
        %2169 = vmatprep.mubr.bf16.mxu0 %v771
        %2170 = vmatmul.mubr.bf16.gmra.mrb[0].mxu0 %v770
        %v2171 = vpop.f32.mrb[0].mxu0
        %v2172 = vadd.f32 0.0, %v2171
        %v2173 = vpop.f32.mrb[0].mxu0
        %v2174 = vpop.f32.mrb[0].mxu0
        %v2175 = vadd.f32 0.0, %v2174
        %v2176 = vpop.f32.mrb[0].mxu0
        %2177 = vmatprep.mubr.bf16.mxu0 %v774
        %2178 = vmatmul.mubr.bf16.gmra.mrb[0].mxu0 %v773
        %v2179 = vpop.f32.mrb[0].mxu0
        %v2180 = vadd.f32 0.0, %v2179
        %v2181 = vpop.f32.mrb[0].mxu0
        %v2182 = vpop.f32.mrb[0].mxu0
        %v2183 = vadd.f32 0.0, %v2182
        %v2184 = vpop.f32.mrb[0].mxu0
        %2185 = vmatprep.mubr.bf16.mxu0 %v777
        %2186 = vmatmul.mubr.bf16.gmra.mrb[0].mxu0 %v776
        %v2187 = vpop.f32.mrb[0].mxu0
        %v2188 = vadd.f32 0.0, %v2187
        %v2189 = vpop.f32.mrb[0].mxu0
        %v2190 = vpop.f32.mrb[0].mxu0
        %v2191 = vadd.f32 0.0, %v2190
        %v2192 = vpop.f32.mrb[0].mxu0
        %2193 = vmatprep.mubr.bf16.mxu0 %v1875
        %2194 = vmatmul.mubr.bf16.gmra.mrb[0].mxu0 %v1874
        %v2195 = vpop.f32.mrb[0].mxu0
        %v2196 = vadd.f32 0.0, %v2195
        %v2197 = vpop.f32.mrb[0].mxu0
        %v2198 = vpop.f32.mrb[0].mxu0
        %v2199 = vadd.f32 0.0, %v2198
        %v2200 = vpop.f32.mrb[0].mxu0
        %2201 = vmatprep.mubr.bf16.mxu0 %v783
        %2202 = vmatmul.mubr.bf16.gmra.mrb[0].mxu0 %v782
        %v2203 = vpop.f32.mrb[0].mxu0
        %v2204 = vadd.f32 0.0, %v2203
        %v2205 = vpop.f32.mrb[0].mxu0
        %v2206 = vpop.f32.mrb[0].mxu0
        %v2207 = vadd.f32 0.0, %v2206
        %v2208 = vpop.f32.mrb[0].mxu0
        %2209 = vmatprep.mubr.bf16.mxu0 %v786
        %2210 = vmatmul.mubr.bf16.gmra.mrb[0].mxu0 %v785
        %v2211 = vpop.f32.mrb[0].mxu0
        %v2212 = vadd.f32 0.0, %v2211
        %v2213 = vpop.f32.mrb[0].mxu0
        %v2214 = vpop.f32.mrb[0].mxu0
        %v2215 = vadd.f32 0.0, %v2214
        %v2216 = vpop.f32.mrb[0].mxu0
        %2217 = vmatprep.mubr.bf16.mxu0 %v789
        %2218 = vmatmul.mubr.bf16.gmra.mrb[0].mxu0 %v788
        %v2219 = vpop.f32.mrb[0].mxu0
        %v2220 = vadd.f32 0.0, %v2219
        %v2221 = vpop.f32.mrb[0].mxu0
        %v2222 = vpop.f32.mrb[0].mxu0
        %v2223 = vadd.f32 0.0, %v2222
        %v2224 = vpop.f32.mrb[0].mxu0
        %2225 = vmatprep.mubr.bf16.mxu0 %v1878
        %2226 = vmatmul.mubr.bf16.gmra.mrb[0].mxu0 %v1877
        %v2227 = vpop.f32.mrb[0].mxu0
        %v2228 = vadd.f32 0.0, %v2227
        %v2229 = vpop.f32.mrb[0].mxu0
        %v2230 = vpop.f32.mrb[0].mxu0
        %v2231 = vadd.f32 0.0, %v2230
        %v2232 = vpop.f32.mrb[0].mxu0
        %2233 = vdwg.mxu0
        %2234 = vmatprep.subr.bf16.mxu0 0
        %2235 = vmatpush1.bf16.msra.mxu0 %v2041
        %2236 = vmatprep.subr.bf16.mxu0 0
        %2237 = vmatpush1.bf16.msra.mxu0 %v2042
        %2238 = vmatprep.subr.bf16.mxu0 0
        %2239 = vmatpush1.bf16.msra.mxu0 %v2043
        %2240 = vmatprep.subr.bf16.mxu0 0
        %2241 = vmatpush1.bf16.msra.mxu0 %v2044
        %2242 = vmatprep.subr.bf16.mxu0 0
        %2243 = vmatpush1.bf16.msra.mxu0 %v2045
        %2244 = vmatprep.subr.bf16.mxu0 0
        %2245 = vmatpush1.bf16.msra.mxu0 %v2046
        %2246 = vmatprep.subr.bf16.mxu0 0
        %2247 = vmatpush1.bf16.msra.mxu0 %v2047
        %2248 = vmatprep.subr.bf16.mxu0 0
        %2249 = vmatpush1.bf16.msra.mxu0 %v2048
        %2250 = vmatprep.subr.bf16.mxu0 0
        %2251 = vmatpush1.bf16.msra.mxu0 0
        %2252 = vmatprep.subr.bf16.mxu0 0
        %2253 = vmatpush1.bf16.msra.mxu0 0
        %2254 = vmatprep.subr.bf16.mxu0 0
        %2255 = vmatpush1.bf16.msra.mxu0 0
        %2256 = vmatprep.subr.bf16.mxu0 0
        %2257 = vmatpush1.bf16.msra.mxu0 0
        %2258 = vmatprep.subr.bf16.mxu0 0
        %2259 = vmatpush1.bf16.msra.mxu0 0
        %2260 = vmatprep.subr.bf16.mxu0 0
        %2261 = vmatpush1.bf16.msra.mxu0 0
        %2262 = vmatprep.subr.bf16.mxu0 0
        %2263 = vmatpush1.bf16.msra.mxu0 0
        %2264 = vmatprep.subr.bf16.mxu0 0
        %2265 = vmatpush1.bf16.msra.mxu0 0
        %2266 = vmatprep.mubr.bf16.mxu0 0
        %2267 = vmatmul.mubr.bf16.gmra.mrb[0].mxu0 %v748
        %v2268 = vpop.f32.mrb[0].mxu0
        %v2269 = vadd.f32 %v2108, %v2268
        %v2270 = vpop.f32.mrb[0].mxu0
        %v2271 = vpop.f32.mrb[0].mxu0
        %v2272 = vadd.f32 %v2111, %v2271
        %v2273 = vpop.f32.mrb[0].mxu0
        %2274 = vmatprep.mubr.bf16.mxu0 0
        %2275 = vmatmul.mubr.bf16.gmra.mrb[0].mxu0 %v751
        %v2276 = vpop.f32.mrb[0].mxu0
        %v2277 = vadd.f32 %v2116, %v2276
        %v2278 = vpop.f32.mrb[0].mxu0
        %v2279 = vpop.f32.mrb[0].mxu0
        %v2280 = vadd.f32 %v2119, %v2279
        %v2281 = vpop.f32.mrb[0].mxu0
        %2282 = vmatprep.mubr.bf16.mxu0 0
        %2283 = vmatmul.mubr.bf16.gmra.mrb[0].mxu0 %v754
        %v2284 = vpop.f32.mrb[0].mxu0
        %v2285 = vadd.f32 %v2124, %v2284
        %v2286 = vpop.f32.mrb[0].mxu0
        %v2287 = vpop.f32.mrb[0].mxu0
        %v2288 = vadd.f32 %v2127, %v2287
        %v2289 = vpop.f32.mrb[0].mxu0
        %2290 = vmatprep.mubr.bf16.mxu0 0
        %2291 = vmatmul.mubr.bf16.gmra.mrb[0].mxu0 %v1870
        %v2292 = vpop.f32.mrb[0].mxu0
        %v2293 = vadd.f32 %v2132, %v2292
        %v2294 = vpop.f32.mrb[0].mxu0
        %v2295 = vpop.f32.mrb[0].mxu0
        %v2296 = vadd.f32 %v2135, %v2295
        %v2297 = vpop.f32.mrb[0].mxu0
        %2298 = vmatprep.mubr.bf16.mxu0 0
        %2299 = vmatmul.mubr.bf16.gmra.mrb[0].mxu0 %v760
        %v2300 = vpop.f32.mrb[0].mxu0
        %v2301 = vadd.f32 %v2140, %v2300
        %v2302 = vpop.f32.mrb[0].mxu0
        %v2303 = vpop.f32.mrb[0].mxu0
        %v2304 = vadd.f32 %v2143, %v2303
        %v2305 = vpop.f32.mrb[0].mxu0
        %2306 = vmatprep.mubr.bf16.mxu0 0
        %2307 = vmatmul.mubr.bf16.gmra.mrb[0].mxu0 %v763
        %v2308 = vpop.f32.mrb[0].mxu0
        %v2309 = vadd.f32 %v2148, %v2308
        %v2310 = vpop.f32.mrb[0].mxu0
        %v2311 = vpop.f32.mrb[0].mxu0
        %v2312 = vadd.f32 %v2151, %v2311
        %v2313 = vpop.f32.mrb[0].mxu0
        %2314 = vmatprep.mubr.bf16.mxu0 0
        %2315 = vmatmul.mubr.bf16.gmra.mrb[0].mxu0 %v766
        %v2316 = vpop.f32.mrb[0].mxu0
        %v2317 = vadd.f32 %v2156, %v2316
        %v2318 = vpop.f32.mrb[0].mxu0
        %v2319 = vpop.f32.mrb[0].mxu0
        %v2320 = vadd.f32 %v2159, %v2319
        %v2321 = vpop.f32.mrb[0].mxu0
        %2322 = vmatprep.mubr.bf16.mxu0 0
        %2323 = vmatmul.mubr.bf16.gmra.mrb[0].mxu0 %v1873
        %v2324 = vpop.f32.mrb[0].mxu0
        %v2325 = vadd.f32 %v2164, %v2324
        %v2326 = vpop.f32.mrb[0].mxu0
        %v2327 = vpop.f32.mrb[0].mxu0
        %v2328 = vadd.f32 %v2167, %v2327
        %v2329 = vpop.f32.mrb[0].mxu0
        %2330 = vmatprep.mubr.bf16.mxu0 0
        %2331 = vmatmul.mubr.bf16.gmra.mrb[0].mxu0 %v772
        %v2332 = vpop.f32.mrb[0].mxu0
        %v2333 = vadd.f32 %v2172, %v2332
        %v2334 = vpop.f32.mrb[0].mxu0
        %v2335 = vpop.f32.mrb[0].mxu0
        %v2336 = vadd.f32 %v2175, %v2335
        %v2337 = vpop.f32.mrb[0].mxu0
        %2338 = vmatprep.mubr.bf16.mxu0 0
        %2339 = vmatmul.mubr.bf16.gmra.mrb[0].mxu0 %v775
        %v2340 = vpop.f32.mrb[0].mxu0
        %v2341 = vadd.f32 %v2180, %v2340
        %v2342 = vpop.f32.mrb[0].mxu0
        %v2343 = vpop.f32.mrb[0].mxu0
        %v2344 = vadd.f32 %v2183, %v2343
        %v2345 = vpop.f32.mrb[0].mxu0
        %2346 = vmatprep.mubr.bf16.mxu0 0
        %2347 = vmatmul.mubr.bf16.gmra.mrb[0].mxu0 %v778
        %v2348 = vpop.f32.mrb[0].mxu0
        %v2349 = vadd.f32 %v2188, %v2348
        %v2350 = vpop.f32.mrb[0].mxu0
        %v2351 = vpop.f32.mrb[0].mxu0
        %v2352 = vadd.f32 %v2191, %v2351
        %v2353 = vpop.f32.mrb[0].mxu0
        %2354 = vmatprep.mubr.bf16.mxu0 0
        %2355 = vmatmul.mubr.bf16.gmra.mrb[0].mxu0 %v1876
        %v2356 = vpop.f32.mrb[0].mxu0
        %v2357 = vadd.f32 %v2196, %v2356
        %v2358 = vpop.f32.mrb[0].mxu0
        %v2359 = vpop.f32.mrb[0].mxu0
        %v2360 = vadd.f32 %v2199, %v2359
        %v2361 = vpop.f32.mrb[0].mxu0
        %2362 = vmatprep.mubr.bf16.mxu0 0
        %2363 = vmatmul.mubr.bf16.gmra.mrb[0].mxu0 %v784
        %v2364 = vpop.f32.mrb[0].mxu0
        %v2365 = vadd.f32 %v2204, %v2364
        %v2366 = vpop.f32.mrb[0].mxu0
        %v2367 = vpop.f32.mrb[0].mxu0
        %v2368 = vadd.f32 %v2207, %v2367
        %v2369 = vpop.f32.mrb[0].mxu0
        %2370 = vmatprep.mubr.bf16.mxu0 0
        %2371 = vmatmul.mubr.bf16.gmra.mrb[0].mxu0 %v787
        %v2372 = vpop.f32.mrb[0].mxu0
        %v2373 = vadd.f32 %v2212, %v2372
        %v2374 = vpop.f32.mrb[0].mxu0
        %v2375 = vpop.f32.mrb[0].mxu0
        %v2376 = vadd.f32 %v2215, %v2375
        %v2377 = vpop.f32.mrb[0].mxu0
        %2378 = vmatprep.mubr.bf16.mxu0 0
        %2379 = vmatmul.mubr.bf16.gmra.mrb[0].mxu0 %v790
        %v2380 = vpop.f32.mrb[0].mxu0
        %v2381 = vadd.f32 %v2220, %v2380
        %v2382 = vpop.f32.mrb[0].mxu0
        %v2383 = vpop.f32.mrb[0].mxu0
        %v2384 = vadd.f32 %v2223, %v2383
        %v2385 = vpop.f32.mrb[0].mxu0
        %2386 = vmatprep.mubr.bf16.mxu0 0
        %2387 = vmatmul.mubr.bf16.gmra.mrb[0].mxu0 %v1879
        %v2388 = vpop.f32.mrb[0].mxu0
        %v2389 = vadd.f32 %v2228, %v2388
        %v2390 = vpop.f32.mrb[0].mxu0
        %v2391 = vpop.f32.mrb[0].mxu0
        %v2392 = vadd.f32 %v2231, %v2391
        %v2393 = vpop.f32.mrb[0].mxu0
        %2394 = vdwg.mxu0
        %v2395 = vadd.f32 %v1742, %v2269
        %v2396 = vadd.f32 %v1745, %v2272
        %v2397 = vadd.f32 %v1750, %v2277
        %v2398 = vadd.f32 %v1753, %v2280
        %v2399 = vadd.f32 %v1758, %v2285
        %v2400 = vadd.f32 %v1761, %v2288
        %v2401 = vadd.f32 %v1766, %v2293
        %v2402 = vadd.f32 %v1769, %v2296
        %v2403 = vadd.f32 %v1774, %v2301
        %v2404 = vadd.f32 %v1777, %v2304
        %v2405 = vadd.f32 %v1782, %v2309
        %v2406 = vadd.f32 %v1785, %v2312
        %v2407 = vadd.f32 %v1790, %v2317
        %v2408 = vadd.f32 %v1793, %v2320
        %v2409 = vadd.f32 %v1798, %v2325
        %v2410 = vadd.f32 %v1801, %v2328
        %v2411 = vadd.f32 %v1806, %v2333
        %v2412 = vadd.f32 %v1809, %v2336
        %v2413 = vadd.f32 %v1814, %v2341
        %v2414 = vadd.f32 %v1817, %v2344
        %v2415 = vadd.f32 %v1822, %v2349
        %v2416 = vadd.f32 %v1825, %v2352
        %v2417 = vadd.f32 %v1830, %v2357
        %v2418 = vadd.f32 %v1833, %v2360
        %v2419 = vadd.f32 %v1838, %v2365
        %v2420 = vadd.f32 %v1841, %v2368
        %v2421 = vadd.f32 %v1846, %v2373
        %v2422 = vadd.f32 %v1849, %v2376
        %v2423 = vadd.f32 %v1854, %v2381
        %v2424 = vadd.f32 %v1857, %v2384
        %v2425 = vadd.f32 %v1862, %v2389
        %v2426 = vadd.f32 %v1865, %v2392
        %v2427 = vpack.c.bf16 %v629, %v596
        %v2428 = vpack.c.bf16 %v537, 0.0
        %v2429 = vpack.c.bf16 %v727, %v694
        %v2430 = vpack.c.bf16 %v631, %v630
        %v2431 = vpack.c.bf16 %v539, %v538
        %v2432 = vpack.c.bf16 %v729, %v728
        %v2433 = vpack.c.bf16 %v633, %v632
        %v2434 = vpack.c.bf16 %v541, %v540
        %v2435 = vpack.c.bf16 %v731, %v730
        %v2436 = vpack.c.bf16 %v635, %v634
        %v2437 = vpack.c.bf16 %v543, %v542
        %v2438 = vpack.c.bf16 %v733, %v732
        %s2439 = scalar_lea.vmem [#allocation8], 576
        %v2440 = vld [vmem:[%s2439] sm:$0xf]
        %v2441 = vld [vmem:[%s2439 + $0x4] sm:$0xf]
        %v2442 = vld [vmem:[%s2439 + $0x8] sm:$0xf]
        %v2443 = vld [vmem:[%s2439 + $0xc] sm:$0xf]
        %v2444 = vld [vmem:[%s2439 + $0x10] sm:$0xf]
        %v2445 = vld [vmem:[%s2439 + $0x14] sm:$0xf]
        %v2446 = vld [vmem:[%s2439 + $0x18] sm:$0xf]
        %v2447 = vld [vmem:[%s2439 + $0x1c] sm:$0xf]
        %v2448 = vld [vmem:[%s2439 + $0x20] sm:$0xf]
        %v2449 = vld [vmem:[%s2439 + $0x24] sm:$0xf]
        %v2450 = vld [vmem:[%s2439 + $0x28] sm:$0xf]
        %v2451 = vld [vmem:[%s2439 + $0x2c] sm:$0xf]
        %v2452 = vld [vmem:[%s2439 + $0x30] sm:$0xf]
        %v2453 = vld [vmem:[%s2439 + $0x34] sm:$0xf]
        %v2454 = vld [vmem:[%s2439 + $0x38] sm:$0xf]
        %v2455 = vld [vmem:[%s2439 + $0x3c] sm:$0xf]
        %v2456 = vld [vmem:[%s2439 + $0x40] sm:$0xf]
        %v2457 = vld [vmem:[%s2439 + $0x44] sm:$0xf]
        %v2458 = vld [vmem:[%s2439 + $0x48] sm:$0xf]
        %v2459 = vld [vmem:[%s2439 + $0x4c] sm:$0xf]
        %v2460 = vld [vmem:[%s2439 + $0x50] sm:$0xf]
        %v2461 = vld [vmem:[%s2439 + $0x54] sm:$0xf]
        %v2462 = vld [vmem:[%s2439 + $0x58] sm:$0xf]
        %v2463 = vld [vmem:[%s2439 + $0x5c] sm:$0xf]
        %v2464 = vld [vmem:[%s2439 + $0x60] sm:$0xf]
        %v2465 = vld [vmem:[%s2439 + $0x64] sm:$0xf]
        %v2466 = vld [vmem:[%s2439 + $0x68] sm:$0xf]
        %v2467 = vld [vmem:[%s2439 + $0x6c] sm:$0xf]
        %v2468 = vld [vmem:[%s2439 + $0x70] sm:$0xf]
        %v2469 = vld [vmem:[%s2439 + $0x74] sm:$0xf]
        %v2470 = vld [vmem:[%s2439 + $0x78] sm:$0xf]
        %v2471 = vld [vmem:[%s2439 + $0x7c] sm:$0xf]
        %v2472 = vld [vmem:[%s2439 + $0x80] sm:$0xf]
        %v2473 = vld [vmem:[%s2439 + $0x84] sm:$0xf]
        %v2474 = vld [vmem:[%s2439 + $0x88] sm:$0xf]
        %v2475 = vld [vmem:[%s2439 + $0x8c] sm:$0xf]
        %v2476 = vld [vmem:[%s2439 + $0x90] sm:$0xf]
        %v2477 = vld [vmem:[%s2439 + $0x94] sm:$0xf]
        %v2478 = vld [vmem:[%s2439 + $0x98] sm:$0xf]
        %v2479 = vld [vmem:[%s2439 + $0x9c] sm:$0xf]
        %v2480 = vld [vmem:[%s2439 + $0xa0] sm:$0xf]
        %v2481 = vld [vmem:[%s2439 + $0xa4] sm:$0xf]
        %v2482 = vld [vmem:[%s2439 + $0xa8] sm:$0xf]
        %v2483 = vld [vmem:[%s2439 + $0xac] sm:$0xf]
        %v2484 = vld [vmem:[%s2439 + $0xb0] sm:$0xf]
        %v2485 = vld [vmem:[%s2439 + $0xb4] sm:$0xf]
        %v2486 = vld [vmem:[%s2439 + $0xb8] sm:$0xf]
        %v2487 = vld [vmem:[%s2439 + $0xbc] sm:$0xf]
        %v2536 = vunpack.c.l.b16 %v2440
        %v2537 = vunpack.c.l.b16 %v2441
        %v2538 = vunpack.c.l.b16 %v2442
        %v2539 = vunpack.c.l.b16 %v2443
        %v2540 = vunpack.c.l.b16 %v2444
        %v2541 = vunpack.c.l.b16 %v2445
        %v2542 = vunpack.c.l.b16 %v2446
        %v2543 = vunpack.c.l.b16 %v2447
        %v2544 = vunpack.c.l.b16 %v2448
        %v2545 = vunpack.c.l.b16 %v2449
        %v2546 = vunpack.c.l.b16 %v2450
        %v2547 = vunpack.c.l.b16 %v2451
        %v2548 = vunpack.c.l.b16 %v2452
        %v2549 = vunpack.c.l.b16 %v2453
        %v2550 = vunpack.c.l.b16 %v2454
        %v2551 = vunpack.c.l.b16 %v2455
        %v2552 = vunpack.c.l.b16 %v2456
        %v2553 = vunpack.c.l.b16 %v2457
        %v2554 = vunpack.c.l.b16 %v2458
        %v2555 = vunpack.c.l.b16 %v2459
        %v2556 = vunpack.c.l.b16 %v2460
        %v2557 = vunpack.c.l.b16 %v2461
        %v2558 = vunpack.c.l.b16 %v2462
        %v2559 = vunpack.c.l.b16 %v2463
        %v2560 = vunpack.c.l.b16 %v2464
        %v2561 = vunpack.c.l.b16 %v2465
        %v2562 = vunpack.c.l.b16 %v2466
        %v2563 = vunpack.c.l.b16 %v2467
        %v2564 = vunpack.c.l.b16 %v2468
        %v2565 = vunpack.c.l.b16 %v2469
        %v2566 = vunpack.c.l.b16 %v2470
        %v2567 = vunpack.c.l.b16 %v2471
        %v2568 = vunpack.c.l.b16 %v2472
        %v2569 = vunpack.c.l.b16 %v2473
        %v2570 = vunpack.c.l.b16 %v2474
        %v2571 = vunpack.c.l.b16 %v2475
        %v2572 = vunpack.c.l.b16 %v2476
        %v2573 = vunpack.c.l.b16 %v2477
        %v2574 = vunpack.c.l.b16 %v2478
        %v2575 = vunpack.c.l.b16 %v2479
        %v2576 = vunpack.c.l.b16 %v2480
        %v2577 = vunpack.c.l.b16 %v2481
        %v2578 = vunpack.c.l.b16 %v2482
        %v2579 = vunpack.c.l.b16 %v2483
        %v2580 = vunpack.c.l.b16 %v2484
        %v2581 = vunpack.c.l.b16 %v2485
        %v2582 = vunpack.c.l.b16 %v2486
        %v2583 = vunpack.c.l.b16 %v2487
        %v2584 = vpack.c.b16 %v2537, %v2536
        %v2585 = vpack.c.b16 %v2539, %v2538
        %v2586 = vpack.c.b16 %v2541, %v2540
        %v2587 = vpack.c.b16 %v2543, %v2542
        %v2588 = vpack.c.b16 %v2545, %v2544
        %v2589 = vpack.c.b16 %v2547, %v2546
        %v2590 = vpack.c.b16 %v2549, %v2548
        %v2591 = vpack.c.b16 %v2551, %v2550
        %v2592 = vpack.c.b16 %v2553, %v2552
        %v2593 = vpack.c.b16 %v2555, %v2554
        %v2594 = vpack.c.b16 %v2557, %v2556
        %v2595 = vpack.c.b16 %v2559, %v2558
        %v2596 = vpack.c.b16 %v2561, %v2560
        %v2597 = vpack.c.b16 %v2563, %v2562
        %v2598 = vpack.c.b16 %v2565, %v2564
        %v2599 = vpack.c.b16 %v2567, %v2566
        %v2600 = vpack.c.b16 %v2569, %v2568
        %v2601 = vpack.c.b16 %v2571, %v2570
        %v2602 = vpack.c.b16 %v2573, %v2572
        %v2603 = vpack.c.b16 %v2575, %v2574
        %v2604 = vpack.c.b16 %v2577, %v2576
        %v2605 = vpack.c.b16 %v2579, %v2578
        %v2606 = vpack.c.b16 %v2581, %v2580
        %v2607 = vpack.c.b16 %v2583, %v2582
        %2632 = vmatprep.subr.bf16.mxu0 0
        %2633 = vmatpush1.bf16.msra.mxu0 %v2584
        %2634 = vmatprep.subr.bf16.mxu0 0
        %2635 = vmatpush1.bf16.msra.mxu0 %v2585
        %2636 = vmatprep.subr.bf16.mxu0 0
        %2637 = vmatpush1.bf16.msra.mxu0 %v2586
        %2638 = vmatprep.subr.bf16.mxu0 0
        %2639 = vmatpush1.bf16.msra.mxu0 %v2587
        %2640 = vmatprep.subr.bf16.mxu0 0
        %2641 = vmatpush1.bf16.msra.mxu0 %v2588
        %2642 = vmatprep.subr.bf16.mxu0 0
        %2643 = vmatpush1.bf16.msra.mxu0 %v2589
        %2644 = vmatprep.subr.bf16.mxu0 0
        %2645 = vmatpush1.bf16.msra.mxu0 %v2590
        %2646 = vmatprep.subr.bf16.mxu0 0
        %2647 = vmatpush1.bf16.msra.mxu0 %v2591
        %2648 = vmatprep.subr.bf16.mxu0 0
        %2649 = vmatpush1.bf16.msra.mxu0 %v2592
        %2650 = vmatprep.subr.bf16.mxu0 0
        %2651 = vmatpush1.bf16.msra.mxu0 %v2593
        %2652 = vmatprep.subr.bf16.mxu0 0
        %2653 = vmatpush1.bf16.msra.mxu0 %v2594
        %2654 = vmatprep.subr.bf16.mxu0 0
        %2655 = vmatpush1.bf16.msra.mxu0 %v2595
        %2656 = vmatprep.subr.bf16.mxu0 0
        %2657 = vmatpush1.bf16.msra.mxu0 %v2596
        %2658 = vmatprep.subr.bf16.mxu0 0
        %2659 = vmatpush1.bf16.msra.mxu0 %v2597
        %2660 = vmatprep.subr.bf16.mxu0 0
        %2661 = vmatpush1.bf16.msra.mxu0 %v2598
        %2662 = vmatprep.subr.bf16.mxu0 0
        %2663 = vmatpush1.bf16.msra.mxu0 %v2599
        %2664 = vmatprep.mubr.bf16.mxu0 %v756
        %2665 = vmatmul.mubr.bf16.gmra.mrb[0].mxu0 %v755
        %v2666 = vpop.f32.mrb[0].mxu0
        %v2667 = vadd.f32 0.0, %v2666
        %v2668 = vpop.f32.mrb[0].mxu0
        %v2669 = vpop.f32.mrb[0].mxu0
        %v2670 = vadd.f32 0.0, %v2669
        %v2671 = vpop.f32.mrb[0].mxu0
        %2672 = vmatprep.mubr.bf16.mxu0 %v759
        %2673 = vmatmul.mubr.bf16.gmra.mrb[0].mxu0 %v758
        %v2674 = vpop.f32.mrb[0].mxu0
        %v2675 = vadd.f32 0.0, %v2674
        %v2676 = vpop.f32.mrb[0].mxu0
        %v2677 = vpop.f32.mrb[0].mxu0
        %v2678 = vadd.f32 0.0, %v2677
        %v2679 = vpop.f32.mrb[0].mxu0
        %2680 = vmatprep.mubr.bf16.mxu0 %v762
        %2681 = vmatmul.mubr.bf16.gmra.mrb[0].mxu0 %v761
        %v2682 = vpop.f32.mrb[0].mxu0
        %v2683 = vadd.f32 0.0, %v2682
        %v2684 = vpop.f32.mrb[0].mxu0
        %v2685 = vpop.f32.mrb[0].mxu0
        %v2686 = vadd.f32 0.0, %v2685
        %v2687 = vpop.f32.mrb[0].mxu0
        %2688 = vmatprep.mubr.bf16.mxu0 %v765
        %2689 = vmatmul.mubr.bf16.gmra.mrb[0].mxu0 %v764
        %v2690 = vpop.f32.mrb[0].mxu0
        %v2691 = vadd.f32 0.0, %v2690
        %v2692 = vpop.f32.mrb[0].mxu0
        %v2693 = vpop.f32.mrb[0].mxu0
        %v2694 = vadd.f32 0.0, %v2693
        %v2695 = vpop.f32.mrb[0].mxu0
        %2696 = vmatprep.mubr.bf16.mxu0 %v768
        %2697 = vmatmul.mubr.bf16.gmra.mrb[0].mxu0 %v767
        %v2698 = vpop.f32.mrb[0].mxu0
        %v2699 = vadd.f32 0.0, %v2698
        %v2700 = vpop.f32.mrb[0].mxu0
        %v2701 = vpop.f32.mrb[0].mxu0
        %v2702 = vadd.f32 0.0, %v2701
        %v2703 = vpop.f32.mrb[0].mxu0
        %2704 = vmatprep.mubr.bf16.mxu0 %v771
        %2705 = vmatmul.mubr.bf16.gmra.mrb[0].mxu0 %v770
        %v2706 = vpop.f32.mrb[0].mxu0
        %v2707 = vadd.f32 0.0, %v2706
        %v2708 = vpop.f32.mrb[0].mxu0
        %v2709 = vpop.f32.mrb[0].mxu0
        %v2710 = vadd.f32 0.0, %v2709
        %v2711 = vpop.f32.mrb[0].mxu0
        %2712 = vmatprep.mubr.bf16.mxu0 %v774
        %2713 = vmatmul.mubr.bf16.gmra.mrb[0].mxu0 %v773
        %v2714 = vpop.f32.mrb[0].mxu0
        %v2715 = vadd.f32 0.0, %v2714
        %v2716 = vpop.f32.mrb[0].mxu0
        %v2717 = vpop.f32.mrb[0].mxu0
        %v2718 = vadd.f32 0.0, %v2717
        %v2719 = vpop.f32.mrb[0].mxu0
        %2720 = vmatprep.mubr.bf16.mxu0 %v777
        %2721 = vmatmul.mubr.bf16.gmra.mrb[0].mxu0 %v776
        %v2722 = vpop.f32.mrb[0].mxu0
        %v2723 = vadd.f32 0.0, %v2722
        %v2724 = vpop.f32.mrb[0].mxu0
        %v2725 = vpop.f32.mrb[0].mxu0
        %v2726 = vadd.f32 0.0, %v2725
        %v2727 = vpop.f32.mrb[0].mxu0
        %2728 = vmatprep.mubr.bf16.mxu0 %v780
        %2729 = vmatmul.mubr.bf16.gmra.mrb[0].mxu0 %v779
        %v2730 = vpop.f32.mrb[0].mxu0
        %v2731 = vadd.f32 0.0, %v2730
        %v2732 = vpop.f32.mrb[0].mxu0
        %v2733 = vpop.f32.mrb[0].mxu0
        %v2734 = vadd.f32 0.0, %v2733
        %v2735 = vpop.f32.mrb[0].mxu0
        %2736 = vmatprep.mubr.bf16.mxu0 %v783
        %2737 = vmatmul.mubr.bf16.gmra.mrb[0].mxu0 %v782
        %v2738 = vpop.f32.mrb[0].mxu0
        %v2739 = vadd.f32 0.0, %v2738
        %v2740 = vpop.f32.mrb[0].mxu0
        %v2741 = vpop.f32.mrb[0].mxu0
        %v2742 = vadd.f32 0.0, %v2741
        %v2743 = vpop.f32.mrb[0].mxu0
        %2744 = vmatprep.mubr.bf16.mxu0 %v786
        %2745 = vmatmul.mubr.bf16.gmra.mrb[0].mxu0 %v785
        %v2746 = vpop.f32.mrb[0].mxu0
        %v2747 = vadd.f32 0.0, %v2746
        %v2748 = vpop.f32.mrb[0].mxu0
        %v2749 = vpop.f32.mrb[0].mxu0
        %v2750 = vadd.f32 0.0, %v2749
        %v2751 = vpop.f32.mrb[0].mxu0
        %2752 = vmatprep.mubr.bf16.mxu0 %v789
        %2753 = vmatmul.mubr.bf16.gmra.mrb[0].mxu0 %v788
        %v2754 = vpop.f32.mrb[0].mxu0
        %v2755 = vadd.f32 0.0, %v2754
        %v2756 = vpop.f32.mrb[0].mxu0
        %v2757 = vpop.f32.mrb[0].mxu0
        %v2758 = vadd.f32 0.0, %v2757
        %v2759 = vpop.f32.mrb[0].mxu0
        %2760 = vmatprep.mubr.bf16.mxu0 %v2428
        %2761 = vmatmul.mubr.bf16.gmra.mrb[0].mxu0 %v2427
        %v2762 = vpop.f32.mrb[0].mxu0
        %v2763 = vadd.f32 0.0, %v2762
        %v2764 = vpop.f32.mrb[0].mxu0
        %v2765 = vpop.f32.mrb[0].mxu0
        %v2766 = vadd.f32 0.0, %v2765
        %v2767 = vpop.f32.mrb[0].mxu0
        %2768 = vmatprep.mubr.bf16.mxu0 %v2431
        %2769 = vmatmul.mubr.bf16.gmra.mrb[0].mxu0 %v2430
        %v2770 = vpop.f32.mrb[0].mxu0
        %v2771 = vadd.f32 0.0, %v2770
        %v2772 = vpop.f32.mrb[0].mxu0
        %v2773 = vpop.f32.mrb[0].mxu0
        %v2774 = vadd.f32 0.0, %v2773
        %v2775 = vpop.f32.mrb[0].mxu0
        %2776 = vmatprep.mubr.bf16.mxu0 %v2434
        %2777 = vmatmul.mubr.bf16.gmra.mrb[0].mxu0 %v2433
        %v2778 = vpop.f32.mrb[0].mxu0
        %v2779 = vadd.f32 0.0, %v2778
        %v2780 = vpop.f32.mrb[0].mxu0
        %v2781 = vpop.f32.mrb[0].mxu0
        %v2782 = vadd.f32 0.0, %v2781
        %v2783 = vpop.f32.mrb[0].mxu0
        %2784 = vmatprep.mubr.bf16.mxu0 %v2437
        %2785 = vmatmul.mubr.bf16.gmra.mrb[0].mxu0 %v2436
        %v2786 = vpop.f32.mrb[0].mxu0
        %v2787 = vadd.f32 0.0, %v2786
        %v2788 = vpop.f32.mrb[0].mxu0
        %v2789 = vpop.f32.mrb[0].mxu0
        %v2790 = vadd.f32 0.0, %v2789
        %v2791 = vpop.f32.mrb[0].mxu0
        %2792 = vdwg.mxu0
        %2793 = vmatprep.subr.bf16.mxu0 0
        %2794 = vmatpush1.bf16.msra.mxu0 %v2600
        %2795 = vmatprep.subr.bf16.mxu0 0
        %2796 = vmatpush1.bf16.msra.mxu0 %v2601
        %2797 = vmatprep.subr.bf16.mxu0 0
        %2798 = vmatpush1.bf16.msra.mxu0 %v2602
        %2799 = vmatprep.subr.bf16.mxu0 0
        %2800 = vmatpush1.bf16.msra.mxu0 %v2603
        %2801 = vmatprep.subr.bf16.mxu0 0
        %2802 = vmatpush1.bf16.msra.mxu0 %v2604
        %2803 = vmatprep.subr.bf16.mxu0 0
        %2804 = vmatpush1.bf16.msra.mxu0 %v2605
        %2805 = vmatprep.subr.bf16.mxu0 0
        %2806 = vmatpush1.bf16.msra.mxu0 %v2606
        %2807 = vmatprep.subr.bf16.mxu0 0
        %2808 = vmatpush1.bf16.msra.mxu0 %v2607
        %2809 = vmatprep.subr.bf16.mxu0 0
        %2810 = vmatpush1.bf16.msra.mxu0 0
        %2811 = vmatprep.subr.bf16.mxu0 0
        %2812 = vmatpush1.bf16.msra.mxu0 0
        %2813 = vmatprep.subr.bf16.mxu0 0
        %2814 = vmatpush1.bf16.msra.mxu0 0
        %2815 = vmatprep.subr.bf16.mxu0 0
        %2816 = vmatpush1.bf16.msra.mxu0 0
        %2817 = vmatprep.subr.bf16.mxu0 0
        %2818 = vmatpush1.bf16.msra.mxu0 0
        %2819 = vmatprep.subr.bf16.mxu0 0
        %2820 = vmatpush1.bf16.msra.mxu0 0
        %2821 = vmatprep.subr.bf16.mxu0 0
        %2822 = vmatpush1.bf16.msra.mxu0 0
        %2823 = vmatprep.subr.bf16.mxu0 0
        %2824 = vmatpush1.bf16.msra.mxu0 0
        %2825 = vmatprep.mubr.bf16.mxu0 0
        %2826 = vmatmul.mubr.bf16.gmra.mrb[0].mxu0 %v757
        %v2827 = vpop.f32.mrb[0].mxu0
        %v2828 = vadd.f32 %v2667, %v2827
        %v2829 = vpop.f32.mrb[0].mxu0
        %v2830 = vpop.f32.mrb[0].mxu0
        %v2831 = vadd.f32 %v2670, %v2830
        %v2832 = vpop.f32.mrb[0].mxu0
        %2833 = vmatprep.mubr.bf16.mxu0 0
        %2834 = vmatmul.mubr.bf16.gmra.mrb[0].mxu0 %v760
        %v2835 = vpop.f32.mrb[0].mxu0
        %v2836 = vadd.f32 %v2675, %v2835
        %v2837 = vpop.f32.mrb[0].mxu0
        %v2838 = vpop.f32.mrb[0].mxu0
        %v2839 = vadd.f32 %v2678, %v2838
        %v2840 = vpop.f32.mrb[0].mxu0
        %2841 = vmatprep.mubr.bf16.mxu0 0
        %2842 = vmatmul.mubr.bf16.gmra.mrb[0].mxu0 %v763
        %v2843 = vpop.f32.mrb[0].mxu0
        %v2844 = vadd.f32 %v2683, %v2843
        %v2845 = vpop.f32.mrb[0].mxu0
        %v2846 = vpop.f32.mrb[0].mxu0
        %v2847 = vadd.f32 %v2686, %v2846
        %v2848 = vpop.f32.mrb[0].mxu0
        %2849 = vmatprep.mubr.bf16.mxu0 0
        %2850 = vmatmul.mubr.bf16.gmra.mrb[0].mxu0 %v766
        %v2851 = vpop.f32.mrb[0].mxu0
        %v2852 = vadd.f32 %v2691, %v2851
        %v2853 = vpop.f32.mrb[0].mxu0
        %v2854 = vpop.f32.mrb[0].mxu0
        %v2855 = vadd.f32 %v2694, %v2854
        %v2856 = vpop.f32.mrb[0].mxu0
        %2857 = vmatprep.mubr.bf16.mxu0 0
        %2858 = vmatmul.mubr.bf16.gmra.mrb[0].mxu0 %v769
        %v2859 = vpop.f32.mrb[0].mxu0
        %v2860 = vadd.f32 %v2699, %v2859
        %v2861 = vpop.f32.mrb[0].mxu0
        %v2862 = vpop.f32.mrb[0].mxu0
        %v2863 = vadd.f32 %v2702, %v2862
        %v2864 = vpop.f32.mrb[0].mxu0
        %2865 = vmatprep.mubr.bf16.mxu0 0
        %2866 = vmatmul.mubr.bf16.gmra.mrb[0].mxu0 %v772
        %v2867 = vpop.f32.mrb[0].mxu0
        %v2868 = vadd.f32 %v2707, %v2867
        %v2869 = vpop.f32.mrb[0].mxu0
        %v2870 = vpop.f32.mrb[0].mxu0
        %v2871 = vadd.f32 %v2710, %v2870
        %v2872 = vpop.f32.mrb[0].mxu0
        %2873 = vmatprep.mubr.bf16.mxu0 0
        %2874 = vmatmul.mubr.bf16.gmra.mrb[0].mxu0 %v775
        %v2875 = vpop.f32.mrb[0].mxu0
        %v2876 = vadd.f32 %v2715, %v2875
        %v2877 = vpop.f32.mrb[0].mxu0
        %v2878 = vpop.f32.mrb[0].mxu0
        %v2879 = vadd.f32 %v2718, %v2878
        %v2880 = vpop.f32.mrb[0].mxu0
        %2881 = vmatprep.mubr.bf16.mxu0 0
        %2882 = vmatmul.mubr.bf16.gmra.mrb[0].mxu0 %v778
        %v2883 = vpop.f32.mrb[0].mxu0
        %v2884 = vadd.f32 %v2723, %v2883
        %v2885 = vpop.f32.mrb[0].mxu0
        %v2886 = vpop.f32.mrb[0].mxu0
        %v2887 = vadd.f32 %v2726, %v2886
        %v2888 = vpop.f32.mrb[0].mxu0
        %2889 = vmatprep.mubr.bf16.mxu0 0
        %2890 = vmatmul.mubr.bf16.gmra.mrb[0].mxu0 %v781
        %v2891 = vpop.f32.mrb[0].mxu0
        %v2892 = vadd.f32 %v2731, %v2891
        %v2893 = vpop.f32.mrb[0].mxu0
        %v2894 = vpop.f32.mrb[0].mxu0
        %v2895 = vadd.f32 %v2734, %v2894
        %v2896 = vpop.f32.mrb[0].mxu0
        %2897 = vmatprep.mubr.bf16.mxu0 0
        %2898 = vmatmul.mubr.bf16.gmra.mrb[0].mxu0 %v784
        %v2899 = vpop.f32.mrb[0].mxu0
        %v2900 = vadd.f32 %v2739, %v2899
        %v2901 = vpop.f32.mrb[0].mxu0
        %v2902 = vpop.f32.mrb[0].mxu0
        %v2903 = vadd.f32 %v2742, %v2902
        %v2904 = vpop.f32.mrb[0].mxu0
        %2905 = vmatprep.mubr.bf16.mxu0 0
        %2906 = vmatmul.mubr.bf16.gmra.mrb[0].mxu0 %v787
        %v2907 = vpop.f32.mrb[0].mxu0
        %v2908 = vadd.f32 %v2747, %v2907
        %v2909 = vpop.f32.mrb[0].mxu0
        %v2910 = vpop.f32.mrb[0].mxu0
        %v2911 = vadd.f32 %v2750, %v2910
        %v2912 = vpop.f32.mrb[0].mxu0
        %2913 = vmatprep.mubr.bf16.mxu0 0
        %2914 = vmatmul.mubr.bf16.gmra.mrb[0].mxu0 %v790
        %v2915 = vpop.f32.mrb[0].mxu0
        %v2916 = vadd.f32 %v2755, %v2915
        %v2917 = vpop.f32.mrb[0].mxu0
        %v2918 = vpop.f32.mrb[0].mxu0
        %v2919 = vadd.f32 %v2758, %v2918
        %v2920 = vpop.f32.mrb[0].mxu0
        %2921 = vmatprep.mubr.bf16.mxu0 0
        %2922 = vmatmul.mubr.bf16.gmra.mrb[0].mxu0 %v2429
        %v2923 = vpop.f32.mrb[0].mxu0
        %v2924 = vadd.f32 %v2763, %v2923
        %v2925 = vpop.f32.mrb[0].mxu0
        %v2926 = vpop.f32.mrb[0].mxu0
        %v2927 = vadd.f32 %v2766, %v2926
        %v2928 = vpop.f32.mrb[0].mxu0
        %2929 = vmatprep.mubr.bf16.mxu0 0
        %2930 = vmatmul.mubr.bf16.gmra.mrb[0].mxu0 %v2432
        %v2931 = vpop.f32.mrb[0].mxu0
        %v2932 = vadd.f32 %v2771, %v2931
        %v2933 = vpop.f32.mrb[0].mxu0
        %v2934 = vpop.f32.mrb[0].mxu0
        %v2935 = vadd.f32 %v2774, %v2934
        %v2936 = vpop.f32.mrb[0].mxu0
        %2937 = vmatprep.mubr.bf16.mxu0 0
        %2938 = vmatmul.mubr.bf16.gmra.mrb[0].mxu0 %v2435
        %v2939 = vpop.f32.mrb[0].mxu0
        %v2940 = vadd.f32 %v2779, %v2939
        %v2941 = vpop.f32.mrb[0].mxu0
        %v2942 = vpop.f32.mrb[0].mxu0
        %v2943 = vadd.f32 %v2782, %v2942
        %v2944 = vpop.f32.mrb[0].mxu0
        %2945 = vmatprep.mubr.bf16.mxu0 0
        %2946 = vmatmul.mubr.bf16.gmra.mrb[0].mxu0 %v2438
        %v2947 = vpop.f32.mrb[0].mxu0
        %v2948 = vadd.f32 %v2787, %v2947
        %v2949 = vpop.f32.mrb[0].mxu0
        %v2950 = vpop.f32.mrb[0].mxu0
        %v2951 = vadd.f32 %v2790, %v2950
        %v2952 = vpop.f32.mrb[0].mxu0
        %2953 = vdwg.mxu0
        %v2954 = vadd.f32 %v2395, %v2828
        %v2955 = vadd.f32 %v2396, %v2831
        %v2956 = vadd.f32 %v2397, %v2836
        %v2957 = vadd.f32 %v2398, %v2839
        %v2958 = vadd.f32 %v2399, %v2844
        %v2959 = vadd.f32 %v2400, %v2847
        %v2960 = vadd.f32 %v2401, %v2852
        %v2961 = vadd.f32 %v2402, %v2855
        %v2962 = vadd.f32 %v2403, %v2860
        %v2963 = vadd.f32 %v2404, %v2863
        %v2964 = vadd.f32 %v2405, %v2868
        %v2965 = vadd.f32 %v2406, %v2871
        %v2966 = vadd.f32 %v2407, %v2876
        %v2967 = vadd.f32 %v2408, %v2879
        %v2968 = vadd.f32 %v2409, %v2884
        %v2969 = vadd.f32 %v2410, %v2887
        %v2970 = vadd.f32 %v2411, %v2892
        %v2971 = vadd.f32 %v2412, %v2895
        %v2972 = vadd.f32 %v2413, %v2900
        %v2973 = vadd.f32 %v2414, %v2903
        %v2974 = vadd.f32 %v2415, %v2908
        %v2975 = vadd.f32 %v2416, %v2911
        %v2976 = vadd.f32 %v2417, %v2916
        %v2977 = vadd.f32 %v2418, %v2919
        %v2978 = vadd.f32 %v2419, %v2924
        %v2979 = vadd.f32 %v2420, %v2927
        %v2980 = vadd.f32 %v2421, %v2932
        %v2981 = vadd.f32 %v2422, %v2935
        %v2982 = vadd.f32 %v2423, %v2940
        %v2983 = vadd.f32 %v2424, %v2943
        %v2984 = vadd.f32 %v2425, %v2948
        %v2985 = vadd.f32 %v2426, %v2951
        %v2986 = vpack.c.bf16 %v630, %v629
        %v2987 = vpack.c.bf16 %v538, %v537
        %v2988 = vpack.c.bf16 %v728, %v727
        %v2989 = vpack.c.bf16 %v632, %v631
        %v2990 = vpack.c.bf16 %v540, %v539
        %v2991 = vpack.c.bf16 %v730, %v729
        %v2992 = vpack.c.bf16 %v634, %v633
        %v2993 = vpack.c.bf16 %v542, %v541
        %v2994 = vpack.c.bf16 %v732, %v731
        %v2995 = vpack.c.bf16 %v636, %v635
        %v2996 = vpack.c.bf16 %v544, %v543
        %v2997 = vpack.c.bf16 %v734, %v733
        %s2998 = scalar_lea.vmem [#allocation8], 768
        %v2999 = vld [vmem:[%s2998] sm:$0xf]
        %v3000 = vld [vmem:[%s2998 + $0x4] sm:$0xf]
        %v3001 = vld [vmem:[%s2998 + $0x8] sm:$0xf]
        %v3002 = vld [vmem:[%s2998 + $0xc] sm:$0xf]
        %v3003 = vld [vmem:[%s2998 + $0x10] sm:$0xf]
        %v3004 = vld [vmem:[%s2998 + $0x14] sm:$0xf]
        %v3005 = vld [vmem:[%s2998 + $0x18] sm:$0xf]
        %v3006 = vld [vmem:[%s2998 + $0x1c] sm:$0xf]
        %v3007 = vld [vmem:[%s2998 + $0x20] sm:$0xf]
        %v3008 = vld [vmem:[%s2998 + $0x24] sm:$0xf]
        %v3009 = vld [vmem:[%s2998 + $0x28] sm:$0xf]
        %v3010 = vld [vmem:[%s2998 + $0x2c] sm:$0xf]
        %v3011 = vld [vmem:[%s2998 + $0x30] sm:$0xf]
        %v3012 = vld [vmem:[%s2998 + $0x34] sm:$0xf]
        %v3013 = vld [vmem:[%s2998 + $0x38] sm:$0xf]
        %v3014 = vld [vmem:[%s2998 + $0x3c] sm:$0xf]
        %v3015 = vld [vmem:[%s2998 + $0x40] sm:$0xf]
        %v3016 = vld [vmem:[%s2998 + $0x44] sm:$0xf]
        %v3017 = vld [vmem:[%s2998 + $0x48] sm:$0xf]
        %v3018 = vld [vmem:[%s2998 + $0x4c] sm:$0xf]
        %v3019 = vld [vmem:[%s2998 + $0x50] sm:$0xf]
        %v3020 = vld [vmem:[%s2998 + $0x54] sm:$0xf]
        %v3021 = vld [vmem:[%s2998 + $0x58] sm:$0xf]
        %v3022 = vld [vmem:[%s2998 + $0x5c] sm:$0xf]
        %v3023 = vld [vmem:[%s2998 + $0x60] sm:$0xf]
        %v3024 = vld [vmem:[%s2998 + $0x64] sm:$0xf]
        %v3025 = vld [vmem:[%s2998 + $0x68] sm:$0xf]
        %v3026 = vld [vmem:[%s2998 + $0x6c] sm:$0xf]
        %v3027 = vld [vmem:[%s2998 + $0x70] sm:$0xf]
        %v3028 = vld [vmem:[%s2998 + $0x74] sm:$0xf]
        %v3029 = vld [vmem:[%s2998 + $0x78] sm:$0xf]
        %v3030 = vld [vmem:[%s2998 + $0x7c] sm:$0xf]
        %v3031 = vld [vmem:[%s2998 + $0x80] sm:$0xf]
        %v3032 = vld [vmem:[%s2998 + $0x84] sm:$0xf]
        %v3033 = vld [vmem:[%s2998 + $0x88] sm:$0xf]
        %v3034 = vld [vmem:[%s2998 + $0x8c] sm:$0xf]
        %v3035 = vld [vmem:[%s2998 + $0x90] sm:$0xf]
        %v3036 = vld [vmem:[%s2998 + $0x94] sm:$0xf]
        %v3037 = vld [vmem:[%s2998 + $0x98] sm:$0xf]
        %v3038 = vld [vmem:[%s2998 + $0x9c] sm:$0xf]
        %v3039 = vld [vmem:[%s2998 + $0xa0] sm:$0xf]
        %v3040 = vld [vmem:[%s2998 + $0xa4] sm:$0xf]
        %v3041 = vld [vmem:[%s2998 + $0xa8] sm:$0xf]
        %v3042 = vld [vmem:[%s2998 + $0xac] sm:$0xf]
        %v3043 = vld [vmem:[%s2998 + $0xb0] sm:$0xf]
        %v3044 = vld [vmem:[%s2998 + $0xb4] sm:$0xf]
        %v3045 = vld [vmem:[%s2998 + $0xb8] sm:$0xf]
        %v3046 = vld [vmem:[%s2998 + $0xbc] sm:$0xf]
        %v3095 = vunpack.c.l.b16 %v2999
        %v3096 = vunpack.c.l.b16 %v3000
        %v3097 = vunpack.c.l.b16 %v3001
        %v3098 = vunpack.c.l.b16 %v3002
        %v3099 = vunpack.c.l.b16 %v3003
        %v3100 = vunpack.c.l.b16 %v3004
        %v3101 = vunpack.c.l.b16 %v3005
        %v3102 = vunpack.c.l.b16 %v3006
        %v3103 = vunpack.c.l.b16 %v3007
        %v3104 = vunpack.c.l.b16 %v3008
        %v3105 = vunpack.c.l.b16 %v3009
        %v3106 = vunpack.c.l.b16 %v3010
        %v3107 = vunpack.c.l.b16 %v3011
        %v3108 = vunpack.c.l.b16 %v3012
        %v3109 = vunpack.c.l.b16 %v3013
        %v3110 = vunpack.c.l.b16 %v3014
        %v3111 = vunpack.c.l.b16 %v3015
        %v3112 = vunpack.c.l.b16 %v3016
        %v3113 = vunpack.c.l.b16 %v3017
        %v3114 = vunpack.c.l.b16 %v3018
        %v3115 = vunpack.c.l.b16 %v3019
        %v3116 = vunpack.c.l.b16 %v3020
        %v3117 = vunpack.c.l.b16 %v3021
        %v3118 = vunpack.c.l.b16 %v3022
        %v3119 = vunpack.c.l.b16 %v3023
        %v3120 = vunpack.c.l.b16 %v3024
        %v3121 = vunpack.c.l.b16 %v3025
        %v3122 = vunpack.c.l.b16 %v3026
        %v3123 = vunpack.c.l.b16 %v3027
        %v3124 = vunpack.c.l.b16 %v3028
        %v3125 = vunpack.c.l.b16 %v3029
        %v3126 = vunpack.c.l.b16 %v3030
        %v3127 = vunpack.c.l.b16 %v3031
        %v3128 = vunpack.c.l.b16 %v3032
        %v3129 = vunpack.c.l.b16 %v3033
        %v3130 = vunpack.c.l.b16 %v3034
        %v3131 = vunpack.c.l.b16 %v3035
        %v3132 = vunpack.c.l.b16 %v3036
        %v3133 = vunpack.c.l.b16 %v3037
        %v3134 = vunpack.c.l.b16 %v3038
        %v3135 = vunpack.c.l.b16 %v3039
        %v3136 = vunpack.c.l.b16 %v3040
        %v3137 = vunpack.c.l.b16 %v3041
        %v3138 = vunpack.c.l.b16 %v3042
        %v3139 = vunpack.c.l.b16 %v3043
        %v3140 = vunpack.c.l.b16 %v3044
        %v3141 = vunpack.c.l.b16 %v3045
        %v3142 = vunpack.c.l.b16 %v3046
        %v3143 = vpack.c.b16 %v3096, %v3095
        %v3144 = vpack.c.b16 %v3098, %v3097
        %v3145 = vpack.c.b16 %v3100, %v3099
        %v3146 = vpack.c.b16 %v3102, %v3101
        %v3147 = vpack.c.b16 %v3104, %v3103
        %v3148 = vpack.c.b16 %v3106, %v3105
        %v3149 = vpack.c.b16 %v3108, %v3107
        %v3150 = vpack.c.b16 %v3110, %v3109
        %v3151 = vpack.c.b16 %v3112, %v3111
        %v3152 = vpack.c.b16 %v3114, %v3113
        %v3153 = vpack.c.b16 %v3116, %v3115
        %v3154 = vpack.c.b16 %v3118, %v3117
        %v3155 = vpack.c.b16 %v3120, %v3119
        %v3156 = vpack.c.b16 %v3122, %v3121
        %v3157 = vpack.c.b16 %v3124, %v3123
        %v3158 = vpack.c.b16 %v3126, %v3125
        %v3159 = vpack.c.b16 %v3128, %v3127
        %v3160 = vpack.c.b16 %v3130, %v3129
        %v3161 = vpack.c.b16 %v3132, %v3131
        %v3162 = vpack.c.b16 %v3134, %v3133
        %v3163 = vpack.c.b16 %v3136, %v3135
        %v3164 = vpack.c.b16 %v3138, %v3137
        %v3165 = vpack.c.b16 %v3140, %v3139
        %v3166 = vpack.c.b16 %v3142, %v3141
        %3191 = vmatprep.subr.bf16.mxu0 0
        %3192 = vmatpush1.bf16.msra.mxu0 %v3143
        %3193 = vmatprep.subr.bf16.mxu0 0
        %3194 = vmatpush1.bf16.msra.mxu0 %v3144
        %3195 = vmatprep.subr.bf16.mxu0 0
        %3196 = vmatpush1.bf16.msra.mxu0 %v3145
        %3197 = vmatprep.subr.bf16.mxu0 0
        %3198 = vmatpush1.bf16.msra.mxu0 %v3146
        %3199 = vmatprep.subr.bf16.mxu0 0
        %3200 = vmatpush1.bf16.msra.mxu0 %v3147
        %3201 = vmatprep.subr.bf16.mxu0 0
        %3202 = vmatpush1.bf16.msra.mxu0 %v3148
        %3203 = vmatprep.subr.bf16.mxu0 0
        %3204 = vmatpush1.bf16.msra.mxu0 %v3149
        %3205 = vmatprep.subr.bf16.mxu0 0
        %3206 = vmatpush1.bf16.msra.mxu0 %v3150
        %3207 = vmatprep.subr.bf16.mxu0 0
        %3208 = vmatpush1.bf16.msra.mxu0 %v3151
        %3209 = vmatprep.subr.bf16.mxu0 0
        %3210 = vmatpush1.bf16.msra.mxu0 %v3152
        %3211 = vmatprep.subr.bf16.mxu0 0
        %3212 = vmatpush1.bf16.msra.mxu0 %v3153
        %3213 = vmatprep.subr.bf16.mxu0 0
        %3214 = vmatpush1.bf16.msra.mxu0 %v3154
        %3215 = vmatprep.subr.bf16.mxu0 0
        %3216 = vmatpush1.bf16.msra.mxu0 %v3155
        %3217 = vmatprep.subr.bf16.mxu0 0
        %3218 = vmatpush1.bf16.msra.mxu0 %v3156
        %3219 = vmatprep.subr.bf16.mxu0 0
        %3220 = vmatpush1.bf16.msra.mxu0 %v3157
        %3221 = vmatprep.subr.bf16.mxu0 0
        %3222 = vmatpush1.bf16.msra.mxu0 %v3158
        %3223 = vmatprep.mubr.bf16.mxu0 %v852
        %3224 = vmatmul.mubr.bf16.gmra.mrb[0].mxu0 %v851
        %v3225 = vpop.f32.mrb[0].mxu0
        %v3226 = vadd.f32 0.0, %v3225
        %v3227 = vpop.f32.mrb[0].mxu0
        %v3228 = vpop.f32.mrb[0].mxu0
        %v3229 = vadd.f32 0.0, %v3228
        %v3230 = vpop.f32.mrb[0].mxu0
        %3231 = vmatprep.mubr.bf16.mxu0 %v855
        %3232 = vmatmul.mubr.bf16.gmra.mrb[0].mxu0 %v854
        %v3233 = vpop.f32.mrb[0].mxu0
        %v3234 = vadd.f32 0.0, %v3233
        %v3235 = vpop.f32.mrb[0].mxu0
        %v3236 = vpop.f32.mrb[0].mxu0
        %v3237 = vadd.f32 0.0, %v3236
        %v3238 = vpop.f32.mrb[0].mxu0
        %3239 = vmatprep.mubr.bf16.mxu0 %v858
        %3240 = vmatmul.mubr.bf16.gmra.mrb[0].mxu0 %v857
        %v3241 = vpop.f32.mrb[0].mxu0
        %v3242 = vadd.f32 0.0, %v3241
        %v3243 = vpop.f32.mrb[0].mxu0
        %v3244 = vpop.f32.mrb[0].mxu0
        %v3245 = vadd.f32 0.0, %v3244
        %v3246 = vpop.f32.mrb[0].mxu0
        %3247 = vmatprep.mubr.bf16.mxu0 %v861
        %3248 = vmatmul.mubr.bf16.gmra.mrb[0].mxu0 %v860
        %v3249 = vpop.f32.mrb[0].mxu0
        %v3250 = vadd.f32 0.0, %v3249
        %v3251 = vpop.f32.mrb[0].mxu0
        %v3252 = vpop.f32.mrb[0].mxu0
        %v3253 = vadd.f32 0.0, %v3252
        %v3254 = vpop.f32.mrb[0].mxu0
        %3255 = vmatprep.mubr.bf16.mxu0 %v864
        %3256 = vmatmul.mubr.bf16.gmra.mrb[0].mxu0 %v863
        %v3257 = vpop.f32.mrb[0].mxu0
        %v3258 = vadd.f32 0.0, %v3257
        %v3259 = vpop.f32.mrb[0].mxu0
        %v3260 = vpop.f32.mrb[0].mxu0
        %v3261 = vadd.f32 0.0, %v3260
        %v3262 = vpop.f32.mrb[0].mxu0
        %3263 = vmatprep.mubr.bf16.mxu0 %v867
        %3264 = vmatmul.mubr.bf16.gmra.mrb[0].mxu0 %v866
        %v3265 = vpop.f32.mrb[0].mxu0
        %v3266 = vadd.f32 0.0, %v3265
        %v3267 = vpop.f32.mrb[0].mxu0
        %v3268 = vpop.f32.mrb[0].mxu0
        %v3269 = vadd.f32 0.0, %v3268
        %v3270 = vpop.f32.mrb[0].mxu0
        %3271 = vmatprep.mubr.bf16.mxu0 %v870
        %3272 = vmatmul.mubr.bf16.gmra.mrb[0].mxu0 %v869
        %v3273 = vpop.f32.mrb[0].mxu0
        %v3274 = vadd.f32 0.0, %v3273
        %v3275 = vpop.f32.mrb[0].mxu0
        %v3276 = vpop.f32.mrb[0].mxu0
        %v3277 = vadd.f32 0.0, %v3276
        %v3278 = vpop.f32.mrb[0].mxu0
        %3279 = vmatprep.mubr.bf16.mxu0 %v873
        %3280 = vmatmul.mubr.bf16.gmra.mrb[0].mxu0 %v872
        %v3281 = vpop.f32.mrb[0].mxu0
        %v3282 = vadd.f32 0.0, %v3281
        %v3283 = vpop.f32.mrb[0].mxu0
        %v3284 = vpop.f32.mrb[0].mxu0
        %v3285 = vadd.f32 0.0, %v3284
        %v3286 = vpop.f32.mrb[0].mxu0
        %3287 = vmatprep.mubr.bf16.mxu0 %v876
        %3288 = vmatmul.mubr.bf16.gmra.mrb[0].mxu0 %v875
        %v3289 = vpop.f32.mrb[0].mxu0
        %v3290 = vadd.f32 0.0, %v3289
        %v3291 = vpop.f32.mrb[0].mxu0
        %v3292 = vpop.f32.mrb[0].mxu0
        %v3293 = vadd.f32 0.0, %v3292
        %v3294 = vpop.f32.mrb[0].mxu0
        %3295 = vmatprep.mubr.bf16.mxu0 %v879
        %3296 = vmatmul.mubr.bf16.gmra.mrb[0].mxu0 %v878
        %v3297 = vpop.f32.mrb[0].mxu0
        %v3298 = vadd.f32 0.0, %v3297
        %v3299 = vpop.f32.mrb[0].mxu0
        %v3300 = vpop.f32.mrb[0].mxu0
        %v3301 = vadd.f32 0.0, %v3300
        %v3302 = vpop.f32.mrb[0].mxu0
        %3303 = vmatprep.mubr.bf16.mxu0 %v882
        %3304 = vmatmul.mubr.bf16.gmra.mrb[0].mxu0 %v881
        %v3305 = vpop.f32.mrb[0].mxu0
        %v3306 = vadd.f32 0.0, %v3305
        %v3307 = vpop.f32.mrb[0].mxu0
        %v3308 = vpop.f32.mrb[0].mxu0
        %v3309 = vadd.f32 0.0, %v3308
        %v3310 = vpop.f32.mrb[0].mxu0
        %3311 = vmatprep.mubr.bf16.mxu0 %v885
        %3312 = vmatmul.mubr.bf16.gmra.mrb[0].mxu0 %v884
        %v3313 = vpop.f32.mrb[0].mxu0
        %v3314 = vadd.f32 0.0, %v3313
        %v3315 = vpop.f32.mrb[0].mxu0
        %v3316 = vpop.f32.mrb[0].mxu0
        %v3317 = vadd.f32 0.0, %v3316
        %v3318 = vpop.f32.mrb[0].mxu0
        %3319 = vmatprep.mubr.bf16.mxu0 %v2987
        %3320 = vmatmul.mubr.bf16.gmra.mrb[0].mxu0 %v2986
        %v3321 = vpop.f32.mrb[0].mxu0
        %v3322 = vadd.f32 0.0, %v3321
        %v3323 = vpop.f32.mrb[0].mxu0
        %v3324 = vpop.f32.mrb[0].mxu0
        %v3325 = vadd.f32 0.0, %v3324
        %v3326 = vpop.f32.mrb[0].mxu0
        %3327 = vmatprep.mubr.bf16.mxu0 %v2990
        %3328 = vmatmul.mubr.bf16.gmra.mrb[0].mxu0 %v2989
        %v3329 = vpop.f32.mrb[0].mxu0
        %v3330 = vadd.f32 0.0, %v3329
        %v3331 = vpop.f32.mrb[0].mxu0
        %v3332 = vpop.f32.mrb[0].mxu0
        %v3333 = vadd.f32 0.0, %v3332
        %v3334 = vpop.f32.mrb[0].mxu0
        %3335 = vmatprep.mubr.bf16.mxu0 %v2993
        %3336 = vmatmul.mubr.bf16.gmra.mrb[0].mxu0 %v2992
        %v3337 = vpop.f32.mrb[0].mxu0
        %v3338 = vadd.f32 0.0, %v3337
        %v3339 = vpop.f32.mrb[0].mxu0
        %v3340 = vpop.f32.mrb[0].mxu0
        %v3341 = vadd.f32 0.0, %v3340
        %v3342 = vpop.f32.mrb[0].mxu0
        %3343 = vmatprep.mubr.bf16.mxu0 %v2996
        %3344 = vmatmul.mubr.bf16.gmra.mrb[0].mxu0 %v2995
        %v3345 = vpop.f32.mrb[0].mxu0
        %v3346 = vadd.f32 0.0, %v3345
        %v3347 = vpop.f32.mrb[0].mxu0
        %v3348 = vpop.f32.mrb[0].mxu0
        %v3349 = vadd.f32 0.0, %v3348
        %v3350 = vpop.f32.mrb[0].mxu0
        %3351 = vdwg.mxu0
        %3352 = vmatprep.subr.bf16.mxu0 0
        %3353 = vmatpush1.bf16.msra.mxu0 %v3159
        %3354 = vmatprep.subr.bf16.mxu0 0
        %3355 = vmatpush1.bf16.msra.mxu0 %v3160
        %3356 = vmatprep.subr.bf16.mxu0 0
        %3357 = vmatpush1.bf16.msra.mxu0 %v3161
        %3358 = vmatprep.subr.bf16.mxu0 0
        %3359 = vmatpush1.bf16.msra.mxu0 %v3162
        %3360 = vmatprep.subr.bf16.mxu0 0
        %3361 = vmatpush1.bf16.msra.mxu0 %v3163
        %3362 = vmatprep.subr.bf16.mxu0 0
        %3363 = vmatpush1.bf16.msra.mxu0 %v3164
        %3364 = vmatprep.subr.bf16.mxu0 0
        %3365 = vmatpush1.bf16.msra.mxu0 %v3165
        %3366 = vmatprep.subr.bf16.mxu0 0
        %3367 = vmatpush1.bf16.msra.mxu0 %v3166
        %3368 = vmatprep.subr.bf16.mxu0 0
        %3369 = vmatpush1.bf16.msra.mxu0 0
        %3370 = vmatprep.subr.bf16.mxu0 0
        %3371 = vmatpush1.bf16.msra.mxu0 0
        %3372 = vmatprep.subr.bf16.mxu0 0
        %3373 = vmatpush1.bf16.msra.mxu0 0
        %3374 = vmatprep.subr.bf16.mxu0 0
        %3375 = vmatpush1.bf16.msra.mxu0 0
        %3376 = vmatprep.subr.bf16.mxu0 0
        %3377 = vmatpush1.bf16.msra.mxu0 0
        %3378 = vmatprep.subr.bf16.mxu0 0
        %3379 = vmatpush1.bf16.msra.mxu0 0
        %3380 = vmatprep.subr.bf16.mxu0 0
        %3381 = vmatpush1.bf16.msra.mxu0 0
        %3382 = vmatprep.subr.bf16.mxu0 0
        %3383 = vmatpush1.bf16.msra.mxu0 0
        %3384 = vmatprep.mubr.bf16.mxu0 0
        %3385 = vmatmul.mubr.bf16.gmra.mrb[0].mxu0 %v853
        %v3386 = vpop.f32.mrb[0].mxu0
        %v3387 = vadd.f32 %v3226, %v3386
        %v3388 = vpop.f32.mrb[0].mxu0
        %v3389 = vpop.f32.mrb[0].mxu0
        %v3390 = vadd.f32 %v3229, %v3389
        %v3391 = vpop.f32.mrb[0].mxu0
        %3392 = vmatprep.mubr.bf16.mxu0 0
        %3393 = vmatmul.mubr.bf16.gmra.mrb[0].mxu0 %v856
        %v3394 = vpop.f32.mrb[0].mxu0
        %v3395 = vadd.f32 %v3234, %v3394
        %v3396 = vpop.f32.mrb[0].mxu0
        %v3397 = vpop.f32.mrb[0].mxu0
        %v3398 = vadd.f32 %v3237, %v3397
        %v3399 = vpop.f32.mrb[0].mxu0
        %3400 = vmatprep.mubr.bf16.mxu0 0
        %3401 = vmatmul.mubr.bf16.gmra.mrb[0].mxu0 %v859
        %v3402 = vpop.f32.mrb[0].mxu0
        %v3403 = vadd.f32 %v3242, %v3402
        %v3404 = vpop.f32.mrb[0].mxu0
        %v3405 = vpop.f32.mrb[0].mxu0
        %v3406 = vadd.f32 %v3245, %v3405
        %v3407 = vpop.f32.mrb[0].mxu0
        %3408 = vmatprep.mubr.bf16.mxu0 0
        %3409 = vmatmul.mubr.bf16.gmra.mrb[0].mxu0 %v862
        %v3410 = vpop.f32.mrb[0].mxu0
        %v3411 = vadd.f32 %v3250, %v3410
        %v3412 = vpop.f32.mrb[0].mxu0
        %v3413 = vpop.f32.mrb[0].mxu0
        %v3414 = vadd.f32 %v3253, %v3413
        %v3415 = vpop.f32.mrb[0].mxu0
        %3416 = vmatprep.mubr.bf16.mxu0 0
        %3417 = vmatmul.mubr.bf16.gmra.mrb[0].mxu0 %v865
        %v3418 = vpop.f32.mrb[0].mxu0
        %v3419 = vadd.f32 %v3258, %v3418
        %v3420 = vpop.f32.mrb[0].mxu0
        %v3421 = vpop.f32.mrb[0].mxu0
        %v3422 = vadd.f32 %v3261, %v3421
        %v3423 = vpop.f32.mrb[0].mxu0
        %3424 = vmatprep.mubr.bf16.mxu0 0
        %3425 = vmatmul.mubr.bf16.gmra.mrb[0].mxu0 %v868
        %v3426 = vpop.f32.mrb[0].mxu0
        %v3427 = vadd.f32 %v3266, %v3426
        %v3428 = vpop.f32.mrb[0].mxu0
        %v3429 = vpop.f32.mrb[0].mxu0
        %v3430 = vadd.f32 %v3269, %v3429
        %v3431 = vpop.f32.mrb[0].mxu0
        %3432 = vmatprep.mubr.bf16.mxu0 0
        %3433 = vmatmul.mubr.bf16.gmra.mrb[0].mxu0 %v871
        %v3434 = vpop.f32.mrb[0].mxu0
        %v3435 = vadd.f32 %v3274, %v3434
        %v3436 = vpop.f32.mrb[0].mxu0
        %v3437 = vpop.f32.mrb[0].mxu0
        %v3438 = vadd.f32 %v3277, %v3437
        %v3439 = vpop.f32.mrb[0].mxu0
        %3440 = vmatprep.mubr.bf16.mxu0 0
        %3441 = vmatmul.mubr.bf16.gmra.mrb[0].mxu0 %v874
        %v3442 = vpop.f32.mrb[0].mxu0
        %v3443 = vadd.f32 %v3282, %v3442
        %v3444 = vpop.f32.mrb[0].mxu0
        %v3445 = vpop.f32.mrb[0].mxu0
        %v3446 = vadd.f32 %v3285, %v3445
        %v3447 = vpop.f32.mrb[0].mxu0
        %3448 = vmatprep.mubr.bf16.mxu0 0
        %3449 = vmatmul.mubr.bf16.gmra.mrb[0].mxu0 %v877
        %v3450 = vpop.f32.mrb[0].mxu0
        %v3451 = vadd.f32 %v3290, %v3450
        %v3452 = vpop.f32.mrb[0].mxu0
        %v3453 = vpop.f32.mrb[0].mxu0
        %v3454 = vadd.f32 %v3293, %v3453
        %v3455 = vpop.f32.mrb[0].mxu0
        %3456 = vmatprep.mubr.bf16.mxu0 0
        %3457 = vmatmul.mubr.bf16.gmra.mrb[0].mxu0 %v880
        %v3458 = vpop.f32.mrb[0].mxu0
        %v3459 = vadd.f32 %v3298, %v3458
        %v3460 = vpop.f32.mrb[0].mxu0
        %v3461 = vpop.f32.mrb[0].mxu0
        %v3462 = vadd.f32 %v3301, %v3461
        %v3463 = vpop.f32.mrb[0].mxu0
        %3464 = vmatprep.mubr.bf16.mxu0 0
        %3465 = vmatmul.mubr.bf16.gmra.mrb[0].mxu0 %v883
        %v3466 = vpop.f32.mrb[0].mxu0
        %v3467 = vadd.f32 %v3306, %v3466
        %v3468 = vpop.f32.mrb[0].mxu0
        %v3469 = vpop.f32.mrb[0].mxu0
        %v3470 = vadd.f32 %v3309, %v3469
        %v3471 = vpop.f32.mrb[0].mxu0
        %3472 = vmatprep.mubr.bf16.mxu0 0
        %3473 = vmatmul.mubr.bf16.gmra.mrb[0].mxu0 %v886
        %v3474 = vpop.f32.mrb[0].mxu0
        %v3475 = vadd.f32 %v3314, %v3474
        %v3476 = vpop.f32.mrb[0].mxu0
        %v3477 = vpop.f32.mrb[0].mxu0
        %v3478 = vadd.f32 %v3317, %v3477
        %v3479 = vpop.f32.mrb[0].mxu0
        %3480 = vmatprep.mubr.bf16.mxu0 0
        %3481 = vmatmul.mubr.bf16.gmra.mrb[0].mxu0 %v2988
        %v3482 = vpop.f32.mrb[0].mxu0
        %v3483 = vadd.f32 %v3322, %v3482
        %v3484 = vpop.f32.mrb[0].mxu0
        %v3485 = vpop.f32.mrb[0].mxu0
        %v3486 = vadd.f32 %v3325, %v3485
        %v3487 = vpop.f32.mrb[0].mxu0
        %3488 = vmatprep.mubr.bf16.mxu0 0
        %3489 = vmatmul.mubr.bf16.gmra.mrb[0].mxu0 %v2991
        %v3490 = vpop.f32.mrb[0].mxu0
        %v3491 = vadd.f32 %v3330, %v3490
        %v3492 = vpop.f32.mrb[0].mxu0
        %v3493 = vpop.f32.mrb[0].mxu0
        %v3494 = vadd.f32 %v3333, %v3493
        %v3495 = vpop.f32.mrb[0].mxu0
        %3496 = vmatprep.mubr.bf16.mxu0 0
        %3497 = vmatmul.mubr.bf16.gmra.mrb[0].mxu0 %v2994
        %v3498 = vpop.f32.mrb[0].mxu0
        %v3499 = vadd.f32 %v3338, %v3498
        %v3500 = vpop.f32.mrb[0].mxu0
        %v3501 = vpop.f32.mrb[0].mxu0
        %v3502 = vadd.f32 %v3341, %v3501
        %v3503 = vpop.f32.mrb[0].mxu0
        %3504 = vmatprep.mubr.bf16.mxu0 0
        %3505 = vmatmul.mubr.bf16.gmra.mrb[0].mxu0 %v2997
        %v3506 = vpop.f32.mrb[0].mxu0
        %v3507 = vadd.f32 %v3346, %v3506
        %v3508 = vpop.f32.mrb[0].mxu0
        %v3509 = vpop.f32.mrb[0].mxu0
        %v3510 = vadd.f32 %v3349, %v3509
        %v3511 = vpop.f32.mrb[0].mxu0
        %3512 = vdwg.mxu0
        %v3513 = vadd.f32 %v2954, %v3387
        %v3514 = vadd.f32 %v2955, %v3390
        %v3515 = vadd.f32 %v2956, %v3395
        %v3516 = vadd.f32 %v2957, %v3398
        %v3517 = vadd.f32 %v2958, %v3403
        %v3518 = vadd.f32 %v2959, %v3406
        %v3519 = vadd.f32 %v2960, %v3411
        %v3520 = vadd.f32 %v2961, %v3414
        %v3521 = vadd.f32 %v2962, %v3419
        %v3522 = vadd.f32 %v2963, %v3422
        %v3523 = vadd.f32 %v2964, %v3427
        %v3524 = vadd.f32 %v2965, %v3430
        %v3525 = vadd.f32 %v2966, %v3435
        %v3526 = vadd.f32 %v2967, %v3438
        %v3527 = vadd.f32 %v2968, %v3443
        %v3528 = vadd.f32 %v2969, %v3446
        %v3529 = vadd.f32 %v2970, %v3451
        %v3530 = vadd.f32 %v2971, %v3454
        %v3531 = vadd.f32 %v2972, %v3459
        %v3532 = vadd.f32 %v2973, %v3462
        %v3533 = vadd.f32 %v2974, %v3467
        %v3534 = vadd.f32 %v2975, %v3470
        %v3535 = vadd.f32 %v2976, %v3475
        %v3536 = vadd.f32 %v2977, %v3478
        %v3537 = vadd.f32 %v2978, %v3483
        %v3538 = vadd.f32 %v2979, %v3486
        %v3539 = vadd.f32 %v2980, %v3491
        %v3540 = vadd.f32 %v2981, %v3494
        %v3541 = vadd.f32 %v2982, %v3499
        %v3542 = vadd.f32 %v2983, %v3502
        %v3543 = vadd.f32 %v2984, %v3507
        %v3544 = vadd.f32 %v2985, %v3510
        %v3545 = vpack.c.bf16 %v596, %v636
        %v3546 = vpack.c.bf16 0.0, %v544
        %v3547 = vpack.c.bf16 %v694, %v734
        %s3548 = scalar_lea.vmem [#allocation8], 960
        %v3549 = vld [vmem:[%s3548] sm:$0xf]
        %v3550 = vld [vmem:[%s3548 + $0x4] sm:$0xf]
        %v3551 = vld [vmem:[%s3548 + $0x8] sm:$0xf]
        %v3552 = vld [vmem:[%s3548 + $0xc] sm:$0xf]
        %v3553 = vld [vmem:[%s3548 + $0x10] sm:$0xf]
        %v3554 = vld [vmem:[%s3548 + $0x14] sm:$0xf]
        %v3555 = vld [vmem:[%s3548 + $0x18] sm:$0xf]
        %v3556 = vld [vmem:[%s3548 + $0x1c] sm:$0xf]
        %v3557 = vld [vmem:[%s3548 + $0x20] sm:$0xf]
        %v3558 = vld [vmem:[%s3548 + $0x24] sm:$0xf]
        %v3559 = vld [vmem:[%s3548 + $0x28] sm:$0xf]
        %v3560 = vld [vmem:[%s3548 + $0x2c] sm:$0xf]
        %v3561 = vld [vmem:[%s3548 + $0x30] sm:$0xf]
        %v3562 = vld [vmem:[%s3548 + $0x34] sm:$0xf]
        %v3563 = vld [vmem:[%s3548 + $0x38] sm:$0xf]
        %v3564 = vld [vmem:[%s3548 + $0x3c] sm:$0xf]
        %v3565 = vld [vmem:[%s3548 + $0x40] sm:$0xf]
        %v3566 = vld [vmem:[%s3548 + $0x44] sm:$0xf]
        %v3567 = vld [vmem:[%s3548 + $0x48] sm:$0xf]
        %v3568 = vld [vmem:[%s3548 + $0x4c] sm:$0xf]
        %v3569 = vld [vmem:[%s3548 + $0x50] sm:$0xf]
        %v3570 = vld [vmem:[%s3548 + $0x54] sm:$0xf]
        %v3571 = vld [vmem:[%s3548 + $0x58] sm:$0xf]
        %v3572 = vld [vmem:[%s3548 + $0x5c] sm:$0xf]
        %v3573 = vld [vmem:[%s3548 + $0x60] sm:$0xf]
        %v3574 = vld [vmem:[%s3548 + $0x64] sm:$0xf]
        %v3575 = vld [vmem:[%s3548 + $0x68] sm:$0xf]
        %v3576 = vld [vmem:[%s3548 + $0x6c] sm:$0xf]
        %v3577 = vld [vmem:[%s3548 + $0x70] sm:$0xf]
        %v3578 = vld [vmem:[%s3548 + $0x74] sm:$0xf]
        %v3579 = vld [vmem:[%s3548 + $0x78] sm:$0xf]
        %v3580 = vld [vmem:[%s3548 + $0x7c] sm:$0xf]
        %v3581 = vld [vmem:[%s3548 + $0x80] sm:$0xf]
        %v3582 = vld [vmem:[%s3548 + $0x84] sm:$0xf]
        %v3583 = vld [vmem:[%s3548 + $0x88] sm:$0xf]
        %v3584 = vld [vmem:[%s3548 + $0x8c] sm:$0xf]
        %v3585 = vld [vmem:[%s3548 + $0x90] sm:$0xf]
        %v3586 = vld [vmem:[%s3548 + $0x94] sm:$0xf]
        %v3587 = vld [vmem:[%s3548 + $0x98] sm:$0xf]
        %v3588 = vld [vmem:[%s3548 + $0x9c] sm:$0xf]
        %v3589 = vld [vmem:[%s3548 + $0xa0] sm:$0xf]
        %v3590 = vld [vmem:[%s3548 + $0xa4] sm:$0xf]
        %v3591 = vld [vmem:[%s3548 + $0xa8] sm:$0xf]
        %v3592 = vld [vmem:[%s3548 + $0xac] sm:$0xf]
        %v3593 = vld [vmem:[%s3548 + $0xb0] sm:$0xf]
        %v3594 = vld [vmem:[%s3548 + $0xb4] sm:$0xf]
        %v3595 = vld [vmem:[%s3548 + $0xb8] sm:$0xf]
        %v3596 = vld [vmem:[%s3548 + $0xbc] sm:$0xf]
        %v3645 = vunpack.c.l.b16 %v3549
        %v3646 = vunpack.c.l.b16 %v3550
        %v3647 = vunpack.c.l.b16 %v3551
        %v3648 = vunpack.c.l.b16 %v3552
        %v3649 = vunpack.c.l.b16 %v3553
        %v3650 = vunpack.c.l.b16 %v3554
        %v3651 = vunpack.c.l.b16 %v3555
        %v3652 = vunpack.c.l.b16 %v3556
        %v3653 = vunpack.c.l.b16 %v3557
        %v3654 = vunpack.c.l.b16 %v3558
        %v3655 = vunpack.c.l.b16 %v3559
        %v3656 = vunpack.c.l.b16 %v3560
        %v3657 = vunpack.c.l.b16 %v3561
        %v3658 = vunpack.c.l.b16 %v3562
        %v3659 = vunpack.c.l.b16 %v3563
        %v3660 = vunpack.c.l.b16 %v3564
        %v3661 = vunpack.c.l.b16 %v3565
        %v3662 = vunpack.c.l.b16 %v3566
        %v3663 = vunpack.c.l.b16 %v3567
        %v3664 = vunpack.c.l.b16 %v3568
        %v3665 = vunpack.c.l.b16 %v3569
        %v3666 = vunpack.c.l.b16 %v3570
        %v3667 = vunpack.c.l.b16 %v3571
        %v3668 = vunpack.c.l.b16 %v3572
        %v3669 = vunpack.c.l.b16 %v3573
        %v3670 = vunpack.c.l.b16 %v3574
        %v3671 = vunpack.c.l.b16 %v3575
        %v3672 = vunpack.c.l.b16 %v3576
        %v3673 = vunpack.c.l.b16 %v3577
        %v3674 = vunpack.c.l.b16 %v3578
        %v3675 = vunpack.c.l.b16 %v3579
        %v3676 = vunpack.c.l.b16 %v3580
        %v3677 = vunpack.c.l.b16 %v3581
        %v3678 = vunpack.c.l.b16 %v3582
        %v3679 = vunpack.c.l.b16 %v3583
        %v3680 = vunpack.c.l.b16 %v3584
        %v3681 = vunpack.c.l.b16 %v3585
        %v3682 = vunpack.c.l.b16 %v3586
        %v3683 = vunpack.c.l.b16 %v3587
        %v3684 = vunpack.c.l.b16 %v3588
        %v3685 = vunpack.c.l.b16 %v3589
        %v3686 = vunpack.c.l.b16 %v3590
        %v3687 = vunpack.c.l.b16 %v3591
        %v3688 = vunpack.c.l.b16 %v3592
        %v3689 = vunpack.c.l.b16 %v3593
        %v3690 = vunpack.c.l.b16 %v3594
        %v3691 = vunpack.c.l.b16 %v3595
        %v3692 = vunpack.c.l.b16 %v3596
        %v3693 = vpack.c.b16 %v3646, %v3645
        %v3694 = vpack.c.b16 %v3648, %v3647
        %v3695 = vpack.c.b16 %v3650, %v3649
        %v3696 = vpack.c.b16 %v3652, %v3651
        %v3697 = vpack.c.b16 %v3654, %v3653
        %v3698 = vpack.c.b16 %v3656, %v3655
        %v3699 = vpack.c.b16 %v3658, %v3657
        %v3700 = vpack.c.b16 %v3660, %v3659
        %v3701 = vpack.c.b16 %v3662, %v3661
        %v3702 = vpack.c.b16 %v3664, %v3663
        %v3703 = vpack.c.b16 %v3666, %v3665
        %v3704 = vpack.c.b16 %v3668, %v3667
        %v3705 = vpack.c.b16 %v3670, %v3669
        %v3706 = vpack.c.b16 %v3672, %v3671
        %v3707 = vpack.c.b16 %v3674, %v3673
        %v3708 = vpack.c.b16 %v3676, %v3675
        %v3709 = vpack.c.b16 %v3678, %v3677
        %v3710 = vpack.c.b16 %v3680, %v3679
        %v3711 = vpack.c.b16 %v3682, %v3681
        %v3712 = vpack.c.b16 %v3684, %v3683
        %v3713 = vpack.c.b16 %v3686, %v3685
        %v3714 = vpack.c.b16 %v3688, %v3687
        %v3715 = vpack.c.b16 %v3690, %v3689
        %v3716 = vpack.c.b16 %v3692, %v3691
        %3741 = vmatprep.subr.bf16.mxu0 0
        %3742 = vmatpush1.bf16.msra.mxu0 %v3693
        %3743 = vmatprep.subr.bf16.mxu0 0
        %3744 = vmatpush1.bf16.msra.mxu0 %v3694
        %3745 = vmatprep.subr.bf16.mxu0 0
        %3746 = vmatpush1.bf16.msra.mxu0 %v3695
        %3747 = vmatprep.subr.bf16.mxu0 0
        %3748 = vmatpush1.bf16.msra.mxu0 %v3696
        %3749 = vmatprep.subr.bf16.mxu0 0
        %3750 = vmatpush1.bf16.msra.mxu0 %v3697
        %3751 = vmatprep.subr.bf16.mxu0 0
        %3752 = vmatpush1.bf16.msra.mxu0 %v3698
        %3753 = vmatprep.subr.bf16.mxu0 0
        %3754 = vmatpush1.bf16.msra.mxu0 %v3699
        %3755 = vmatprep.subr.bf16.mxu0 0
        %3756 = vmatpush1.bf16.msra.mxu0 %v3700
        %3757 = vmatprep.subr.bf16.mxu0 0
        %3758 = vmatpush1.bf16.msra.mxu0 %v3701
        %3759 = vmatprep.subr.bf16.mxu0 0
        %3760 = vmatpush1.bf16.msra.mxu0 %v3702
        %3761 = vmatprep.subr.bf16.mxu0 0
        %3762 = vmatpush1.bf16.msra.mxu0 %v3703
        %3763 = vmatprep.subr.bf16.mxu0 0
        %3764 = vmatpush1.bf16.msra.mxu0 %v3704
        %3765 = vmatprep.subr.bf16.mxu0 0
        %3766 = vmatpush1.bf16.msra.mxu0 %v3705
        %3767 = vmatprep.subr.bf16.mxu0 0
        %3768 = vmatpush1.bf16.msra.mxu0 %v3706
        %3769 = vmatprep.subr.bf16.mxu0 0
        %3770 = vmatpush1.bf16.msra.mxu0 %v3707
        %3771 = vmatprep.subr.bf16.mxu0 0
        %3772 = vmatpush1.bf16.msra.mxu0 %v3708
        %3773 = vmatprep.mubr.bf16.mxu0 %v759
        %3774 = vmatmul.mubr.bf16.gmra.mrb[0].mxu0 %v758
        %v3775 = vpop.f32.mrb[0].mxu0
        %v3776 = vadd.f32 0.0, %v3775
        %v3777 = vpop.f32.mrb[0].mxu0
        %v3778 = vpop.f32.mrb[0].mxu0
        %v3779 = vadd.f32 0.0, %v3778
        %v3780 = vpop.f32.mrb[0].mxu0
        %3781 = vmatprep.mubr.bf16.mxu0 %v762
        %3782 = vmatmul.mubr.bf16.gmra.mrb[0].mxu0 %v761
        %v3783 = vpop.f32.mrb[0].mxu0
        %v3784 = vadd.f32 0.0, %v3783
        %v3785 = vpop.f32.mrb[0].mxu0
        %v3786 = vpop.f32.mrb[0].mxu0
        %v3787 = vadd.f32 0.0, %v3786
        %v3788 = vpop.f32.mrb[0].mxu0
        %3789 = vmatprep.mubr.bf16.mxu0 %v765
        %3790 = vmatmul.mubr.bf16.gmra.mrb[0].mxu0 %v764
        %v3791 = vpop.f32.mrb[0].mxu0
        %v3792 = vadd.f32 0.0, %v3791
        %v3793 = vpop.f32.mrb[0].mxu0
        %v3794 = vpop.f32.mrb[0].mxu0
        %v3795 = vadd.f32 0.0, %v3794
        %v3796 = vpop.f32.mrb[0].mxu0
        %3797 = vmatprep.mubr.bf16.mxu0 %v1872
        %3798 = vmatmul.mubr.bf16.gmra.mrb[0].mxu0 %v1871
        %v3799 = vpop.f32.mrb[0].mxu0
        %v3800 = vadd.f32 0.0, %v3799
        %v3801 = vpop.f32.mrb[0].mxu0
        %v3802 = vpop.f32.mrb[0].mxu0
        %v3803 = vadd.f32 0.0, %v3802
        %v3804 = vpop.f32.mrb[0].mxu0
        %3805 = vmatprep.mubr.bf16.mxu0 %v771
        %3806 = vmatmul.mubr.bf16.gmra.mrb[0].mxu0 %v770
        %v3807 = vpop.f32.mrb[0].mxu0
        %v3808 = vadd.f32 0.0, %v3807
        %v3809 = vpop.f32.mrb[0].mxu0
        %v3810 = vpop.f32.mrb[0].mxu0
        %v3811 = vadd.f32 0.0, %v3810
        %v3812 = vpop.f32.mrb[0].mxu0
        %3813 = vmatprep.mubr.bf16.mxu0 %v774
        %3814 = vmatmul.mubr.bf16.gmra.mrb[0].mxu0 %v773
        %v3815 = vpop.f32.mrb[0].mxu0
        %v3816 = vadd.f32 0.0, %v3815
        %v3817 = vpop.f32.mrb[0].mxu0
        %v3818 = vpop.f32.mrb[0].mxu0
        %v3819 = vadd.f32 0.0, %v3818
        %v3820 = vpop.f32.mrb[0].mxu0
        %3821 = vmatprep.mubr.bf16.mxu0 %v777
        %3822 = vmatmul.mubr.bf16.gmra.mrb[0].mxu0 %v776
        %v3823 = vpop.f32.mrb[0].mxu0
        %v3824 = vadd.f32 0.0, %v3823
        %v3825 = vpop.f32.mrb[0].mxu0
        %v3826 = vpop.f32.mrb[0].mxu0
        %v3827 = vadd.f32 0.0, %v3826
        %v3828 = vpop.f32.mrb[0].mxu0
        %3829 = vmatprep.mubr.bf16.mxu0 %v1875
        %3830 = vmatmul.mubr.bf16.gmra.mrb[0].mxu0 %v1874
        %v3831 = vpop.f32.mrb[0].mxu0
        %v3832 = vadd.f32 0.0, %v3831
        %v3833 = vpop.f32.mrb[0].mxu0
        %v3834 = vpop.f32.mrb[0].mxu0
        %v3835 = vadd.f32 0.0, %v3834
        %v3836 = vpop.f32.mrb[0].mxu0
        %3837 = vmatprep.mubr.bf16.mxu0 %v783
        %3838 = vmatmul.mubr.bf16.gmra.mrb[0].mxu0 %v782
        %v3839 = vpop.f32.mrb[0].mxu0
        %v3840 = vadd.f32 0.0, %v3839
        %v3841 = vpop.f32.mrb[0].mxu0
        %v3842 = vpop.f32.mrb[0].mxu0
        %v3843 = vadd.f32 0.0, %v3842
        %v3844 = vpop.f32.mrb[0].mxu0
        %3845 = vmatprep.mubr.bf16.mxu0 %v786
        %3846 = vmatmul.mubr.bf16.gmra.mrb[0].mxu0 %v785
        %v3847 = vpop.f32.mrb[0].mxu0
        %v3848 = vadd.f32 0.0, %v3847
        %v3849 = vpop.f32.mrb[0].mxu0
        %v3850 = vpop.f32.mrb[0].mxu0
        %v3851 = vadd.f32 0.0, %v3850
        %v3852 = vpop.f32.mrb[0].mxu0
        %3853 = vmatprep.mubr.bf16.mxu0 %v789
        %3854 = vmatmul.mubr.bf16.gmra.mrb[0].mxu0 %v788
        %v3855 = vpop.f32.mrb[0].mxu0
        %v3856 = vadd.f32 0.0, %v3855
        %v3857 = vpop.f32.mrb[0].mxu0
        %v3858 = vpop.f32.mrb[0].mxu0
        %v3859 = vadd.f32 0.0, %v3858
        %v3860 = vpop.f32.mrb[0].mxu0
        %3861 = vmatprep.mubr.bf16.mxu0 %v1878
        %3862 = vmatmul.mubr.bf16.gmra.mrb[0].mxu0 %v1877
        %v3863 = vpop.f32.mrb[0].mxu0
        %v3864 = vadd.f32 0.0, %v3863
        %v3865 = vpop.f32.mrb[0].mxu0
        %v3866 = vpop.f32.mrb[0].mxu0
        %v3867 = vadd.f32 0.0, %v3866
        %v3868 = vpop.f32.mrb[0].mxu0
        %3869 = vmatprep.mubr.bf16.mxu0 %v2431
        %3870 = vmatmul.mubr.bf16.gmra.mrb[0].mxu0 %v2430
        %v3871 = vpop.f32.mrb[0].mxu0
        %v3872 = vadd.f32 0.0, %v3871
        %v3873 = vpop.f32.mrb[0].mxu0
        %v3874 = vpop.f32.mrb[0].mxu0
        %v3875 = vadd.f32 0.0, %v3874
        %v3876 = vpop.f32.mrb[0].mxu0
        %3877 = vmatprep.mubr.bf16.mxu0 %v2434
        %3878 = vmatmul.mubr.bf16.gmra.mrb[0].mxu0 %v2433
        %v3879 = vpop.f32.mrb[0].mxu0
        %v3880 = vadd.f32 0.0, %v3879
        %v3881 = vpop.f32.mrb[0].mxu0
        %v3882 = vpop.f32.mrb[0].mxu0
        %v3883 = vadd.f32 0.0, %v3882
        %v3884 = vpop.f32.mrb[0].mxu0
        %3885 = vmatprep.mubr.bf16.mxu0 %v2437
        %3886 = vmatmul.mubr.bf16.gmra.mrb[0].mxu0 %v2436
        %v3887 = vpop.f32.mrb[0].mxu0
        %v3888 = vadd.f32 0.0, %v3887
        %v3889 = vpop.f32.mrb[0].mxu0
        %v3890 = vpop.f32.mrb[0].mxu0
        %v3891 = vadd.f32 0.0, %v3890
        %v3892 = vpop.f32.mrb[0].mxu0
        %3893 = vmatprep.mubr.bf16.mxu0 %v3546
        %3894 = vmatmul.mubr.bf16.gmra.mrb[0].mxu0 %v3545
        %v3895 = vpop.f32.mrb[0].mxu0
        %v3896 = vadd.f32 0.0, %v3895
        %v3897 = vpop.f32.mrb[0].mxu0
        %v3898 = vpop.f32.mrb[0].mxu0
        %v3899 = vadd.f32 0.0, %v3898
        %v3900 = vpop.f32.mrb[0].mxu0
        %3901 = vdwg.mxu0
        %3902 = vmatprep.subr.bf16.mxu0 0
        %3903 = vmatpush1.bf16.msra.mxu0 %v3709
        %3904 = vmatprep.subr.bf16.mxu0 0
        %3905 = vmatpush1.bf16.msra.mxu0 %v3710
        %3906 = vmatprep.subr.bf16.mxu0 0
        %3907 = vmatpush1.bf16.msra.mxu0 %v3711
        %3908 = vmatprep.subr.bf16.mxu0 0
        %3909 = vmatpush1.bf16.msra.mxu0 %v3712
        %3910 = vmatprep.subr.bf16.mxu0 0
        %3911 = vmatpush1.bf16.msra.mxu0 %v3713
        %3912 = vmatprep.subr.bf16.mxu0 0
        %3913 = vmatpush1.bf16.msra.mxu0 %v3714
        %3914 = vmatprep.subr.bf16.mxu0 0
        %3915 = vmatpush1.bf16.msra.mxu0 %v3715
        %3916 = vmatprep.subr.bf16.mxu0 0
        %3917 = vmatpush1.bf16.msra.mxu0 %v3716
        %3918 = vmatprep.subr.bf16.mxu0 0
        %3919 = vmatpush1.bf16.msra.mxu0 0
        %3920 = vmatprep.subr.bf16.mxu0 0
        %3921 = vmatpush1.bf16.msra.mxu0 0
        %3922 = vmatprep.subr.bf16.mxu0 0
        %3923 = vmatpush1.bf16.msra.mxu0 0
        %3924 = vmatprep.subr.bf16.mxu0 0
        %3925 = vmatpush1.bf16.msra.mxu0 0
        %3926 = vmatprep.subr.bf16.mxu0 0
        %3927 = vmatpush1.bf16.msra.mxu0 0
        %3928 = vmatprep.subr.bf16.mxu0 0
        %3929 = vmatpush1.bf16.msra.mxu0 0
        %3930 = vmatprep.subr.bf16.mxu0 0
        %3931 = vmatpush1.bf16.msra.mxu0 0
        %3932 = vmatprep.subr.bf16.mxu0 0
        %3933 = vmatpush1.bf16.msra.mxu0 0
        %3934 = vmatprep.mubr.bf16.mxu0 0
        %3935 = vmatmul.mubr.bf16.gmra.mrb[0].mxu0 %v760
        %v3936 = vpop.f32.mrb[0].mxu0
        %v3937 = vadd.f32 %v3776, %v3936
        %v3938 = vpop.f32.mrb[0].mxu0
        %v3939 = vpop.f32.mrb[0].mxu0
        %v3940 = vadd.f32 %v3779, %v3939
        %v3941 = vpop.f32.mrb[0].mxu0
        %3942 = vmatprep.mubr.bf16.mxu0 0
        %3943 = vmatmul.mubr.bf16.gmra.mrb[0].mxu0 %v763
        %v3944 = vpop.f32.mrb[0].mxu0
        %v3945 = vadd.f32 %v3784, %v3944
        %v3946 = vpop.f32.mrb[0].mxu0
        %v3947 = vpop.f32.mrb[0].mxu0
        %v3948 = vadd.f32 %v3787, %v3947
        %v3949 = vpop.f32.mrb[0].mxu0
        %3950 = vmatprep.mubr.bf16.mxu0 0
        %3951 = vmatmul.mubr.bf16.gmra.mrb[0].mxu0 %v766
        %v3952 = vpop.f32.mrb[0].mxu0
        %v3953 = vadd.f32 %v3792, %v3952
        %v3954 = vpop.f32.mrb[0].mxu0
        %v3955 = vpop.f32.mrb[0].mxu0
        %v3956 = vadd.f32 %v3795, %v3955
        %v3957 = vpop.f32.mrb[0].mxu0
        %3958 = vmatprep.mubr.bf16.mxu0 0
        %3959 = vmatmul.mubr.bf16.gmra.mrb[0].mxu0 %v1873
        %v3960 = vpop.f32.mrb[0].mxu0
        %v3961 = vadd.f32 %v3800, %v3960
        %v3962 = vpop.f32.mrb[0].mxu0
        %v3963 = vpop.f32.mrb[0].mxu0
        %v3964 = vadd.f32 %v3803, %v3963
        %v3965 = vpop.f32.mrb[0].mxu0
        %3966 = vmatprep.mubr.bf16.mxu0 0
        %3967 = vmatmul.mubr.bf16.gmra.mrb[0].mxu0 %v772
        %v3968 = vpop.f32.mrb[0].mxu0
        %v3969 = vadd.f32 %v3808, %v3968
        %v3970 = vpop.f32.mrb[0].mxu0
        %v3971 = vpop.f32.mrb[0].mxu0
        %v3972 = vadd.f32 %v3811, %v3971
        %v3973 = vpop.f32.mrb[0].mxu0
        %3974 = vmatprep.mubr.bf16.mxu0 0
        %3975 = vmatmul.mubr.bf16.gmra.mrb[0].mxu0 %v775
        %v3976 = vpop.f32.mrb[0].mxu0
        %v3977 = vadd.f32 %v3816, %v3976
        %v3978 = vpop.f32.mrb[0].mxu0
        %v3979 = vpop.f32.mrb[0].mxu0
        %v3980 = vadd.f32 %v3819, %v3979
        %v3981 = vpop.f32.mrb[0].mxu0
        %3982 = vmatprep.mubr.bf16.mxu0 0
        %3983 = vmatmul.mubr.bf16.gmra.mrb[0].mxu0 %v778
        %v3984 = vpop.f32.mrb[0].mxu0
        %v3985 = vadd.f32 %v3824, %v3984
        %v3986 = vpop.f32.mrb[0].mxu0
        %v3987 = vpop.f32.mrb[0].mxu0
        %v3988 = vadd.f32 %v3827, %v3987
        %v3989 = vpop.f32.mrb[0].mxu0
        %3990 = vmatprep.mubr.bf16.mxu0 0
        %3991 = vmatmul.mubr.bf16.gmra.mrb[0].mxu0 %v1876
        %v3992 = vpop.f32.mrb[0].mxu0
        %v3993 = vadd.f32 %v3832, %v3992
        %v3994 = vpop.f32.mrb[0].mxu0
        %v3995 = vpop.f32.mrb[0].mxu0
        %v3996 = vadd.f32 %v3835, %v3995
        %v3997 = vpop.f32.mrb[0].mxu0
        %3998 = vmatprep.mubr.bf16.mxu0 0
        %3999 = vmatmul.mubr.bf16.gmra.mrb[0].mxu0 %v784
        %v4000 = vpop.f32.mrb[0].mxu0
        %v4001 = vadd.f32 %v3840, %v4000
        %v4002 = vpop.f32.mrb[0].mxu0
        %v4003 = vpop.f32.mrb[0].mxu0
        %v4004 = vadd.f32 %v3843, %v4003
        %v4005 = vpop.f32.mrb[0].mxu0
        %4006 = vmatprep.mubr.bf16.mxu0 0
        %4007 = vmatmul.mubr.bf16.gmra.mrb[0].mxu0 %v787
        %v4008 = vpop.f32.mrb[0].mxu0
        %v4009 = vadd.f32 %v3848, %v4008
        %v4010 = vpop.f32.mrb[0].mxu0
        %v4011 = vpop.f32.mrb[0].mxu0
        %v4012 = vadd.f32 %v3851, %v4011
        %v4013 = vpop.f32.mrb[0].mxu0
        %4014 = vmatprep.mubr.bf16.mxu0 0
        %4015 = vmatmul.mubr.bf16.gmra.mrb[0].mxu0 %v790
        %v4016 = vpop.f32.mrb[0].mxu0
        %v4017 = vadd.f32 %v3856, %v4016
        %v4018 = vpop.f32.mrb[0].mxu0
        %v4019 = vpop.f32.mrb[0].mxu0
        %v4020 = vadd.f32 %v3859, %v4019
        %v4021 = vpop.f32.mrb[0].mxu0
        %4022 = vmatprep.mubr.bf16.mxu0 0
        %4023 = vmatmul.mubr.bf16.gmra.mrb[0].mxu0 %v1879
        %v4024 = vpop.f32.mrb[0].mxu0
        %v4025 = vadd.f32 %v3864, %v4024
        %v4026 = vpop.f32.mrb[0].mxu0
        %v4027 = vpop.f32.mrb[0].mxu0
        %v4028 = vadd.f32 %v3867, %v4027
        %v4029 = vpop.f32.mrb[0].mxu0
        %4030 = vmatprep.mubr.bf16.mxu0 0
        %4031 = vmatmul.mubr.bf16.gmra.mrb[0].mxu0 %v2432
        %v4032 = vpop.f32.mrb[0].mxu0
        %v4033 = vadd.f32 %v3872, %v4032
        %v4034 = vpop.f32.mrb[0].mxu0
        %v4035 = vpop.f32.mrb[0].mxu0
        %v4036 = vadd.f32 %v3875, %v4035
        %v4037 = vpop.f32.mrb[0].mxu0
        %4038 = vmatprep.mubr.bf16.mxu0 0
        %4039 = vmatmul.mubr.bf16.gmra.mrb[0].mxu0 %v2435
        %v4040 = vpop.f32.mrb[0].mxu0
        %v4041 = vadd.f32 %v3880, %v4040
        %v4042 = vpop.f32.mrb[0].mxu0
        %v4043 = vpop.f32.mrb[0].mxu0
        %v4044 = vadd.f32 %v3883, %v4043
        %v4045 = vpop.f32.mrb[0].mxu0
        %4046 = vmatprep.mubr.bf16.mxu0 0
        %4047 = vmatmul.mubr.bf16.gmra.mrb[0].mxu0 %v2438
        %v4048 = vpop.f32.mrb[0].mxu0
        %v4049 = vadd.f32 %v3888, %v4048
        %v4050 = vpop.f32.mrb[0].mxu0
        %v4051 = vpop.f32.mrb[0].mxu0
        %v4052 = vadd.f32 %v3891, %v4051
        %v4053 = vpop.f32.mrb[0].mxu0
        %4054 = vmatprep.mubr.bf16.mxu0 0
        %4055 = vmatmul.mubr.bf16.gmra.mrb[0].mxu0 %v3547
        %v4056 = vpop.f32.mrb[0].mxu0
        %v4057 = vadd.f32 %v3896, %v4056
        %v4058 = vpop.f32.mrb[0].mxu0
        %v4059 = vpop.f32.mrb[0].mxu0
        %v4060 = vadd.f32 %v3899, %v4059
        %v4061 = vpop.f32.mrb[0].mxu0
        %4062 = vdwg.mxu0
        %v4063 = vadd.f32 %v3513, %v3937
        %v4064 = vadd.f32 %v3514, %v3940
        %v4065 = vadd.f32 %v3515, %v3945
        %v4066 = vadd.f32 %v3516, %v3948
        %v4067 = vadd.f32 %v3517, %v3953
        %v4068 = vadd.f32 %v3518, %v3956
        %v4069 = vadd.f32 %v3519, %v3961
        %v4070 = vadd.f32 %v3520, %v3964
        %v4071 = vadd.f32 %v3521, %v3969
        %v4072 = vadd.f32 %v3522, %v3972
        %v4073 = vadd.f32 %v3523, %v3977
        %v4074 = vadd.f32 %v3524, %v3980
        %v4075 = vadd.f32 %v3525, %v3985
        %v4076 = vadd.f32 %v3526, %v3988
        %v4077 = vadd.f32 %v3527, %v3993
        %v4078 = vadd.f32 %v3528, %v3996
        %v4079 = vadd.f32 %v3529, %v4001
        %v4080 = vadd.f32 %v3530, %v4004
        %v4081 = vadd.f32 %v3531, %v4009
        %v4082 = vadd.f32 %v3532, %v4012
        %v4083 = vadd.f32 %v3533, %v4017
        %v4084 = vadd.f32 %v3534, %v4020
        %v4085 = vadd.f32 %v3535, %v4025
        %v4086 = vadd.f32 %v3536, %v4028
        %v4087 = vadd.f32 %v3537, %v4033
        %v4088 = vadd.f32 %v3538, %v4036
        %v4089 = vadd.f32 %v3539, %v4041
        %v4090 = vadd.f32 %v3540, %v4044
        %v4091 = vadd.f32 %v3541, %v4049
        %v4092 = vadd.f32 %v3542, %v4052
        %v4093 = vadd.f32 %v3543, %v4057
        %v4094 = vadd.f32 %v3544, %v4060
        %v4095 = vpack.c.bf16 %v637, %v596
        %v4096 = vpack.c.bf16 %v473, 0.0
        %v4097 = vpack.c.bf16 %v735, %v694
        %v4098 = vpack.c.bf16 %v639, %v638
        %v4099 = vpack.c.bf16 %v475, %v474
        %v4100 = vpack.c.bf16 %v737, %v736
        %v4101 = vpack.c.bf16 %v641, %v640
        %v4102 = vpack.c.bf16 %v477, %v476
        %v4103 = vpack.c.bf16 %v739, %v738
        %v4104 = vpack.c.bf16 %v643, %v642
        %v4105 = vpack.c.bf16 %v479, %v478
        %v4106 = vpack.c.bf16 %v741, %v740
        %s4107 = scalar_lea.vmem [#allocation8], 1152
        %v4108 = vld [vmem:[%s4107] sm:$0xf]
        %v4109 = vld [vmem:[%s4107 + $0x4] sm:$0xf]
        %v4110 = vld [vmem:[%s4107 + $0x8] sm:$0xf]
        %v4111 = vld [vmem:[%s4107 + $0xc] sm:$0xf]
        %v4112 = vld [vmem:[%s4107 + $0x10] sm:$0xf]
        %v4113 = vld [vmem:[%s4107 + $0x14] sm:$0xf]
        %v4114 = vld [vmem:[%s4107 + $0x18] sm:$0xf]
        %v4115 = vld [vmem:[%s4107 + $0x1c] sm:$0xf]
        %v4116 = vld [vmem:[%s4107 + $0x20] sm:$0xf]
        %v4117 = vld [vmem:[%s4107 + $0x24] sm:$0xf]
        %v4118 = vld [vmem:[%s4107 + $0x28] sm:$0xf]
        %v4119 = vld [vmem:[%s4107 + $0x2c] sm:$0xf]
        %v4120 = vld [vmem:[%s4107 + $0x30] sm:$0xf]
        %v4121 = vld [vmem:[%s4107 + $0x34] sm:$0xf]
        %v4122 = vld [vmem:[%s4107 + $0x38] sm:$0xf]
        %v4123 = vld [vmem:[%s4107 + $0x3c] sm:$0xf]
        %v4124 = vld [vmem:[%s4107 + $0x40] sm:$0xf]
        %v4125 = vld [vmem:[%s4107 + $0x44] sm:$0xf]
        %v4126 = vld [vmem:[%s4107 + $0x48] sm:$0xf]
        %v4127 = vld [vmem:[%s4107 + $0x4c] sm:$0xf]
        %v4128 = vld [vmem:[%s4107 + $0x50] sm:$0xf]
        %v4129 = vld [vmem:[%s4107 + $0x54] sm:$0xf]
        %v4130 = vld [vmem:[%s4107 + $0x58] sm:$0xf]
        %v4131 = vld [vmem:[%s4107 + $0x5c] sm:$0xf]
        %v4132 = vld [vmem:[%s4107 + $0x60] sm:$0xf]
        %v4133 = vld [vmem:[%s4107 + $0x64] sm:$0xf]
        %v4134 = vld [vmem:[%s4107 + $0x68] sm:$0xf]
        %v4135 = vld [vmem:[%s4107 + $0x6c] sm:$0xf]
        %v4136 = vld [vmem:[%s4107 + $0x70] sm:$0xf]
        %v4137 = vld [vmem:[%s4107 + $0x74] sm:$0xf]
        %v4138 = vld [vmem:[%s4107 + $0x78] sm:$0xf]
        %v4139 = vld [vmem:[%s4107 + $0x7c] sm:$0xf]
        %v4140 = vld [vmem:[%s4107 + $0x80] sm:$0xf]
        %v4141 = vld [vmem:[%s4107 + $0x84] sm:$0xf]
        %v4142 = vld [vmem:[%s4107 + $0x88] sm:$0xf]
        %v4143 = vld [vmem:[%s4107 + $0x8c] sm:$0xf]
        %v4144 = vld [vmem:[%s4107 + $0x90] sm:$0xf]
        %v4145 = vld [vmem:[%s4107 + $0x94] sm:$0xf]
        %v4146 = vld [vmem:[%s4107 + $0x98] sm:$0xf]
        %v4147 = vld [vmem:[%s4107 + $0x9c] sm:$0xf]
        %v4148 = vld [vmem:[%s4107 + $0xa0] sm:$0xf]
        %v4149 = vld [vmem:[%s4107 + $0xa4] sm:$0xf]
        %v4150 = vld [vmem:[%s4107 + $0xa8] sm:$0xf]
        %v4151 = vld [vmem:[%s4107 + $0xac] sm:$0xf]
        %v4152 = vld [vmem:[%s4107 + $0xb0] sm:$0xf]
        %v4153 = vld [vmem:[%s4107 + $0xb4] sm:$0xf]
        %v4154 = vld [vmem:[%s4107 + $0xb8] sm:$0xf]
        %v4155 = vld [vmem:[%s4107 + $0xbc] sm:$0xf]
        %v4204 = vunpack.c.l.b16 %v4108
        %v4205 = vunpack.c.l.b16 %v4109
        %v4206 = vunpack.c.l.b16 %v4110
        %v4207 = vunpack.c.l.b16 %v4111
        %v4208 = vunpack.c.l.b16 %v4112
        %v4209 = vunpack.c.l.b16 %v4113
        %v4210 = vunpack.c.l.b16 %v4114
        %v4211 = vunpack.c.l.b16 %v4115
        %v4212 = vunpack.c.l.b16 %v4116
        %v4213 = vunpack.c.l.b16 %v4117
        %v4214 = vunpack.c.l.b16 %v4118
        %v4215 = vunpack.c.l.b16 %v4119
        %v4216 = vunpack.c.l.b16 %v4120
        %v4217 = vunpack.c.l.b16 %v4121
        %v4218 = vunpack.c.l.b16 %v4122
        %v4219 = vunpack.c.l.b16 %v4123
        %v4220 = vunpack.c.l.b16 %v4124
        %v4221 = vunpack.c.l.b16 %v4125
        %v4222 = vunpack.c.l.b16 %v4126
        %v4223 = vunpack.c.l.b16 %v4127
        %v4224 = vunpack.c.l.b16 %v4128
        %v4225 = vunpack.c.l.b16 %v4129
        %v4226 = vunpack.c.l.b16 %v4130
        %v4227 = vunpack.c.l.b16 %v4131
        %v4228 = vunpack.c.l.b16 %v4132
        %v4229 = vunpack.c.l.b16 %v4133
        %v4230 = vunpack.c.l.b16 %v4134
        %v4231 = vunpack.c.l.b16 %v4135
        %v4232 = vunpack.c.l.b16 %v4136
        %v4233 = vunpack.c.l.b16 %v4137
        %v4234 = vunpack.c.l.b16 %v4138
        %v4235 = vunpack.c.l.b16 %v4139
        %v4236 = vunpack.c.l.b16 %v4140
        %v4237 = vunpack.c.l.b16 %v4141
        %v4238 = vunpack.c.l.b16 %v4142
        %v4239 = vunpack.c.l.b16 %v4143
        %v4240 = vunpack.c.l.b16 %v4144
        %v4241 = vunpack.c.l.b16 %v4145
        %v4242 = vunpack.c.l.b16 %v4146
        %v4243 = vunpack.c.l.b16 %v4147
        %v4244 = vunpack.c.l.b16 %v4148
        %v4245 = vunpack.c.l.b16 %v4149
        %v4246 = vunpack.c.l.b16 %v4150
        %v4247 = vunpack.c.l.b16 %v4151
        %v4248 = vunpack.c.l.b16 %v4152
        %v4249 = vunpack.c.l.b16 %v4153
        %v4250 = vunpack.c.l.b16 %v4154
        %v4251 = vunpack.c.l.b16 %v4155
        %v4252 = vpack.c.b16 %v4205, %v4204
        %v4253 = vpack.c.b16 %v4207, %v4206
        %v4254 = vpack.c.b16 %v4209, %v4208
        %v4255 = vpack.c.b16 %v4211, %v4210
        %v4256 = vpack.c.b16 %v4213, %v4212
        %v4257 = vpack.c.b16 %v4215, %v4214
        %v4258 = vpack.c.b16 %v4217, %v4216
        %v4259 = vpack.c.b16 %v4219, %v4218
        %v4260 = vpack.c.b16 %v4221, %v4220
        %v4261 = vpack.c.b16 %v4223, %v4222
        %v4262 = vpack.c.b16 %v4225, %v4224
        %v4263 = vpack.c.b16 %v4227, %v4226
        %v4264 = vpack.c.b16 %v4229, %v4228
        %v4265 = vpack.c.b16 %v4231, %v4230
        %v4266 = vpack.c.b16 %v4233, %v4232
        %v4267 = vpack.c.b16 %v4235, %v4234
        %v4268 = vpack.c.b16 %v4237, %v4236
        %v4269 = vpack.c.b16 %v4239, %v4238
        %v4270 = vpack.c.b16 %v4241, %v4240
        %v4271 = vpack.c.b16 %v4243, %v4242
        %v4272 = vpack.c.b16 %v4245, %v4244
        %v4273 = vpack.c.b16 %v4247, %v4246
        %v4274 = vpack.c.b16 %v4249, %v4248
        %v4275 = vpack.c.b16 %v4251, %v4250
        %4300 = vmatprep.subr.bf16.mxu0 0
        %4301 = vmatpush1.bf16.msra.mxu0 %v4252
        %4302 = vmatprep.subr.bf16.mxu0 0
        %4303 = vmatpush1.bf16.msra.mxu0 %v4253
        %4304 = vmatprep.subr.bf16.mxu0 0
        %4305 = vmatpush1.bf16.msra.mxu0 %v4254
        %4306 = vmatprep.subr.bf16.mxu0 0
        %4307 = vmatpush1.bf16.msra.mxu0 %v4255
        %4308 = vmatprep.subr.bf16.mxu0 0
        %4309 = vmatpush1.bf16.msra.mxu0 %v4256
        %4310 = vmatprep.subr.bf16.mxu0 0
        %4311 = vmatpush1.bf16.msra.mxu0 %v4257
        %4312 = vmatprep.subr.bf16.mxu0 0
        %4313 = vmatpush1.bf16.msra.mxu0 %v4258
        %4314 = vmatprep.subr.bf16.mxu0 0
        %4315 = vmatpush1.bf16.msra.mxu0 %v4259
        %4316 = vmatprep.subr.bf16.mxu0 0
        %4317 = vmatpush1.bf16.msra.mxu0 %v4260
        %4318 = vmatprep.subr.bf16.mxu0 0
        %4319 = vmatpush1.bf16.msra.mxu0 %v4261
        %4320 = vmatprep.subr.bf16.mxu0 0
        %4321 = vmatpush1.bf16.msra.mxu0 %v4262
        %4322 = vmatprep.subr.bf16.mxu0 0
        %4323 = vmatpush1.bf16.msra.mxu0 %v4263
        %4324 = vmatprep.subr.bf16.mxu0 0
        %4325 = vmatpush1.bf16.msra.mxu0 %v4264
        %4326 = vmatprep.subr.bf16.mxu0 0
        %4327 = vmatpush1.bf16.msra.mxu0 %v4265
        %4328 = vmatprep.subr.bf16.mxu0 0
        %4329 = vmatpush1.bf16.msra.mxu0 %v4266
        %4330 = vmatprep.subr.bf16.mxu0 0
        %4331 = vmatpush1.bf16.msra.mxu0 %v4267
        %4332 = vmatprep.mubr.bf16.mxu0 %v768
        %4333 = vmatmul.mubr.bf16.gmra.mrb[0].mxu0 %v767
        %v4334 = vpop.f32.mrb[0].mxu0
        %v4335 = vadd.f32 0.0, %v4334
        %v4336 = vpop.f32.mrb[0].mxu0
        %v4337 = vpop.f32.mrb[0].mxu0
        %v4338 = vadd.f32 0.0, %v4337
        %v4339 = vpop.f32.mrb[0].mxu0
        %4340 = vmatprep.mubr.bf16.mxu0 %v771
        %4341 = vmatmul.mubr.bf16.gmra.mrb[0].mxu0 %v770
        %v4342 = vpop.f32.mrb[0].mxu0
        %v4343 = vadd.f32 0.0, %v4342
        %v4344 = vpop.f32.mrb[0].mxu0
        %v4345 = vpop.f32.mrb[0].mxu0
        %v4346 = vadd.f32 0.0, %v4345
        %v4347 = vpop.f32.mrb[0].mxu0
        %4348 = vmatprep.mubr.bf16.mxu0 %v774
        %4349 = vmatmul.mubr.bf16.gmra.mrb[0].mxu0 %v773
        %v4350 = vpop.f32.mrb[0].mxu0
        %v4351 = vadd.f32 0.0, %v4350
        %v4352 = vpop.f32.mrb[0].mxu0
        %v4353 = vpop.f32.mrb[0].mxu0
        %v4354 = vadd.f32 0.0, %v4353
        %v4355 = vpop.f32.mrb[0].mxu0
        %4356 = vmatprep.mubr.bf16.mxu0 %v777
        %4357 = vmatmul.mubr.bf16.gmra.mrb[0].mxu0 %v776
        %v4358 = vpop.f32.mrb[0].mxu0
        %v4359 = vadd.f32 0.0, %v4358
        %v4360 = vpop.f32.mrb[0].mxu0
        %v4361 = vpop.f32.mrb[0].mxu0
        %v4362 = vadd.f32 0.0, %v4361
        %v4363 = vpop.f32.mrb[0].mxu0
        %4364 = vmatprep.mubr.bf16.mxu0 %v780
        %4365 = vmatmul.mubr.bf16.gmra.mrb[0].mxu0 %v779
        %v4366 = vpop.f32.mrb[0].mxu0
        %v4367 = vadd.f32 0.0, %v4366
        %v4368 = vpop.f32.mrb[0].mxu0
        %v4369 = vpop.f32.mrb[0].mxu0
        %v4370 = vadd.f32 0.0, %v4369
        %v4371 = vpop.f32.mrb[0].mxu0
        %4372 = vmatprep.mubr.bf16.mxu0 %v783
        %4373 = vmatmul.mubr.bf16.gmra.mrb[0].mxu0 %v782
        %v4374 = vpop.f32.mrb[0].mxu0
        %v4375 = vadd.f32 0.0, %v4374
        %v4376 = vpop.f32.mrb[0].mxu0
        %v4377 = vpop.f32.mrb[0].mxu0
        %v4378 = vadd.f32 0.0, %v4377
        %v4379 = vpop.f32.mrb[0].mxu0
        %4380 = vmatprep.mubr.bf16.mxu0 %v786
        %4381 = vmatmul.mubr.bf16.gmra.mrb[0].mxu0 %v785
        %v4382 = vpop.f32.mrb[0].mxu0
        %v4383 = vadd.f32 0.0, %v4382
        %v4384 = vpop.f32.mrb[0].mxu0
        %v4385 = vpop.f32.mrb[0].mxu0
        %v4386 = vadd.f32 0.0, %v4385
        %v4387 = vpop.f32.mrb[0].mxu0
        %4388 = vmatprep.mubr.bf16.mxu0 %v789
        %4389 = vmatmul.mubr.bf16.gmra.mrb[0].mxu0 %v788
        %v4390 = vpop.f32.mrb[0].mxu0
        %v4391 = vadd.f32 0.0, %v4390
        %v4392 = vpop.f32.mrb[0].mxu0
        %v4393 = vpop.f32.mrb[0].mxu0
        %v4394 = vadd.f32 0.0, %v4393
        %v4395 = vpop.f32.mrb[0].mxu0
        %4396 = vmatprep.mubr.bf16.mxu0 %v2428
        %4397 = vmatmul.mubr.bf16.gmra.mrb[0].mxu0 %v2427
        %v4398 = vpop.f32.mrb[0].mxu0
        %v4399 = vadd.f32 0.0, %v4398
        %v4400 = vpop.f32.mrb[0].mxu0
        %v4401 = vpop.f32.mrb[0].mxu0
        %v4402 = vadd.f32 0.0, %v4401
        %v4403 = vpop.f32.mrb[0].mxu0
        %4404 = vmatprep.mubr.bf16.mxu0 %v2431
        %4405 = vmatmul.mubr.bf16.gmra.mrb[0].mxu0 %v2430
        %v4406 = vpop.f32.mrb[0].mxu0
        %v4407 = vadd.f32 0.0, %v4406
        %v4408 = vpop.f32.mrb[0].mxu0
        %v4409 = vpop.f32.mrb[0].mxu0
        %v4410 = vadd.f32 0.0, %v4409
        %v4411 = vpop.f32.mrb[0].mxu0
        %4412 = vmatprep.mubr.bf16.mxu0 %v2434
        %4413 = vmatmul.mubr.bf16.gmra.mrb[0].mxu0 %v2433
        %v4414 = vpop.f32.mrb[0].mxu0
        %v4415 = vadd.f32 0.0, %v4414
        %v4416 = vpop.f32.mrb[0].mxu0
        %v4417 = vpop.f32.mrb[0].mxu0
        %v4418 = vadd.f32 0.0, %v4417
        %v4419 = vpop.f32.mrb[0].mxu0
        %4420 = vmatprep.mubr.bf16.mxu0 %v2437
        %4421 = vmatmul.mubr.bf16.gmra.mrb[0].mxu0 %v2436
        %v4422 = vpop.f32.mrb[0].mxu0
        %v4423 = vadd.f32 0.0, %v4422
        %v4424 = vpop.f32.mrb[0].mxu0
        %v4425 = vpop.f32.mrb[0].mxu0
        %v4426 = vadd.f32 0.0, %v4425
        %v4427 = vpop.f32.mrb[0].mxu0
        %4428 = vmatprep.mubr.bf16.mxu0 %v4096
        %4429 = vmatmul.mubr.bf16.gmra.mrb[0].mxu0 %v4095
        %v4430 = vpop.f32.mrb[0].mxu0
        %v4431 = vadd.f32 0.0, %v4430
        %v4432 = vpop.f32.mrb[0].mxu0
        %v4433 = vpop.f32.mrb[0].mxu0
        %v4434 = vadd.f32 0.0, %v4433
        %v4435 = vpop.f32.mrb[0].mxu0
        %4436 = vmatprep.mubr.bf16.mxu0 %v4099
        %4437 = vmatmul.mubr.bf16.gmra.mrb[0].mxu0 %v4098
        %v4438 = vpop.f32.mrb[0].mxu0
        %v4439 = vadd.f32 0.0, %v4438
        %v4440 = vpop.f32.mrb[0].mxu0
        %v4441 = vpop.f32.mrb[0].mxu0
        %v4442 = vadd.f32 0.0, %v4441
        %v4443 = vpop.f32.mrb[0].mxu0
        %4444 = vmatprep.mubr.bf16.mxu0 %v4102
        %4445 = vmatmul.mubr.bf16.gmra.mrb[0].mxu0 %v4101
        %v4446 = vpop.f32.mrb[0].mxu0
        %v4447 = vadd.f32 0.0, %v4446
        %v4448 = vpop.f32.mrb[0].mxu0
        %v4449 = vpop.f32.mrb[0].mxu0
        %v4450 = vadd.f32 0.0, %v4449
        %v4451 = vpop.f32.mrb[0].mxu0
        %4452 = vmatprep.mubr.bf16.mxu0 %v4105
        %4453 = vmatmul.mubr.bf16.gmra.mrb[0].mxu0 %v4104
        %v4454 = vpop.f32.mrb[0].mxu0
        %v4455 = vadd.f32 0.0, %v4454
        %v4456 = vpop.f32.mrb[0].mxu0
        %v4457 = vpop.f32.mrb[0].mxu0
        %v4458 = vadd.f32 0.0, %v4457
        %v4459 = vpop.f32.mrb[0].mxu0
        %4460 = vdwg.mxu0
        %4461 = vmatprep.subr.bf16.mxu0 0
        %4462 = vmatpush1.bf16.msra.mxu0 %v4268
        %4463 = vmatprep.subr.bf16.mxu0 0
        %4464 = vmatpush1.bf16.msra.mxu0 %v4269
        %4465 = vmatprep.subr.bf16.mxu0 0
        %4466 = vmatpush1.bf16.msra.mxu0 %v4270
        %4467 = vmatprep.subr.bf16.mxu0 0
        %4468 = vmatpush1.bf16.msra.mxu0 %v4271
        %4469 = vmatprep.subr.bf16.mxu0 0
        %4470 = vmatpush1.bf16.msra.mxu0 %v4272
        %4471 = vmatprep.subr.bf16.mxu0 0
        %4472 = vmatpush1.bf16.msra.mxu0 %v4273
        %4473 = vmatprep.subr.bf16.mxu0 0
        %4474 = vmatpush1.bf16.msra.mxu0 %v4274
        %4475 = vmatprep.subr.bf16.mxu0 0
        %4476 = vmatpush1.bf16.msra.mxu0 %v4275
        %4477 = vmatprep.subr.bf16.mxu0 0
        %4478 = vmatpush1.bf16.msra.mxu0 0
        %4479 = vmatprep.subr.bf16.mxu0 0
        %4480 = vmatpush1.bf16.msra.mxu0 0
        %4481 = vmatprep.subr.bf16.mxu0 0
        %4482 = vmatpush1.bf16.msra.mxu0 0
        %4483 = vmatprep.subr.bf16.mxu0 0
        %4484 = vmatpush1.bf16.msra.mxu0 0
        %4485 = vmatprep.subr.bf16.mxu0 0
        %4486 = vmatpush1.bf16.msra.mxu0 0
        %4487 = vmatprep.subr.bf16.mxu0 0
        %4488 = vmatpush1.bf16.msra.mxu0 0
        %4489 = vmatprep.subr.bf16.mxu0 0
        %4490 = vmatpush1.bf16.msra.mxu0 0
        %4491 = vmatprep.subr.bf16.mxu0 0
        %4492 = vmatpush1.bf16.msra.mxu0 0
        %4493 = vmatprep.mubr.bf16.mxu0 0
        %4494 = vmatmul.mubr.bf16.gmra.mrb[0].mxu0 %v769
        %v4495 = vpop.f32.mrb[0].mxu0
        %v4496 = vadd.f32 %v4335, %v4495
        %v4497 = vpop.f32.mrb[0].mxu0
        %v4498 = vpop.f32.mrb[0].mxu0
        %v4499 = vadd.f32 %v4338, %v4498
        %v4500 = vpop.f32.mrb[0].mxu0
        %4501 = vmatprep.mubr.bf16.mxu0 0
        %4502 = vmatmul.mubr.bf16.gmra.mrb[0].mxu0 %v772
        %v4503 = vpop.f32.mrb[0].mxu0
        %v4504 = vadd.f32 %v4343, %v4503
        %v4505 = vpop.f32.mrb[0].mxu0
        %v4506 = vpop.f32.mrb[0].mxu0
        %v4507 = vadd.f32 %v4346, %v4506
        %v4508 = vpop.f32.mrb[0].mxu0
        %4509 = vmatprep.mubr.bf16.mxu0 0
        %4510 = vmatmul.mubr.bf16.gmra.mrb[0].mxu0 %v775
        %v4511 = vpop.f32.mrb[0].mxu0
        %v4512 = vadd.f32 %v4351, %v4511
        %v4513 = vpop.f32.mrb[0].mxu0
        %v4514 = vpop.f32.mrb[0].mxu0
        %v4515 = vadd.f32 %v4354, %v4514
        %v4516 = vpop.f32.mrb[0].mxu0
        %4517 = vmatprep.mubr.bf16.mxu0 0
        %4518 = vmatmul.mubr.bf16.gmra.mrb[0].mxu0 %v778
        %v4519 = vpop.f32.mrb[0].mxu0
        %v4520 = vadd.f32 %v4359, %v4519
        %v4521 = vpop.f32.mrb[0].mxu0
        %v4522 = vpop.f32.mrb[0].mxu0
        %v4523 = vadd.f32 %v4362, %v4522
        %v4524 = vpop.f32.mrb[0].mxu0
        %4525 = vmatprep.mubr.bf16.mxu0 0
        %4526 = vmatmul.mubr.bf16.gmra.mrb[0].mxu0 %v781
        %v4527 = vpop.f32.mrb[0].mxu0
        %v4528 = vadd.f32 %v4367, %v4527
        %v4529 = vpop.f32.mrb[0].mxu0
        %v4530 = vpop.f32.mrb[0].mxu0
        %v4531 = vadd.f32 %v4370, %v4530
        %v4532 = vpop.f32.mrb[0].mxu0
        %4533 = vmatprep.mubr.bf16.mxu0 0
        %4534 = vmatmul.mubr.bf16.gmra.mrb[0].mxu0 %v784
        %v4535 = vpop.f32.mrb[0].mxu0
        %v4536 = vadd.f32 %v4375, %v4535
        %v4537 = vpop.f32.mrb[0].mxu0
        %v4538 = vpop.f32.mrb[0].mxu0
        %v4539 = vadd.f32 %v4378, %v4538
        %v4540 = vpop.f32.mrb[0].mxu0
        %4541 = vmatprep.mubr.bf16.mxu0 0
        %4542 = vmatmul.mubr.bf16.gmra.mrb[0].mxu0 %v787
        %v4543 = vpop.f32.mrb[0].mxu0
        %v4544 = vadd.f32 %v4383, %v4543
        %v4545 = vpop.f32.mrb[0].mxu0
        %v4546 = vpop.f32.mrb[0].mxu0
        %v4547 = vadd.f32 %v4386, %v4546
        %v4548 = vpop.f32.mrb[0].mxu0
        %4549 = vmatprep.mubr.bf16.mxu0 0
        %4550 = vmatmul.mubr.bf16.gmra.mrb[0].mxu0 %v790
        %v4551 = vpop.f32.mrb[0].mxu0
        %v4552 = vadd.f32 %v4391, %v4551
        %v4553 = vpop.f32.mrb[0].mxu0
        %v4554 = vpop.f32.mrb[0].mxu0
        %v4555 = vadd.f32 %v4394, %v4554
        %v4556 = vpop.f32.mrb[0].mxu0
        %4557 = vmatprep.mubr.bf16.mxu0 0
        %4558 = vmatmul.mubr.bf16.gmra.mrb[0].mxu0 %v2429
        %v4559 = vpop.f32.mrb[0].mxu0
        %v4560 = vadd.f32 %v4399, %v4559
        %v4561 = vpop.f32.mrb[0].mxu0
        %v4562 = vpop.f32.mrb[0].mxu0
        %v4563 = vadd.f32 %v4402, %v4562
        %v4564 = vpop.f32.mrb[0].mxu0
        %4565 = vmatprep.mubr.bf16.mxu0 0
        %4566 = vmatmul.mubr.bf16.gmra.mrb[0].mxu0 %v2432
        %v4567 = vpop.f32.mrb[0].mxu0
        %v4568 = vadd.f32 %v4407, %v4567
        %v4569 = vpop.f32.mrb[0].mxu0
        %v4570 = vpop.f32.mrb[0].mxu0
        %v4571 = vadd.f32 %v4410, %v4570
        %v4572 = vpop.f32.mrb[0].mxu0
        %4573 = vmatprep.mubr.bf16.mxu0 0
        %4574 = vmatmul.mubr.bf16.gmra.mrb[0].mxu0 %v2435
        %v4575 = vpop.f32.mrb[0].mxu0
        %v4576 = vadd.f32 %v4415, %v4575
        %v4577 = vpop.f32.mrb[0].mxu0
        %v4578 = vpop.f32.mrb[0].mxu0
        %v4579 = vadd.f32 %v4418, %v4578
        %v4580 = vpop.f32.mrb[0].mxu0
        %4581 = vmatprep.mubr.bf16.mxu0 0
        %4582 = vmatmul.mubr.bf16.gmra.mrb[0].mxu0 %v2438
        %v4583 = vpop.f32.mrb[0].mxu0
        %v4584 = vadd.f32 %v4423, %v4583
        %v4585 = vpop.f32.mrb[0].mxu0
        %v4586 = vpop.f32.mrb[0].mxu0
        %v4587 = vadd.f32 %v4426, %v4586
        %v4588 = vpop.f32.mrb[0].mxu0
        %4589 = vmatprep.mubr.bf16.mxu0 0
        %4590 = vmatmul.mubr.bf16.gmra.mrb[0].mxu0 %v4097
        %v4591 = vpop.f32.mrb[0].mxu0
        %v4592 = vadd.f32 %v4431, %v4591
        %v4593 = vpop.f32.mrb[0].mxu0
        %v4594 = vpop.f32.mrb[0].mxu0
        %v4595 = vadd.f32 %v4434, %v4594
        %v4596 = vpop.f32.mrb[0].mxu0
        %4597 = vmatprep.mubr.bf16.mxu0 0
        %4598 = vmatmul.mubr.bf16.gmra.mrb[0].mxu0 %v4100
        %v4599 = vpop.f32.mrb[0].mxu0
        %v4600 = vadd.f32 %v4439, %v4599
        %v4601 = vpop.f32.mrb[0].mxu0
        %v4602 = vpop.f32.mrb[0].mxu0
        %v4603 = vadd.f32 %v4442, %v4602
        %v4604 = vpop.f32.mrb[0].mxu0
        %4605 = vmatprep.mubr.bf16.mxu0 0
        %4606 = vmatmul.mubr.bf16.gmra.mrb[0].mxu0 %v4103
        %v4607 = vpop.f32.mrb[0].mxu0
        %v4608 = vadd.f32 %v4447, %v4607
        %v4609 = vpop.f32.mrb[0].mxu0
        %v4610 = vpop.f32.mrb[0].mxu0
        %v4611 = vadd.f32 %v4450, %v4610
        %v4612 = vpop.f32.mrb[0].mxu0
        %4613 = vmatprep.mubr.bf16.mxu0 0
        %4614 = vmatmul.mubr.bf16.gmra.mrb[0].mxu0 %v4106
        %v4615 = vpop.f32.mrb[0].mxu0
        %v4616 = vadd.f32 %v4455, %v4615
        %v4617 = vpop.f32.mrb[0].mxu0
        %v4618 = vpop.f32.mrb[0].mxu0
        %v4619 = vadd.f32 %v4458, %v4618
        %v4620 = vpop.f32.mrb[0].mxu0
        %4621 = vdwg.mxu0
        %v4622 = vadd.f32 %v4063, %v4496
        %v4623 = vadd.f32 %v4064, %v4499
        %v4624 = vadd.f32 %v4065, %v4504
        %v4625 = vadd.f32 %v4066, %v4507
        %v4626 = vadd.f32 %v4067, %v4512
        %v4627 = vadd.f32 %v4068, %v4515
        %v4628 = vadd.f32 %v4069, %v4520
        %v4629 = vadd.f32 %v4070, %v4523
        %v4630 = vadd.f32 %v4071, %v4528
        %v4631 = vadd.f32 %v4072, %v4531
        %v4632 = vadd.f32 %v4073, %v4536
        %v4633 = vadd.f32 %v4074, %v4539
        %v4634 = vadd.f32 %v4075, %v4544
        %v4635 = vadd.f32 %v4076, %v4547
        %v4636 = vadd.f32 %v4077, %v4552
        %v4637 = vadd.f32 %v4078, %v4555
        %v4638 = vadd.f32 %v4079, %v4560
        %v4639 = vadd.f32 %v4080, %v4563
        %v4640 = vadd.f32 %v4081, %v4568
        %v4641 = vadd.f32 %v4082, %v4571
        %v4642 = vadd.f32 %v4083, %v4576
        %v4643 = vadd.f32 %v4084, %v4579
        %v4644 = vadd.f32 %v4085, %v4584
        %v4645 = vadd.f32 %v4086, %v4587
        %v4646 = vadd.f32 %v4087, %v4592
        %v4647 = vadd.f32 %v4088, %v4595
        %v4648 = vadd.f32 %v4089, %v4600
        %v4649 = vadd.f32 %v4090, %v4603
        %v4650 = vadd.f32 %v4091, %v4608
        %v4651 = vadd.f32 %v4092, %v4611
        %v4652 = vadd.f32 %v4093, %v4616
        %v4653 = vadd.f32 %v4094, %v4619
        %v4654 = vpack.c.bf16 %v638, %v637
        %v4655 = vpack.c.bf16 %v474, %v473
        %v4656 = vpack.c.bf16 %v736, %v735
        %v4657 = vpack.c.bf16 %v640, %v639
        %v4658 = vpack.c.bf16 %v476, %v475
        %v4659 = vpack.c.bf16 %v738, %v737
        %v4660 = vpack.c.bf16 %v642, %v641
        %v4661 = vpack.c.bf16 %v478, %v477
        %v4662 = vpack.c.bf16 %v740, %v739
        %v4663 = vpack.c.bf16 %v644, %v643
        %v4664 = vpack.c.bf16 %v480, %v479
        %v4665 = vpack.c.bf16 %v742, %v741
        %s4666 = scalar_lea.vmem [#allocation8], 1344
        %v4667 = vld [vmem:[%s4666] sm:$0xf]
        %v4668 = vld [vmem:[%s4666 + $0x4] sm:$0xf]
        %v4669 = vld [vmem:[%s4666 + $0x8] sm:$0xf]
        %v4670 = vld [vmem:[%s4666 + $0xc] sm:$0xf]
        %v4671 = vld [vmem:[%s4666 + $0x10] sm:$0xf]
        %v4672 = vld [vmem:[%s4666 + $0x14] sm:$0xf]
        %v4673 = vld [vmem:[%s4666 + $0x18] sm:$0xf]
        %v4674 = vld [vmem:[%s4666 + $0x1c] sm:$0xf]
        %v4675 = vld [vmem:[%s4666 + $0x20] sm:$0xf]
        %v4676 = vld [vmem:[%s4666 + $0x24] sm:$0xf]
        %v4677 = vld [vmem:[%s4666 + $0x28] sm:$0xf]
        %v4678 = vld [vmem:[%s4666 + $0x2c] sm:$0xf]
        %v4679 = vld [vmem:[%s4666 + $0x30] sm:$0xf]
        %v4680 = vld [vmem:[%s4666 + $0x34] sm:$0xf]
        %v4681 = vld [vmem:[%s4666 + $0x38] sm:$0xf]
        %v4682 = vld [vmem:[%s4666 + $0x3c] sm:$0xf]
        %v4683 = vld [vmem:[%s4666 + $0x40] sm:$0xf]
        %v4684 = vld [vmem:[%s4666 + $0x44] sm:$0xf]
        %v4685 = vld [vmem:[%s4666 + $0x48] sm:$0xf]
        %v4686 = vld [vmem:[%s4666 + $0x4c] sm:$0xf]
        %v4687 = vld [vmem:[%s4666 + $0x50] sm:$0xf]
        %v4688 = vld [vmem:[%s4666 + $0x54] sm:$0xf]
        %v4689 = vld [vmem:[%s4666 + $0x58] sm:$0xf]
        %v4690 = vld [vmem:[%s4666 + $0x5c] sm:$0xf]
        %v4691 = vld [vmem:[%s4666 + $0x60] sm:$0xf]
        %v4692 = vld [vmem:[%s4666 + $0x64] sm:$0xf]
        %v4693 = vld [vmem:[%s4666 + $0x68] sm:$0xf]
        %v4694 = vld [vmem:[%s4666 + $0x6c] sm:$0xf]
        %v4695 = vld [vmem:[%s4666 + $0x70] sm:$0xf]
        %v4696 = vld [vmem:[%s4666 + $0x74] sm:$0xf]
        %v4697 = vld [vmem:[%s4666 + $0x78] sm:$0xf]
        %v4698 = vld [vmem:[%s4666 + $0x7c] sm:$0xf]
        %v4699 = vld [vmem:[%s4666 + $0x80] sm:$0xf]
        %v4700 = vld [vmem:[%s4666 + $0x84] sm:$0xf]
        %v4701 = vld [vmem:[%s4666 + $0x88] sm:$0xf]
        %v4702 = vld [vmem:[%s4666 + $0x8c] sm:$0xf]
        %v4703 = vld [vmem:[%s4666 + $0x90] sm:$0xf]
        %v4704 = vld [vmem:[%s4666 + $0x94] sm:$0xf]
        %v4705 = vld [vmem:[%s4666 + $0x98] sm:$0xf]
        %v4706 = vld [vmem:[%s4666 + $0x9c] sm:$0xf]
        %v4707 = vld [vmem:[%s4666 + $0xa0] sm:$0xf]
        %v4708 = vld [vmem:[%s4666 + $0xa4] sm:$0xf]
        %v4709 = vld [vmem:[%s4666 + $0xa8] sm:$0xf]
        %v4710 = vld [vmem:[%s4666 + $0xac] sm:$0xf]
        %v4711 = vld [vmem:[%s4666 + $0xb0] sm:$0xf]
        %v4712 = vld [vmem:[%s4666 + $0xb4] sm:$0xf]
        %v4713 = vld [vmem:[%s4666 + $0xb8] sm:$0xf]
        %v4714 = vld [vmem:[%s4666 + $0xbc] sm:$0xf]
        %v4763 = vunpack.c.l.b16 %v4667
        %v4764 = vunpack.c.l.b16 %v4668
        %v4765 = vunpack.c.l.b16 %v4669
        %v4766 = vunpack.c.l.b16 %v4670
        %v4767 = vunpack.c.l.b16 %v4671
        %v4768 = vunpack.c.l.b16 %v4672
        %v4769 = vunpack.c.l.b16 %v4673
        %v4770 = vunpack.c.l.b16 %v4674
        %v4771 = vunpack.c.l.b16 %v4675
        %v4772 = vunpack.c.l.b16 %v4676
        %v4773 = vunpack.c.l.b16 %v4677
        %v4774 = vunpack.c.l.b16 %v4678
        %v4775 = vunpack.c.l.b16 %v4679
        %v4776 = vunpack.c.l.b16 %v4680
        %v4777 = vunpack.c.l.b16 %v4681
        %v4778 = vunpack.c.l.b16 %v4682
        %v4779 = vunpack.c.l.b16 %v4683
        %v4780 = vunpack.c.l.b16 %v4684
        %v4781 = vunpack.c.l.b16 %v4685
        %v4782 = vunpack.c.l.b16 %v4686
        %v4783 = vunpack.c.l.b16 %v4687
        %v4784 = vunpack.c.l.b16 %v4688
        %v4785 = vunpack.c.l.b16 %v4689
        %v4786 = vunpack.c.l.b16 %v4690
        %v4787 = vunpack.c.l.b16 %v4691
        %v4788 = vunpack.c.l.b16 %v4692
        %v4789 = vunpack.c.l.b16 %v4693
        %v4790 = vunpack.c.l.b16 %v4694
        %v4791 = vunpack.c.l.b16 %v4695
        %v4792 = vunpack.c.l.b16 %v4696
        %v4793 = vunpack.c.l.b16 %v4697
        %v4794 = vunpack.c.l.b16 %v4698
        %v4795 = vunpack.c.l.b16 %v4699
        %v4796 = vunpack.c.l.b16 %v4700
        %v4797 = vunpack.c.l.b16 %v4701
        %v4798 = vunpack.c.l.b16 %v4702
        %v4799 = vunpack.c.l.b16 %v4703
        %v4800 = vunpack.c.l.b16 %v4704
        %v4801 = vunpack.c.l.b16 %v4705
        %v4802 = vunpack.c.l.b16 %v4706
        %v4803 = vunpack.c.l.b16 %v4707
        %v4804 = vunpack.c.l.b16 %v4708
        %v4805 = vunpack.c.l.b16 %v4709
        %v4806 = vunpack.c.l.b16 %v4710
        %v4807 = vunpack.c.l.b16 %v4711
        %v4808 = vunpack.c.l.b16 %v4712
        %v4809 = vunpack.c.l.b16 %v4713
        %v4810 = vunpack.c.l.b16 %v4714
        %v4811 = vpack.c.b16 %v4764, %v4763
        %v4812 = vpack.c.b16 %v4766, %v4765
        %v4813 = vpack.c.b16 %v4768, %v4767
        %v4814 = vpack.c.b16 %v4770, %v4769
        %v4815 = vpack.c.b16 %v4772, %v4771
        %v4816 = vpack.c.b16 %v4774, %v4773
        %v4817 = vpack.c.b16 %v4776, %v4775
        %v4818 = vpack.c.b16 %v4778, %v4777
        %v4819 = vpack.c.b16 %v4780, %v4779
        %v4820 = vpack.c.b16 %v4782, %v4781
        %v4821 = vpack.c.b16 %v4784, %v4783
        %v4822 = vpack.c.b16 %v4786, %v4785
        %v4823 = vpack.c.b16 %v4788, %v4787
        %v4824 = vpack.c.b16 %v4790, %v4789
        %v4825 = vpack.c.b16 %v4792, %v4791
        %v4826 = vpack.c.b16 %v4794, %v4793
        %v4827 = vpack.c.b16 %v4796, %v4795
        %v4828 = vpack.c.b16 %v4798, %v4797
        %v4829 = vpack.c.b16 %v4800, %v4799
        %v4830 = vpack.c.b16 %v4802, %v4801
        %v4831 = vpack.c.b16 %v4804, %v4803
        %v4832 = vpack.c.b16 %v4806, %v4805
        %v4833 = vpack.c.b16 %v4808, %v4807
        %v4834 = vpack.c.b16 %v4810, %v4809
        %4859 = vmatprep.subr.bf16.mxu0 0
        %4860 = vmatpush1.bf16.msra.mxu0 %v4811
        %4861 = vmatprep.subr.bf16.mxu0 0
        %4862 = vmatpush1.bf16.msra.mxu0 %v4812
        %4863 = vmatprep.subr.bf16.mxu0 0
        %4864 = vmatpush1.bf16.msra.mxu0 %v4813
        %4865 = vmatprep.subr.bf16.mxu0 0
        %4866 = vmatpush1.bf16.msra.mxu0 %v4814
        %4867 = vmatprep.subr.bf16.mxu0 0
        %4868 = vmatpush1.bf16.msra.mxu0 %v4815
        %4869 = vmatprep.subr.bf16.mxu0 0
        %4870 = vmatpush1.bf16.msra.mxu0 %v4816
        %4871 = vmatprep.subr.bf16.mxu0 0
        %4872 = vmatpush1.bf16.msra.mxu0 %v4817
        %4873 = vmatprep.subr.bf16.mxu0 0
        %4874 = vmatpush1.bf16.msra.mxu0 %v4818
        %4875 = vmatprep.subr.bf16.mxu0 0
        %4876 = vmatpush1.bf16.msra.mxu0 %v4819
        %4877 = vmatprep.subr.bf16.mxu0 0
        %4878 = vmatpush1.bf16.msra.mxu0 %v4820
        %4879 = vmatprep.subr.bf16.mxu0 0
        %4880 = vmatpush1.bf16.msra.mxu0 %v4821
        %4881 = vmatprep.subr.bf16.mxu0 0
        %4882 = vmatpush1.bf16.msra.mxu0 %v4822
        %4883 = vmatprep.subr.bf16.mxu0 0
        %4884 = vmatpush1.bf16.msra.mxu0 %v4823
        %4885 = vmatprep.subr.bf16.mxu0 0
        %4886 = vmatpush1.bf16.msra.mxu0 %v4824
        %4887 = vmatprep.subr.bf16.mxu0 0
        %4888 = vmatpush1.bf16.msra.mxu0 %v4825
        %4889 = vmatprep.subr.bf16.mxu0 0
        %4890 = vmatpush1.bf16.msra.mxu0 %v4826
        %4891 = vmatprep.mubr.bf16.mxu0 %v864
        %4892 = vmatmul.mubr.bf16.gmra.mrb[0].mxu0 %v863
        %v4893 = vpop.f32.mrb[0].mxu0
        %v4894 = vadd.f32 0.0, %v4893
        %v4895 = vpop.f32.mrb[0].mxu0
        %v4896 = vpop.f32.mrb[0].mxu0
        %v4897 = vadd.f32 0.0, %v4896
        %v4898 = vpop.f32.mrb[0].mxu0
        %4899 = vmatprep.mubr.bf16.mxu0 %v867
        %4900 = vmatmul.mubr.bf16.gmra.mrb[0].mxu0 %v866
        %v4901 = vpop.f32.mrb[0].mxu0
        %v4902 = vadd.f32 0.0, %v4901
        %v4903 = vpop.f32.mrb[0].mxu0
        %v4904 = vpop.f32.mrb[0].mxu0
        %v4905 = vadd.f32 0.0, %v4904
        %v4906 = vpop.f32.mrb[0].mxu0
        %4907 = vmatprep.mubr.bf16.mxu0 %v870
        %4908 = vmatmul.mubr.bf16.gmra.mrb[0].mxu0 %v869
        %v4909 = vpop.f32.mrb[0].mxu0
        %v4910 = vadd.f32 0.0, %v4909
        %v4911 = vpop.f32.mrb[0].mxu0
        %v4912 = vpop.f32.mrb[0].mxu0
        %v4913 = vadd.f32 0.0, %v4912
        %v4914 = vpop.f32.mrb[0].mxu0
        %4915 = vmatprep.mubr.bf16.mxu0 %v873
        %4916 = vmatmul.mubr.bf16.gmra.mrb[0].mxu0 %v872
        %v4917 = vpop.f32.mrb[0].mxu0
        %v4918 = vadd.f32 0.0, %v4917
        %v4919 = vpop.f32.mrb[0].mxu0
        %v4920 = vpop.f32.mrb[0].mxu0
        %v4921 = vadd.f32 0.0, %v4920
        %v4922 = vpop.f32.mrb[0].mxu0
        %4923 = vmatprep.mubr.bf16.mxu0 %v876
        %4924 = vmatmul.mubr.bf16.gmra.mrb[0].mxu0 %v875
        %v4925 = vpop.f32.mrb[0].mxu0
        %v4926 = vadd.f32 0.0, %v4925
        %v4927 = vpop.f32.mrb[0].mxu0
        %v4928 = vpop.f32.mrb[0].mxu0
        %v4929 = vadd.f32 0.0, %v4928
        %v4930 = vpop.f32.mrb[0].mxu0
        %4931 = vmatprep.mubr.bf16.mxu0 %v879
        %4932 = vmatmul.mubr.bf16.gmra.mrb[0].mxu0 %v878
        %v4933 = vpop.f32.mrb[0].mxu0
        %v4934 = vadd.f32 0.0, %v4933
        %v4935 = vpop.f32.mrb[0].mxu0
        %v4936 = vpop.f32.mrb[0].mxu0
        %v4937 = vadd.f32 0.0, %v4936
        %v4938 = vpop.f32.mrb[0].mxu0
        %4939 = vmatprep.mubr.bf16.mxu0 %v882
        %4940 = vmatmul.mubr.bf16.gmra.mrb[0].mxu0 %v881
        %v4941 = vpop.f32.mrb[0].mxu0
        %v4942 = vadd.f32 0.0, %v4941
        %v4943 = vpop.f32.mrb[0].mxu0
        %v4944 = vpop.f32.mrb[0].mxu0
        %v4945 = vadd.f32 0.0, %v4944
        %v4946 = vpop.f32.mrb[0].mxu0
        %4947 = vmatprep.mubr.bf16.mxu0 %v885
        %4948 = vmatmul.mubr.bf16.gmra.mrb[0].mxu0 %v884
        %v4949 = vpop.f32.mrb[0].mxu0
        %v4950 = vadd.f32 0.0, %v4949
        %v4951 = vpop.f32.mrb[0].mxu0
        %v4952 = vpop.f32.mrb[0].mxu0
        %v4953 = vadd.f32 0.0, %v4952
        %v4954 = vpop.f32.mrb[0].mxu0
        %4955 = vmatprep.mubr.bf16.mxu0 %v2987
        %4956 = vmatmul.mubr.bf16.gmra.mrb[0].mxu0 %v2986
        %v4957 = vpop.f32.mrb[0].mxu0
        %v4958 = vadd.f32 0.0, %v4957
        %v4959 = vpop.f32.mrb[0].mxu0
        %v4960 = vpop.f32.mrb[0].mxu0
        %v4961 = vadd.f32 0.0, %v4960
        %v4962 = vpop.f32.mrb[0].mxu0
        %4963 = vmatprep.mubr.bf16.mxu0 %v2990
        %4964 = vmatmul.mubr.bf16.gmra.mrb[0].mxu0 %v2989
        %v4965 = vpop.f32.mrb[0].mxu0
        %v4966 = vadd.f32 0.0, %v4965
        %v4967 = vpop.f32.mrb[0].mxu0
        %v4968 = vpop.f32.mrb[0].mxu0
        %v4969 = vadd.f32 0.0, %v4968
        %v4970 = vpop.f32.mrb[0].mxu0
        %4971 = vmatprep.mubr.bf16.mxu0 %v2993
        %4972 = vmatmul.mubr.bf16.gmra.mrb[0].mxu0 %v2992
        %v4973 = vpop.f32.mrb[0].mxu0
        %v4974 = vadd.f32 0.0, %v4973
        %v4975 = vpop.f32.mrb[0].mxu0
        %v4976 = vpop.f32.mrb[0].mxu0
        %v4977 = vadd.f32 0.0, %v4976
        %v4978 = vpop.f32.mrb[0].mxu0
        %4979 = vmatprep.mubr.bf16.mxu0 %v2996
        %4980 = vmatmul.mubr.bf16.gmra.mrb[0].mxu0 %v2995
        %v4981 = vpop.f32.mrb[0].mxu0
        %v4982 = vadd.f32 0.0, %v4981
        %v4983 = vpop.f32.mrb[0].mxu0
        %v4984 = vpop.f32.mrb[0].mxu0
        %v4985 = vadd.f32 0.0, %v4984
        %v4986 = vpop.f32.mrb[0].mxu0
        %4987 = vmatprep.mubr.bf16.mxu0 %v4655
        %4988 = vmatmul.mubr.bf16.gmra.mrb[0].mxu0 %v4654
        %v4989 = vpop.f32.mrb[0].mxu0
        %v4990 = vadd.f32 0.0, %v4989
        %v4991 = vpop.f32.mrb[0].mxu0
        %v4992 = vpop.f32.mrb[0].mxu0
        %v4993 = vadd.f32 0.0, %v4992
        %v4994 = vpop.f32.mrb[0].mxu0
        %4995 = vmatprep.mubr.bf16.mxu0 %v4658
        %4996 = vmatmul.mubr.bf16.gmra.mrb[0].mxu0 %v4657
        %v4997 = vpop.f32.mrb[0].mxu0
        %v4998 = vadd.f32 0.0, %v4997
        %v4999 = vpop.f32.mrb[0].mxu0
        %v5000 = vpop.f32.mrb[0].mxu0
        %v5001 = vadd.f32 0.0, %v5000
        %v5002 = vpop.f32.mrb[0].mxu0
        %5003 = vmatprep.mubr.bf16.mxu0 %v4661
        %5004 = vmatmul.mubr.bf16.gmra.mrb[0].mxu0 %v4660
        %v5005 = vpop.f32.mrb[0].mxu0
        %v5006 = vadd.f32 0.0, %v5005
        %v5007 = vpop.f32.mrb[0].mxu0
        %v5008 = vpop.f32.mrb[0].mxu0
        %v5009 = vadd.f32 0.0, %v5008
        %v5010 = vpop.f32.mrb[0].mxu0
        %5011 = vmatprep.mubr.bf16.mxu0 %v4664
        %5012 = vmatmul.mubr.bf16.gmra.mrb[0].mxu0 %v4663
        %v5013 = vpop.f32.mrb[0].mxu0
        %v5014 = vadd.f32 0.0, %v5013
        %v5015 = vpop.f32.mrb[0].mxu0
        %v5016 = vpop.f32.mrb[0].mxu0
        %v5017 = vadd.f32 0.0, %v5016
        %v5018 = vpop.f32.mrb[0].mxu0
        %5019 = vdwg.mxu0
        %5020 = vmatprep.subr.bf16.mxu0 0
        %5021 = vmatpush1.bf16.msra.mxu0 %v4827
        %5022 = vmatprep.subr.bf16.mxu0 0
        %5023 = vmatpush1.bf16.msra.mxu0 %v4828
        %5024 = vmatprep.subr.bf16.mxu0 0
        %5025 = vmatpush1.bf16.msra.mxu0 %v4829
        %5026 = vmatprep.subr.bf16.mxu0 0
        %5027 = vmatpush1.bf16.msra.mxu0 %v4830
        %5028 = vmatprep.subr.bf16.mxu0 0
        %5029 = vmatpush1.bf16.msra.mxu0 %v4831
        %5030 = vmatprep.subr.bf16.mxu0 0
        %5031 = vmatpush1.bf16.msra.mxu0 %v4832
        %5032 = vmatprep.subr.bf16.mxu0 0
        %5033 = vmatpush1.bf16.msra.mxu0 %v4833
        %5034 = vmatprep.subr.bf16.mxu0 0
        %5035 = vmatpush1.bf16.msra.mxu0 %v4834
        %5036 = vmatprep.subr.bf16.mxu0 0
        %5037 = vmatpush1.bf16.msra.mxu0 0
        %5038 = vmatprep.subr.bf16.mxu0 0
        %5039 = vmatpush1.bf16.msra.mxu0 0
        %5040 = vmatprep.subr.bf16.mxu0 0
        %5041 = vmatpush1.bf16.msra.mxu0 0
        %5042 = vmatprep.subr.bf16.mxu0 0
        %5043 = vmatpush1.bf16.msra.mxu0 0
        %5044 = vmatprep.subr.bf16.mxu0 0
        %5045 = vmatpush1.bf16.msra.mxu0 0
        %5046 = vmatprep.subr.bf16.mxu0 0
        %5047 = vmatpush1.bf16.msra.mxu0 0
        %5048 = vmatprep.subr.bf16.mxu0 0
        %5049 = vmatpush1.bf16.msra.mxu0 0
        %5050 = vmatprep.subr.bf16.mxu0 0
        %5051 = vmatpush1.bf16.msra.mxu0 0
        %5052 = vmatprep.mubr.bf16.mxu0 0
        %5053 = vmatmul.mubr.bf16.gmra.mrb[0].mxu0 %v865
        %v5054 = vpop.f32.mrb[0].mxu0
        %v5055 = vadd.f32 %v4894, %v5054
        %v5056 = vpop.f32.mrb[0].mxu0
        %v5057 = vpop.f32.mrb[0].mxu0
        %v5058 = vadd.f32 %v4897, %v5057
        %v5059 = vpop.f32.mrb[0].mxu0
        %5060 = vmatprep.mubr.bf16.mxu0 0
        %5061 = vmatmul.mubr.bf16.gmra.mrb[0].mxu0 %v868
        %v5062 = vpop.f32.mrb[0].mxu0
        %v5063 = vadd.f32 %v4902, %v5062
        %v5064 = vpop.f32.mrb[0].mxu0
        %v5065 = vpop.f32.mrb[0].mxu0
        %v5066 = vadd.f32 %v4905, %v5065
        %v5067 = vpop.f32.mrb[0].mxu0
        %5068 = vmatprep.mubr.bf16.mxu0 0
        %5069 = vmatmul.mubr.bf16.gmra.mrb[0].mxu0 %v871
        %v5070 = vpop.f32.mrb[0].mxu0
        %v5071 = vadd.f32 %v4910, %v5070
        %v5072 = vpop.f32.mrb[0].mxu0
        %v5073 = vpop.f32.mrb[0].mxu0
        %v5074 = vadd.f32 %v4913, %v5073
        %v5075 = vpop.f32.mrb[0].mxu0
        %5076 = vmatprep.mubr.bf16.mxu0 0
        %5077 = vmatmul.mubr.bf16.gmra.mrb[0].mxu0 %v874
        %v5078 = vpop.f32.mrb[0].mxu0
        %v5079 = vadd.f32 %v4918, %v5078
        %v5080 = vpop.f32.mrb[0].mxu0
        %v5081 = vpop.f32.mrb[0].mxu0
        %v5082 = vadd.f32 %v4921, %v5081
        %v5083 = vpop.f32.mrb[0].mxu0
        %5084 = vmatprep.mubr.bf16.mxu0 0
        %5085 = vmatmul.mubr.bf16.gmra.mrb[0].mxu0 %v877
        %v5086 = vpop.f32.mrb[0].mxu0
        %v5087 = vadd.f32 %v4926, %v5086
        %v5088 = vpop.f32.mrb[0].mxu0
        %v5089 = vpop.f32.mrb[0].mxu0
        %v5090 = vadd.f32 %v4929, %v5089
        %v5091 = vpop.f32.mrb[0].mxu0
        %5092 = vmatprep.mubr.bf16.mxu0 0
        %5093 = vmatmul.mubr.bf16.gmra.mrb[0].mxu0 %v880
        %v5094 = vpop.f32.mrb[0].mxu0
        %v5095 = vadd.f32 %v4934, %v5094
        %v5096 = vpop.f32.mrb[0].mxu0
        %v5097 = vpop.f32.mrb[0].mxu0
        %v5098 = vadd.f32 %v4937, %v5097
        %v5099 = vpop.f32.mrb[0].mxu0
        %5100 = vmatprep.mubr.bf16.mxu0 0
        %5101 = vmatmul.mubr.bf16.gmra.mrb[0].mxu0 %v883
        %v5102 = vpop.f32.mrb[0].mxu0
        %v5103 = vadd.f32 %v4942, %v5102
        %v5104 = vpop.f32.mrb[0].mxu0
        %v5105 = vpop.f32.mrb[0].mxu0
        %v5106 = vadd.f32 %v4945, %v5105
        %v5107 = vpop.f32.mrb[0].mxu0
        %5108 = vmatprep.mubr.bf16.mxu0 0
        %5109 = vmatmul.mubr.bf16.gmra.mrb[0].mxu0 %v886
        %v5110 = vpop.f32.mrb[0].mxu0
        %v5111 = vadd.f32 %v4950, %v5110
        %v5112 = vpop.f32.mrb[0].mxu0
        %v5113 = vpop.f32.mrb[0].mxu0
        %v5114 = vadd.f32 %v4953, %v5113
        %v5115 = vpop.f32.mrb[0].mxu0
        %5116 = vmatprep.mubr.bf16.mxu0 0
        %5117 = vmatmul.mubr.bf16.gmra.mrb[0].mxu0 %v2988
        %v5118 = vpop.f32.mrb[0].mxu0
        %v5119 = vadd.f32 %v4958, %v5118
        %v5120 = vpop.f32.mrb[0].mxu0
        %v5121 = vpop.f32.mrb[0].mxu0
        %v5122 = vadd.f32 %v4961, %v5121
        %v5123 = vpop.f32.mrb[0].mxu0
        %5124 = vmatprep.mubr.bf16.mxu0 0
        %5125 = vmatmul.mubr.bf16.gmra.mrb[0].mxu0 %v2991
        %v5126 = vpop.f32.mrb[0].mxu0
        %v5127 = vadd.f32 %v4966, %v5126
        %v5128 = vpop.f32.mrb[0].mxu0
        %v5129 = vpop.f32.mrb[0].mxu0
        %v5130 = vadd.f32 %v4969, %v5129
        %v5131 = vpop.f32.mrb[0].mxu0
        %5132 = vmatprep.mubr.bf16.mxu0 0
        %5133 = vmatmul.mubr.bf16.gmra.mrb[0].mxu0 %v2994
        %v5134 = vpop.f32.mrb[0].mxu0
        %v5135 = vadd.f32 %v4974, %v5134
        %v5136 = vpop.f32.mrb[0].mxu0
        %v5137 = vpop.f32.mrb[0].mxu0
        %v5138 = vadd.f32 %v4977, %v5137
        %v5139 = vpop.f32.mrb[0].mxu0
        %5140 = vmatprep.mubr.bf16.mxu0 0
        %5141 = vmatmul.mubr.bf16.gmra.mrb[0].mxu0 %v2997
        %v5142 = vpop.f32.mrb[0].mxu0
        %v5143 = vadd.f32 %v4982, %v5142
        %v5144 = vpop.f32.mrb[0].mxu0
        %v5145 = vpop.f32.mrb[0].mxu0
        %v5146 = vadd.f32 %v4985, %v5145
        %v5147 = vpop.f32.mrb[0].mxu0
        %5148 = vmatprep.mubr.bf16.mxu0 0
        %5149 = vmatmul.mubr.bf16.gmra.mrb[0].mxu0 %v4656
        %v5150 = vpop.f32.mrb[0].mxu0
        %v5151 = vadd.f32 %v4990, %v5150
        %v5152 = vpop.f32.mrb[0].mxu0
        %v5153 = vpop.f32.mrb[0].mxu0
        %v5154 = vadd.f32 %v4993, %v5153
        %v5155 = vpop.f32.mrb[0].mxu0
        %5156 = vmatprep.mubr.bf16.mxu0 0
        %5157 = vmatmul.mubr.bf16.gmra.mrb[0].mxu0 %v4659
        %v5158 = vpop.f32.mrb[0].mxu0
        %v5159 = vadd.f32 %v4998, %v5158
        %v5160 = vpop.f32.mrb[0].mxu0
        %v5161 = vpop.f32.mrb[0].mxu0
        %v5162 = vadd.f32 %v5001, %v5161
        %v5163 = vpop.f32.mrb[0].mxu0
        %5164 = vmatprep.mubr.bf16.mxu0 0
        %5165 = vmatmul.mubr.bf16.gmra.mrb[0].mxu0 %v4662
        %v5166 = vpop.f32.mrb[0].mxu0
        %v5167 = vadd.f32 %v5006, %v5166
        %v5168 = vpop.f32.mrb[0].mxu0
        %v5169 = vpop.f32.mrb[0].mxu0
        %v5170 = vadd.f32 %v5009, %v5169
        %v5171 = vpop.f32.mrb[0].mxu0
        %5172 = vmatprep.mubr.bf16.mxu0 0
        %5173 = vmatmul.mubr.bf16.gmra.mrb[0].mxu0 %v4665
        %v5174 = vpop.f32.mrb[0].mxu0
        %v5175 = vadd.f32 %v5014, %v5174
        %v5176 = vpop.f32.mrb[0].mxu0
        %v5177 = vpop.f32.mrb[0].mxu0
        %v5178 = vadd.f32 %v5017, %v5177
        %v5179 = vpop.f32.mrb[0].mxu0
        %5180 = vdwg.mxu0
        %v5181 = vadd.f32 %v4622, %v5055
        %v5182 = vadd.f32 %v4623, %v5058
        %v5183 = vadd.f32 %v4624, %v5063
        %v5184 = vadd.f32 %v4625, %v5066
        %v5185 = vadd.f32 %v4626, %v5071
        %v5186 = vadd.f32 %v4627, %v5074
        %v5187 = vadd.f32 %v4628, %v5079
        %v5188 = vadd.f32 %v4629, %v5082
        %v5189 = vadd.f32 %v4630, %v5087
        %v5190 = vadd.f32 %v4631, %v5090
        %v5191 = vadd.f32 %v4632, %v5095
        %v5192 = vadd.f32 %v4633, %v5098
        %v5193 = vadd.f32 %v4634, %v5103
        %v5194 = vadd.f32 %v4635, %v5106
        %v5195 = vadd.f32 %v4636, %v5111
        %v5196 = vadd.f32 %v4637, %v5114
        %v5197 = vadd.f32 %v4638, %v5119
        %v5198 = vadd.f32 %v4639, %v5122
        %v5199 = vadd.f32 %v4640, %v5127
        %v5200 = vadd.f32 %v4641, %v5130
        %v5201 = vadd.f32 %v4642, %v5135
        %v5202 = vadd.f32 %v4643, %v5138
        %v5203 = vadd.f32 %v4644, %v5143
        %v5204 = vadd.f32 %v4645, %v5146
        %v5205 = vadd.f32 %v4646, %v5151
        %v5206 = vadd.f32 %v4647, %v5154
        %v5207 = vadd.f32 %v4648, %v5159
        %v5208 = vadd.f32 %v4649, %v5162
        %v5209 = vadd.f32 %v4650, %v5167
        %v5210 = vadd.f32 %v4651, %v5170
        %v5211 = vadd.f32 %v4652, %v5175
        %v5212 = vadd.f32 %v4653, %v5178
        %v5213 = vpack.c.bf16 %v596, %v644
        %v5214 = vpack.c.bf16 0.0, %v480
        %v5215 = vpack.c.bf16 %v694, %v742
        %s5216 = scalar_lea.vmem [#allocation8], 1536
        %v5217 = vld [vmem:[%s5216] sm:$0xf]
        %v5218 = vld [vmem:[%s5216 + $0x4] sm:$0xf]
        %v5219 = vld [vmem:[%s5216 + $0x8] sm:$0xf]
        %v5220 = vld [vmem:[%s5216 + $0xc] sm:$0xf]
        %v5221 = vld [vmem:[%s5216 + $0x10] sm:$0xf]
        %v5222 = vld [vmem:[%s5216 + $0x14] sm:$0xf]
        %v5223 = vld [vmem:[%s5216 + $0x18] sm:$0xf]
        %v5224 = vld [vmem:[%s5216 + $0x1c] sm:$0xf]
        %v5225 = vld [vmem:[%s5216 + $0x20] sm:$0xf]
        %v5226 = vld [vmem:[%s5216 + $0x24] sm:$0xf]
        %v5227 = vld [vmem:[%s5216 + $0x28] sm:$0xf]
        %v5228 = vld [vmem:[%s5216 + $0x2c] sm:$0xf]
        %v5229 = vld [vmem:[%s5216 + $0x30] sm:$0xf]
        %v5230 = vld [vmem:[%s5216 + $0x34] sm:$0xf]
        %v5231 = vld [vmem:[%s5216 + $0x38] sm:$0xf]
        %v5232 = vld [vmem:[%s5216 + $0x3c] sm:$0xf]
        %v5233 = vld [vmem:[%s5216 + $0x40] sm:$0xf]
        %v5234 = vld [vmem:[%s5216 + $0x44] sm:$0xf]
        %v5235 = vld [vmem:[%s5216 + $0x48] sm:$0xf]
        %v5236 = vld [vmem:[%s5216 + $0x4c] sm:$0xf]
        %v5237 = vld [vmem:[%s5216 + $0x50] sm:$0xf]
        %v5238 = vld [vmem:[%s5216 + $0x54] sm:$0xf]
        %v5239 = vld [vmem:[%s5216 + $0x58] sm:$0xf]
        %v5240 = vld [vmem:[%s5216 + $0x5c] sm:$0xf]
        %v5241 = vld [vmem:[%s5216 + $0x60] sm:$0xf]
        %v5242 = vld [vmem:[%s5216 + $0x64] sm:$0xf]
        %v5243 = vld [vmem:[%s5216 + $0x68] sm:$0xf]
        %v5244 = vld [vmem:[%s5216 + $0x6c] sm:$0xf]
        %v5245 = vld [vmem:[%s5216 + $0x70] sm:$0xf]
        %v5246 = vld [vmem:[%s5216 + $0x74] sm:$0xf]
        %v5247 = vld [vmem:[%s5216 + $0x78] sm:$0xf]
        %v5248 = vld [vmem:[%s5216 + $0x7c] sm:$0xf]
        %v5249 = vld [vmem:[%s5216 + $0x80] sm:$0xf]
        %v5250 = vld [vmem:[%s5216 + $0x84] sm:$0xf]
        %v5251 = vld [vmem:[%s5216 + $0x88] sm:$0xf]
        %v5252 = vld [vmem:[%s5216 + $0x8c] sm:$0xf]
        %v5253 = vld [vmem:[%s5216 + $0x90] sm:$0xf]
        %v5254 = vld [vmem:[%s5216 + $0x94] sm:$0xf]
        %v5255 = vld [vmem:[%s5216 + $0x98] sm:$0xf]
        %v5256 = vld [vmem:[%s5216 + $0x9c] sm:$0xf]
        %v5257 = vld [vmem:[%s5216 + $0xa0] sm:$0xf]
        %v5258 = vld [vmem:[%s5216 + $0xa4] sm:$0xf]
        %v5259 = vld [vmem:[%s5216 + $0xa8] sm:$0xf]
        %v5260 = vld [vmem:[%s5216 + $0xac] sm:$0xf]
        %v5261 = vld [vmem:[%s5216 + $0xb0] sm:$0xf]
        %v5262 = vld [vmem:[%s5216 + $0xb4] sm:$0xf]
        %v5263 = vld [vmem:[%s5216 + $0xb8] sm:$0xf]
        %v5264 = vld [vmem:[%s5216 + $0xbc] sm:$0xf]
        %v5313 = vunpack.c.l.b16 %v5217
        %v5314 = vunpack.c.l.b16 %v5218
        %v5315 = vunpack.c.l.b16 %v5219
        %v5316 = vunpack.c.l.b16 %v5220
        %v5317 = vunpack.c.l.b16 %v5221
        %v5318 = vunpack.c.l.b16 %v5222
        %v5319 = vunpack.c.l.b16 %v5223
        %v5320 = vunpack.c.l.b16 %v5224
        %v5321 = vunpack.c.l.b16 %v5225
        %v5322 = vunpack.c.l.b16 %v5226
        %v5323 = vunpack.c.l.b16 %v5227
        %v5324 = vunpack.c.l.b16 %v5228
        %v5325 = vunpack.c.l.b16 %v5229
        %v5326 = vunpack.c.l.b16 %v5230
        %v5327 = vunpack.c.l.b16 %v5231
        %v5328 = vunpack.c.l.b16 %v5232
        %v5329 = vunpack.c.l.b16 %v5233
        %v5330 = vunpack.c.l.b16 %v5234
        %v5331 = vunpack.c.l.b16 %v5235
        %v5332 = vunpack.c.l.b16 %v5236
        %v5333 = vunpack.c.l.b16 %v5237
        %v5334 = vunpack.c.l.b16 %v5238
        %v5335 = vunpack.c.l.b16 %v5239
        %v5336 = vunpack.c.l.b16 %v5240
        %v5337 = vunpack.c.l.b16 %v5241
        %v5338 = vunpack.c.l.b16 %v5242
        %v5339 = vunpack.c.l.b16 %v5243
        %v5340 = vunpack.c.l.b16 %v5244
        %v5341 = vunpack.c.l.b16 %v5245
        %v5342 = vunpack.c.l.b16 %v5246
        %v5343 = vunpack.c.l.b16 %v5247
        %v5344 = vunpack.c.l.b16 %v5248
        %v5345 = vunpack.c.l.b16 %v5249
        %v5346 = vunpack.c.l.b16 %v5250
        %v5347 = vunpack.c.l.b16 %v5251
        %v5348 = vunpack.c.l.b16 %v5252
        %v5349 = vunpack.c.l.b16 %v5253
        %v5350 = vunpack.c.l.b16 %v5254
        %v5351 = vunpack.c.l.b16 %v5255
        %v5352 = vunpack.c.l.b16 %v5256
        %v5353 = vunpack.c.l.b16 %v5257
        %v5354 = vunpack.c.l.b16 %v5258
        %v5355 = vunpack.c.l.b16 %v5259
        %v5356 = vunpack.c.l.b16 %v5260
        %v5357 = vunpack.c.l.b16 %v5261
        %v5358 = vunpack.c.l.b16 %v5262
        %v5359 = vunpack.c.l.b16 %v5263
        %v5360 = vunpack.c.l.b16 %v5264
        %v5361 = vpack.c.b16 %v5314, %v5313
        %v5362 = vpack.c.b16 %v5316, %v5315
        %v5363 = vpack.c.b16 %v5318, %v5317
        %v5364 = vpack.c.b16 %v5320, %v5319
        %v5365 = vpack.c.b16 %v5322, %v5321
        %v5366 = vpack.c.b16 %v5324, %v5323
        %v5367 = vpack.c.b16 %v5326, %v5325
        %v5368 = vpack.c.b16 %v5328, %v5327
        %v5369 = vpack.c.b16 %v5330, %v5329
        %v5370 = vpack.c.b16 %v5332, %v5331
        %v5371 = vpack.c.b16 %v5334, %v5333
        %v5372 = vpack.c.b16 %v5336, %v5335
        %v5373 = vpack.c.b16 %v5338, %v5337
        %v5374 = vpack.c.b16 %v5340, %v5339
        %v5375 = vpack.c.b16 %v5342, %v5341
        %v5376 = vpack.c.b16 %v5344, %v5343
        %v5377 = vpack.c.b16 %v5346, %v5345
        %v5378 = vpack.c.b16 %v5348, %v5347
        %v5379 = vpack.c.b16 %v5350, %v5349
        %v5380 = vpack.c.b16 %v5352, %v5351
        %v5381 = vpack.c.b16 %v5354, %v5353
        %v5382 = vpack.c.b16 %v5356, %v5355
        %v5383 = vpack.c.b16 %v5358, %v5357
        %v5384 = vpack.c.b16 %v5360, %v5359
        %5409 = vmatprep.subr.bf16.mxu0 0
        %5410 = vmatpush1.bf16.msra.mxu0 %v5361
        %5411 = vmatprep.subr.bf16.mxu0 0
        %5412 = vmatpush1.bf16.msra.mxu0 %v5362
        %5413 = vmatprep.subr.bf16.mxu0 0
        %5414 = vmatpush1.bf16.msra.mxu0 %v5363
        %5415 = vmatprep.subr.bf16.mxu0 0
        %5416 = vmatpush1.bf16.msra.mxu0 %v5364
        %5417 = vmatprep.subr.bf16.mxu0 0
        %5418 = vmatpush1.bf16.msra.mxu0 %v5365
        %5419 = vmatprep.subr.bf16.mxu0 0
        %5420 = vmatpush1.bf16.msra.mxu0 %v5366
        %5421 = vmatprep.subr.bf16.mxu0 0
        %5422 = vmatpush1.bf16.msra.mxu0 %v5367
        %5423 = vmatprep.subr.bf16.mxu0 0
        %5424 = vmatpush1.bf16.msra.mxu0 %v5368
        %5425 = vmatprep.subr.bf16.mxu0 0
        %5426 = vmatpush1.bf16.msra.mxu0 %v5369
        %5427 = vmatprep.subr.bf16.mxu0 0
        %5428 = vmatpush1.bf16.msra.mxu0 %v5370
        %5429 = vmatprep.subr.bf16.mxu0 0
        %5430 = vmatpush1.bf16.msra.mxu0 %v5371
        %5431 = vmatprep.subr.bf16.mxu0 0
        %5432 = vmatpush1.bf16.msra.mxu0 %v5372
        %5433 = vmatprep.subr.bf16.mxu0 0
        %5434 = vmatpush1.bf16.msra.mxu0 %v5373
        %5435 = vmatprep.subr.bf16.mxu0 0
        %5436 = vmatpush1.bf16.msra.mxu0 %v5374
        %5437 = vmatprep.subr.bf16.mxu0 0
        %5438 = vmatpush1.bf16.msra.mxu0 %v5375
        %5439 = vmatprep.subr.bf16.mxu0 0
        %5440 = vmatpush1.bf16.msra.mxu0 %v5376
        %5441 = vmatprep.mubr.bf16.mxu0 %v771
        %5442 = vmatmul.mubr.bf16.gmra.mrb[0].mxu0 %v770
        %v5443 = vpop.f32.mrb[0].mxu0
        %v5444 = vadd.f32 0.0, %v5443
        %v5445 = vpop.f32.mrb[0].mxu0
        %v5446 = vpop.f32.mrb[0].mxu0
        %v5447 = vadd.f32 0.0, %v5446
        %v5448 = vpop.f32.mrb[0].mxu0
        %5449 = vmatprep.mubr.bf16.mxu0 %v774
        %5450 = vmatmul.mubr.bf16.gmra.mrb[0].mxu0 %v773
        %v5451 = vpop.f32.mrb[0].mxu0
        %v5452 = vadd.f32 0.0, %v5451
        %v5453 = vpop.f32.mrb[0].mxu0
        %v5454 = vpop.f32.mrb[0].mxu0
        %v5455 = vadd.f32 0.0, %v5454
        %v5456 = vpop.f32.mrb[0].mxu0
        %5457 = vmatprep.mubr.bf16.mxu0 %v777
        %5458 = vmatmul.mubr.bf16.gmra.mrb[0].mxu0 %v776
        %v5459 = vpop.f32.mrb[0].mxu0
        %v5460 = vadd.f32 0.0, %v5459
        %v5461 = vpop.f32.mrb[0].mxu0
        %v5462 = vpop.f32.mrb[0].mxu0
        %v5463 = vadd.f32 0.0, %v5462
        %v5464 = vpop.f32.mrb[0].mxu0
        %5465 = vmatprep.mubr.bf16.mxu0 %v1875
        %5466 = vmatmul.mubr.bf16.gmra.mrb[0].mxu0 %v1874
        %v5467 = vpop.f32.mrb[0].mxu0
        %v5468 = vadd.f32 0.0, %v5467
        %v5469 = vpop.f32.mrb[0].mxu0
        %v5470 = vpop.f32.mrb[0].mxu0
        %v5471 = vadd.f32 0.0, %v5470
        %v5472 = vpop.f32.mrb[0].mxu0
        %5473 = vmatprep.mubr.bf16.mxu0 %v783
        %5474 = vmatmul.mubr.bf16.gmra.mrb[0].mxu0 %v782
        %v5475 = vpop.f32.mrb[0].mxu0
        %v5476 = vadd.f32 0.0, %v5475
        %v5477 = vpop.f32.mrb[0].mxu0
        %v5478 = vpop.f32.mrb[0].mxu0
        %v5479 = vadd.f32 0.0, %v5478
        %v5480 = vpop.f32.mrb[0].mxu0
        %5481 = vmatprep.mubr.bf16.mxu0 %v786
        %5482 = vmatmul.mubr.bf16.gmra.mrb[0].mxu0 %v785
        %v5483 = vpop.f32.mrb[0].mxu0
        %v5484 = vadd.f32 0.0, %v5483
        %v5485 = vpop.f32.mrb[0].mxu0
        %v5486 = vpop.f32.mrb[0].mxu0
        %v5487 = vadd.f32 0.0, %v5486
        %v5488 = vpop.f32.mrb[0].mxu0
        %5489 = vmatprep.mubr.bf16.mxu0 %v789
        %5490 = vmatmul.mubr.bf16.gmra.mrb[0].mxu0 %v788
        %v5491 = vpop.f32.mrb[0].mxu0
        %v5492 = vadd.f32 0.0, %v5491
        %v5493 = vpop.f32.mrb[0].mxu0
        %v5494 = vpop.f32.mrb[0].mxu0
        %v5495 = vadd.f32 0.0, %v5494
        %v5496 = vpop.f32.mrb[0].mxu0
        %5497 = vmatprep.mubr.bf16.mxu0 %v1878
        %5498 = vmatmul.mubr.bf16.gmra.mrb[0].mxu0 %v1877
        %v5499 = vpop.f32.mrb[0].mxu0
        %v5500 = vadd.f32 0.0, %v5499
        %v5501 = vpop.f32.mrb[0].mxu0
        %v5502 = vpop.f32.mrb[0].mxu0
        %v5503 = vadd.f32 0.0, %v5502
        %v5504 = vpop.f32.mrb[0].mxu0
        %5505 = vmatprep.mubr.bf16.mxu0 %v2431
        %5506 = vmatmul.mubr.bf16.gmra.mrb[0].mxu0 %v2430
        %v5507 = vpop.f32.mrb[0].mxu0
        %v5508 = vadd.f32 0.0, %v5507
        %v5509 = vpop.f32.mrb[0].mxu0
        %v5510 = vpop.f32.mrb[0].mxu0
        %v5511 = vadd.f32 0.0, %v5510
        %v5512 = vpop.f32.mrb[0].mxu0
        %5513 = vmatprep.mubr.bf16.mxu0 %v2434
        %5514 = vmatmul.mubr.bf16.gmra.mrb[0].mxu0 %v2433
        %v5515 = vpop.f32.mrb[0].mxu0
        %v5516 = vadd.f32 0.0, %v5515
        %v5517 = vpop.f32.mrb[0].mxu0
        %v5518 = vpop.f32.mrb[0].mxu0
        %v5519 = vadd.f32 0.0, %v5518
        %v5520 = vpop.f32.mrb[0].mxu0
        %5521 = vmatprep.mubr.bf16.mxu0 %v2437
        %5522 = vmatmul.mubr.bf16.gmra.mrb[0].mxu0 %v2436
        %v5523 = vpop.f32.mrb[0].mxu0
        %v5524 = vadd.f32 0.0, %v5523
        %v5525 = vpop.f32.mrb[0].mxu0
        %v5526 = vpop.f32.mrb[0].mxu0
        %v5527 = vadd.f32 0.0, %v5526
        %v5528 = vpop.f32.mrb[0].mxu0
        %5529 = vmatprep.mubr.bf16.mxu0 %v3546
        %5530 = vmatmul.mubr.bf16.gmra.mrb[0].mxu0 %v3545
        %v5531 = vpop.f32.mrb[0].mxu0
        %v5532 = vadd.f32 0.0, %v5531
        %v5533 = vpop.f32.mrb[0].mxu0
        %v5534 = vpop.f32.mrb[0].mxu0
        %v5535 = vadd.f32 0.0, %v5534
        %v5536 = vpop.f32.mrb[0].mxu0
        %5537 = vmatprep.mubr.bf16.mxu0 %v4099
        %5538 = vmatmul.mubr.bf16.gmra.mrb[0].mxu0 %v4098
        %v5539 = vpop.f32.mrb[0].mxu0
        %v5540 = vadd.f32 0.0, %v5539
        %v5541 = vpop.f32.mrb[0].mxu0
        %v5542 = vpop.f32.mrb[0].mxu0
        %v5543 = vadd.f32 0.0, %v5542
        %v5544 = vpop.f32.mrb[0].mxu0
        %5545 = vmatprep.mubr.bf16.mxu0 %v4102
        %5546 = vmatmul.mubr.bf16.gmra.mrb[0].mxu0 %v4101
        %v5547 = vpop.f32.mrb[0].mxu0
        %v5548 = vadd.f32 0.0, %v5547
        %v5549 = vpop.f32.mrb[0].mxu0
        %v5550 = vpop.f32.mrb[0].mxu0
        %v5551 = vadd.f32 0.0, %v5550
        %v5552 = vpop.f32.mrb[0].mxu0
        %5553 = vmatprep.mubr.bf16.mxu0 %v4105
        %5554 = vmatmul.mubr.bf16.gmra.mrb[0].mxu0 %v4104
        %v5555 = vpop.f32.mrb[0].mxu0
        %v5556 = vadd.f32 0.0, %v5555
        %v5557 = vpop.f32.mrb[0].mxu0
        %v5558 = vpop.f32.mrb[0].mxu0
        %v5559 = vadd.f32 0.0, %v5558
        %v5560 = vpop.f32.mrb[0].mxu0
        %5561 = vmatprep.mubr.bf16.mxu0 %v5214
        %5562 = vmatmul.mubr.bf16.gmra.mrb[0].mxu0 %v5213
        %v5563 = vpop.f32.mrb[0].mxu0
        %v5564 = vadd.f32 0.0, %v5563
        %v5565 = vpop.f32.mrb[0].mxu0
        %v5566 = vpop.f32.mrb[0].mxu0
        %v5567 = vadd.f32 0.0, %v5566
        %v5568 = vpop.f32.mrb[0].mxu0
        %5569 = vdwg.mxu0
        %5570 = vmatprep.subr.bf16.mxu0 0
        %5571 = vmatpush1.bf16.msra.mxu0 %v5377
        %5572 = vmatprep.subr.bf16.mxu0 0
        %5573 = vmatpush1.bf16.msra.mxu0 %v5378
        %5574 = vmatprep.subr.bf16.mxu0 0
        %5575 = vmatpush1.bf16.msra.mxu0 %v5379
        %5576 = vmatprep.subr.bf16.mxu0 0
        %5577 = vmatpush1.bf16.msra.mxu0 %v5380
        %5578 = vmatprep.subr.bf16.mxu0 0
        %5579 = vmatpush1.bf16.msra.mxu0 %v5381
        %5580 = vmatprep.subr.bf16.mxu0 0
        %5581 = vmatpush1.bf16.msra.mxu0 %v5382
        %5582 = vmatprep.subr.bf16.mxu0 0
        %5583 = vmatpush1.bf16.msra.mxu0 %v5383
        %5584 = vmatprep.subr.bf16.mxu0 0
        %5585 = vmatpush1.bf16.msra.mxu0 %v5384
        %5586 = vmatprep.subr.bf16.mxu0 0
        %5587 = vmatpush1.bf16.msra.mxu0 0
        %5588 = vmatprep.subr.bf16.mxu0 0
        %5589 = vmatpush1.bf16.msra.mxu0 0
        %5590 = vmatprep.subr.bf16.mxu0 0
        %5591 = vmatpush1.bf16.msra.mxu0 0
        %5592 = vmatprep.subr.bf16.mxu0 0
        %5593 = vmatpush1.bf16.msra.mxu0 0
        %5594 = vmatprep.subr.bf16.mxu0 0
        %5595 = vmatpush1.bf16.msra.mxu0 0
        %5596 = vmatprep.subr.bf16.mxu0 0
        %5597 = vmatpush1.bf16.msra.mxu0 0
        %5598 = vmatprep.subr.bf16.mxu0 0
        %5599 = vmatpush1.bf16.msra.mxu0 0
        %5600 = vmatprep.subr.bf16.mxu0 0
        %5601 = vmatpush1.bf16.msra.mxu0 0
        %5602 = vmatprep.mubr.bf16.mxu0 0
        %5603 = vmatmul.mubr.bf16.gmra.mrb[0].mxu0 %v772
        %v5604 = vpop.f32.mrb[0].mxu0
        %v5605 = vadd.f32 %v5444, %v5604
        %v5606 = vpop.f32.mrb[0].mxu0
        %v5607 = vpop.f32.mrb[0].mxu0
        %v5608 = vadd.f32 %v5447, %v5607
        %v5609 = vpop.f32.mrb[0].mxu0
        %5610 = vmatprep.mubr.bf16.mxu0 0
        %5611 = vmatmul.mubr.bf16.gmra.mrb[0].mxu0 %v775
        %v5612 = vpop.f32.mrb[0].mxu0
        %v5613 = vadd.f32 %v5452, %v5612
        %v5614 = vpop.f32.mrb[0].mxu0
        %v5615 = vpop.f32.mrb[0].mxu0
        %v5616 = vadd.f32 %v5455, %v5615
        %v5617 = vpop.f32.mrb[0].mxu0
        %5618 = vmatprep.mubr.bf16.mxu0 0
        %5619 = vmatmul.mubr.bf16.gmra.mrb[0].mxu0 %v778
        %v5620 = vpop.f32.mrb[0].mxu0
        %v5621 = vadd.f32 %v5460, %v5620
        %v5622 = vpop.f32.mrb[0].mxu0
        %v5623 = vpop.f32.mrb[0].mxu0
        %v5624 = vadd.f32 %v5463, %v5623
        %v5625 = vpop.f32.mrb[0].mxu0
        %5626 = vmatprep.mubr.bf16.mxu0 0
        %5627 = vmatmul.mubr.bf16.gmra.mrb[0].mxu0 %v1876
        %v5628 = vpop.f32.mrb[0].mxu0
        %v5629 = vadd.f32 %v5468, %v5628
        %v5630 = vpop.f32.mrb[0].mxu0
        %v5631 = vpop.f32.mrb[0].mxu0
        %v5632 = vadd.f32 %v5471, %v5631
        %v5633 = vpop.f32.mrb[0].mxu0
        %5634 = vmatprep.mubr.bf16.mxu0 0
        %5635 = vmatmul.mubr.bf16.gmra.mrb[0].mxu0 %v784
        %v5636 = vpop.f32.mrb[0].mxu0
        %v5637 = vadd.f32 %v5476, %v5636
        %v5638 = vpop.f32.mrb[0].mxu0
        %v5639 = vpop.f32.mrb[0].mxu0
        %v5640 = vadd.f32 %v5479, %v5639
        %v5641 = vpop.f32.mrb[0].mxu0
        %5642 = vmatprep.mubr.bf16.mxu0 0
        %5643 = vmatmul.mubr.bf16.gmra.mrb[0].mxu0 %v787
        %v5644 = vpop.f32.mrb[0].mxu0
        %v5645 = vadd.f32 %v5484, %v5644
        %v5646 = vpop.f32.mrb[0].mxu0
        %v5647 = vpop.f32.mrb[0].mxu0
        %v5648 = vadd.f32 %v5487, %v5647
        %v5649 = vpop.f32.mrb[0].mxu0
        %5650 = vmatprep.mubr.bf16.mxu0 0
        %5651 = vmatmul.mubr.bf16.gmra.mrb[0].mxu0 %v790
        %v5652 = vpop.f32.mrb[0].mxu0
        %v5653 = vadd.f32 %v5492, %v5652
        %v5654 = vpop.f32.mrb[0].mxu0
        %v5655 = vpop.f32.mrb[0].mxu0
        %v5656 = vadd.f32 %v5495, %v5655
        %v5657 = vpop.f32.mrb[0].mxu0
        %5658 = vmatprep.mubr.bf16.mxu0 0
        %5659 = vmatmul.mubr.bf16.gmra.mrb[0].mxu0 %v1879
        %v5660 = vpop.f32.mrb[0].mxu0
        %v5661 = vadd.f32 %v5500, %v5660
        %v5662 = vpop.f32.mrb[0].mxu0
        %v5663 = vpop.f32.mrb[0].mxu0
        %v5664 = vadd.f32 %v5503, %v5663
        %v5665 = vpop.f32.mrb[0].mxu0
        %5666 = vmatprep.mubr.bf16.mxu0 0
        %5667 = vmatmul.mubr.bf16.gmra.mrb[0].mxu0 %v2432
        %v5668 = vpop.f32.mrb[0].mxu0
        %v5669 = vadd.f32 %v5508, %v5668
        %v5670 = vpop.f32.mrb[0].mxu0
        %v5671 = vpop.f32.mrb[0].mxu0
        %v5672 = vadd.f32 %v5511, %v5671
        %v5673 = vpop.f32.mrb[0].mxu0
        %5674 = vmatprep.mubr.bf16.mxu0 0
        %5675 = vmatmul.mubr.bf16.gmra.mrb[0].mxu0 %v2435
        %v5676 = vpop.f32.mrb[0].mxu0
        %v5677 = vadd.f32 %v5516, %v5676
        %v5678 = vpop.f32.mrb[0].mxu0
        %v5679 = vpop.f32.mrb[0].mxu0
        %v5680 = vadd.f32 %v5519, %v5679
        %v5681 = vpop.f32.mrb[0].mxu0
        %5682 = vmatprep.mubr.bf16.mxu0 0
        %5683 = vmatmul.mubr.bf16.gmra.mrb[0].mxu0 %v2438
        %v5684 = vpop.f32.mrb[0].mxu0
        %v5685 = vadd.f32 %v5524, %v5684
        %v5686 = vpop.f32.mrb[0].mxu0
        %v5687 = vpop.f32.mrb[0].mxu0
        %v5688 = vadd.f32 %v5527, %v5687
        %v5689 = vpop.f32.mrb[0].mxu0
        %5690 = vmatprep.mubr.bf16.mxu0 0
        %5691 = vmatmul.mubr.bf16.gmra.mrb[0].mxu0 %v3547
        %v5692 = vpop.f32.mrb[0].mxu0
        %v5693 = vadd.f32 %v5532, %v5692
        %v5694 = vpop.f32.mrb[0].mxu0
        %v5695 = vpop.f32.mrb[0].mxu0
        %v5696 = vadd.f32 %v5535, %v5695
        %v5697 = vpop.f32.mrb[0].mxu0
        %5698 = vmatprep.mubr.bf16.mxu0 0
        %5699 = vmatmul.mubr.bf16.gmra.mrb[0].mxu0 %v4100
        %v5700 = vpop.f32.mrb[0].mxu0
        %v5701 = vadd.f32 %v5540, %v5700
        %v5702 = vpop.f32.mrb[0].mxu0
        %v5703 = vpop.f32.mrb[0].mxu0
        %v5704 = vadd.f32 %v5543, %v5703
        %v5705 = vpop.f32.mrb[0].mxu0
        %5706 = vmatprep.mubr.bf16.mxu0 0
        %5707 = vmatmul.mubr.bf16.gmra.mrb[0].mxu0 %v4103
        %v5708 = vpop.f32.mrb[0].mxu0
        %v5709 = vadd.f32 %v5548, %v5708
        %v5710 = vpop.f32.mrb[0].mxu0
        %v5711 = vpop.f32.mrb[0].mxu0
        %v5712 = vadd.f32 %v5551, %v5711
        %v5713 = vpop.f32.mrb[0].mxu0
        %5714 = vmatprep.mubr.bf16.mxu0 0
        %5715 = vmatmul.mubr.bf16.gmra.mrb[0].mxu0 %v4106
        %v5716 = vpop.f32.mrb[0].mxu0
        %v5717 = vadd.f32 %v5556, %v5716
        %v5718 = vpop.f32.mrb[0].mxu0
        %v5719 = vpop.f32.mrb[0].mxu0
        %v5720 = vadd.f32 %v5559, %v5719
        %v5721 = vpop.f32.mrb[0].mxu0
        %5722 = vmatprep.mubr.bf16.mxu0 0
        %5723 = vmatmul.mubr.bf16.gmra.mrb[0].mxu0 %v5215
        %v5724 = vpop.f32.mrb[0].mxu0
        %v5725 = vadd.f32 %v5564, %v5724
        %v5726 = vpop.f32.mrb[0].mxu0
        %v5727 = vpop.f32.mrb[0].mxu0
        %v5728 = vadd.f32 %v5567, %v5727
        %v5729 = vpop.f32.mrb[0].mxu0
        %5730 = vdwg.mxu0
        %v5731 = vadd.f32 %v5181, %v5605
        %v5732 = vadd.f32 %v5182, %v5608
        %v5733 = vadd.f32 %v5183, %v5613
        %v5734 = vadd.f32 %v5184, %v5616
        %v5735 = vadd.f32 %v5185, %v5621
        %v5736 = vadd.f32 %v5186, %v5624
        %v5737 = vadd.f32 %v5187, %v5629
        %v5738 = vadd.f32 %v5188, %v5632
        %v5739 = vadd.f32 %v5189, %v5637
        %v5740 = vadd.f32 %v5190, %v5640
        %v5741 = vadd.f32 %v5191, %v5645
        %v5742 = vadd.f32 %v5192, %v5648
        %v5743 = vadd.f32 %v5193, %v5653
        %v5744 = vadd.f32 %v5194, %v5656
        %v5745 = vadd.f32 %v5195, %v5661
        %v5746 = vadd.f32 %v5196, %v5664
        %v5747 = vadd.f32 %v5197, %v5669
        %v5748 = vadd.f32 %v5198, %v5672
        %v5749 = vadd.f32 %v5199, %v5677
        %v5750 = vadd.f32 %v5200, %v5680
        %v5751 = vadd.f32 %v5201, %v5685
        %v5752 = vadd.f32 %v5202, %v5688
        %v5753 = vadd.f32 %v5203, %v5693
        %v5754 = vadd.f32 %v5204, %v5696
        %v5755 = vadd.f32 %v5205, %v5701
        %v5756 = vadd.f32 %v5206, %v5704
        %v5757 = vadd.f32 %v5207, %v5709
        %v5758 = vadd.f32 %v5208, %v5712
        %v5759 = vadd.f32 %v5209, %v5717
        %v5760 = vadd.f32 %v5210, %v5720
        %v5761 = vadd.f32 %v5211, %v5725
        %v5762 = vadd.f32 %v5212, %v5728
        %v5763 = vld [vmem:[%s4] sm:$0x1]
        %v5765 = vlaneseq
        %v5766 = vshrl.u32 %v5765, 7
        %v5767 = vsub.s32 0, %v5766
        %v5768 = vrot.slane %v5763, %v5767
        %v5770 = vmul.f32 %v5731, %v5768
        %v5771 = vmul.f32 %v5732, %v5768
        %v5772 = vmul.f32 %v5733, %v5768
        %v5773 = vmul.f32 %v5734, %v5768
        %v5774 = vmul.f32 %v5735, %v5768
        %v5775 = vmul.f32 %v5736, %v5768
        %v5776 = vmul.f32 %v5737, %v5768
        %v5777 = vmul.f32 %v5738, %v5768
        %v5778 = vmul.f32 %v5739, %v5768
        %v5779 = vmul.f32 %v5740, %v5768
        %v5780 = vmul.f32 %v5741, %v5768
        %v5781 = vmul.f32 %v5742, %v5768
        %v5782 = vmul.f32 %v5743, %v5768
        %v5783 = vmul.f32 %v5744, %v5768
        %v5784 = vmul.f32 %v5745, %v5768
        %v5785 = vmul.f32 %v5746, %v5768
        %v5786 = vmul.f32 %v5747, %v5768
        %v5787 = vmul.f32 %v5748, %v5768
        %v5788 = vmul.f32 %v5749, %v5768
        %v5789 = vmul.f32 %v5750, %v5768
        %v5790 = vmul.f32 %v5751, %v5768
        %v5791 = vmul.f32 %v5752, %v5768
        %v5792 = vmul.f32 %v5753, %v5768
        %v5793 = vmul.f32 %v5754, %v5768
        %v5794 = vmul.f32 %v5755, %v5768
        %v5795 = vmul.f32 %v5756, %v5768
        %v5796 = vmul.f32 %v5757, %v5768
        %v5797 = vmul.f32 %v5758, %v5768
        %v5798 = vmul.f32 %v5759, %v5768
        %v5799 = vmul.f32 %v5760, %v5768
        %v5800 = vmul.f32 %v5761, %v5768
        %v5801 = vmul.f32 %v5762, %v5768
        %v5802 = vld [vmem:[%s5] sm:$0x1]
        %v5804 = vlaneseq
        %v5805 = vshrl.u32 %v5804, 7
        %v5806 = vsub.s32 0, %v5805
        %v5807 = vrot.slane %v5802, %v5806
        %v5809 = vadd.f32 %v5770, %v5807
        %v5810 = vadd.f32 %v5771, %v5807
        %v5811 = vadd.f32 %v5772, %v5807
        %v5812 = vadd.f32 %v5773, %v5807
        %v5813 = vadd.f32 %v5774, %v5807
        %v5814 = vadd.f32 %v5775, %v5807
        %v5815 = vadd.f32 %v5776, %v5807
        %v5816 = vadd.f32 %v5777, %v5807
        %v5817 = vadd.f32 %v5778, %v5807
        %v5818 = vadd.f32 %v5779, %v5807
        %v5819 = vadd.f32 %v5780, %v5807
        %v5820 = vadd.f32 %v5781, %v5807
        %v5821 = vadd.f32 %v5782, %v5807
        %v5822 = vadd.f32 %v5783, %v5807
        %v5823 = vadd.f32 %v5784, %v5807
        %v5824 = vadd.f32 %v5785, %v5807
        %v5825 = vadd.f32 %v5786, %v5807
        %v5826 = vadd.f32 %v5787, %v5807
        %v5827 = vadd.f32 %v5788, %v5807
        %v5828 = vadd.f32 %v5789, %v5807
        %v5829 = vadd.f32 %v5790, %v5807
        %v5830 = vadd.f32 %v5791, %v5807
        %v5831 = vadd.f32 %v5792, %v5807
        %v5832 = vadd.f32 %v5793, %v5807
        %v5833 = vadd.f32 %v5794, %v5807
        %v5834 = vadd.f32 %v5795, %v5807
        %v5835 = vadd.f32 %v5796, %v5807
        %v5836 = vadd.f32 %v5797, %v5807
        %v5837 = vadd.f32 %v5798, %v5807
        %v5838 = vadd.f32 %v5799, %v5807
        %v5839 = vadd.f32 %v5800, %v5807
        %v5840 = vadd.f32 %v5801, %v5807
        %v5841 = vmax.f32 %v5809, 0.0
        %v5842 = vmax.f32 %v5810, 0.0
        %v5843 = vmax.f32 %v5811, 0.0
        %v5844 = vmax.f32 %v5812, 0.0
        %v5845 = vmax.f32 %v5813, 0.0
        %v5846 = vmax.f32 %v5814, 0.0
        %v5847 = vmax.f32 %v5815, 0.0
        %v5848 = vmax.f32 %v5816, 0.0
        %v5849 = vmax.f32 %v5817, 0.0
        %v5850 = vmax.f32 %v5818, 0.0
        %v5851 = vmax.f32 %v5819, 0.0
        %v5852 = vmax.f32 %v5820, 0.0
        %v5853 = vmax.f32 %v5821, 0.0
        %v5854 = vmax.f32 %v5822, 0.0
        %v5855 = vmax.f32 %v5823, 0.0
        %v5856 = vmax.f32 %v5824, 0.0
        %v5857 = vmax.f32 %v5825, 0.0
        %v5858 = vmax.f32 %v5826, 0.0
        %v5859 = vmax.f32 %v5827, 0.0
        %v5860 = vmax.f32 %v5828, 0.0
        %v5861 = vmax.f32 %v5829, 0.0
        %v5862 = vmax.f32 %v5830, 0.0
        %v5863 = vmax.f32 %v5831, 0.0
        %v5864 = vmax.f32 %v5832, 0.0
        %v5865 = vmax.f32 %v5833, 0.0
        %v5866 = vmax.f32 %v5834, 0.0
        %v5867 = vmax.f32 %v5835, 0.0
        %v5868 = vmax.f32 %v5836, 0.0
        %v5869 = vmax.f32 %v5837, 0.0
        %v5870 = vmax.f32 %v5838, 0.0
        %v5871 = vmax.f32 %v5839, 0.0
        %v5872 = vmax.f32 %v5840, 0.0
        %v5873 = vpack.c.bf16 %v5841, %v5841
        %v5874 = vpack.c.bf16 %v5842, %v5842
        %v5875 = vpack.c.bf16 %v5843, %v5843
        %v5876 = vpack.c.bf16 %v5844, %v5844
        %v5877 = vpack.c.bf16 %v5845, %v5845
        %v5878 = vpack.c.bf16 %v5846, %v5846
        %v5879 = vpack.c.bf16 %v5847, %v5847
        %v5880 = vpack.c.bf16 %v5848, %v5848
        %v5881 = vpack.c.bf16 %v5849, %v5849
        %v5882 = vpack.c.bf16 %v5850, %v5850
        %v5883 = vpack.c.bf16 %v5851, %v5851
        %v5884 = vpack.c.bf16 %v5852, %v5852
        %v5885 = vpack.c.bf16 %v5853, %v5853
        %v5886 = vpack.c.bf16 %v5854, %v5854
        %v5887 = vpack.c.bf16 %v5855, %v5855
        %v5888 = vpack.c.bf16 %v5856, %v5856
        %v5889 = vpack.c.bf16 %v5857, %v5857
        %v5890 = vpack.c.bf16 %v5858, %v5858
        %v5891 = vpack.c.bf16 %v5859, %v5859
        %v5892 = vpack.c.bf16 %v5860, %v5860
        %v5893 = vpack.c.bf16 %v5861, %v5861
        %v5894 = vpack.c.bf16 %v5862, %v5862
        %v5895 = vpack.c.bf16 %v5863, %v5863
        %v5896 = vpack.c.bf16 %v5864, %v5864
        %v5897 = vpack.c.bf16 %v5865, %v5865
        %v5898 = vpack.c.bf16 %v5866, %v5866
        %v5899 = vpack.c.bf16 %v5867, %v5867
        %v5900 = vpack.c.bf16 %v5868, %v5868
        %v5901 = vpack.c.bf16 %v5869, %v5869
        %v5902 = vpack.c.bf16 %v5870, %v5870
        %v5903 = vpack.c.bf16 %v5871, %v5871
        %v5904 = vpack.c.bf16 %v5872, %v5872
        %5905 = vst [vmem:[%s412] sm:$0xf] %v5873
        %5906 = vst [vmem:[%s412 + $0x4] sm:$0xf] %v5874
        %5907 = vst [vmem:[%s412 + $0x8] sm:$0xf] %v5875
        %5908 = vst [vmem:[%s412 + $0xc] sm:$0xf] %v5876
        %5909 = vst [vmem:[%s412 + $0x10] sm:$0xf] %v5877
        %5910 = vst [vmem:[%s412 + $0x14] sm:$0xf] %v5878
        %5911 = vst [vmem:[%s412 + $0x18] sm:$0xf] %v5879
        %5912 = vst [vmem:[%s412 + $0x1c] sm:$0xf] %v5880
        %5913 = vst [vmem:[%s412 + $0x20] sm:$0xf] %v5881
        %5914 = vst [vmem:[%s412 + $0x24] sm:$0xf] %v5882
        %5915 = vst [vmem:[%s412 + $0x28] sm:$0xf] %v5883
        %5916 = vst [vmem:[%s412 + $0x2c] sm:$0xf] %v5884
        %5917 = vst [vmem:[%s412 + $0x30] sm:$0xf] %v5885
        %5918 = vst [vmem:[%s412 + $0x34] sm:$0xf] %v5886
        %5919 = vst [vmem:[%s412 + $0x38] sm:$0xf] %v5887
        %5920 = vst [vmem:[%s412 + $0x3c] sm:$0xf] %v5888
        %5921 = vst [vmem:[%s412 + $0x40] sm:$0xf] %v5889
        %5922 = vst [vmem:[%s412 + $0x44] sm:$0xf] %v5890
        %5923 = vst [vmem:[%s412 + $0x48] sm:$0xf] %v5891
        %5924 = vst [vmem:[%s412 + $0x4c] sm:$0xf] %v5892
        %5925 = vst [vmem:[%s412 + $0x50] sm:$0xf] %v5893
        %5926 = vst [vmem:[%s412 + $0x54] sm:$0xf] %v5894
        %5927 = vst [vmem:[%s412 + $0x58] sm:$0xf] %v5895
        %5928 = vst [vmem:[%s412 + $0x5c] sm:$0xf] %v5896
        %5929 = vst [vmem:[%s412 + $0x60] sm:$0xf] %v5897
        %5930 = vst [vmem:[%s412 + $0x64] sm:$0xf] %v5898
        %5931 = vst [vmem:[%s412 + $0x68] sm:$0xf] %v5899
        %5932 = vst [vmem:[%s412 + $0x6c] sm:$0xf] %v5900
        %5933 = vst [vmem:[%s412 + $0x70] sm:$0xf] %v5901
        %5934 = vst [vmem:[%s412 + $0x74] sm:$0xf] %v5902
        %5935 = vst [vmem:[%s412 + $0x78] sm:$0xf] %v5903
        %5936 = vst [vmem:[%s412 + $0x7c] sm:$0xf] %v5904
        %s5937 = sand.u32 %s212, 1
        %s5938 = scalar_lea.sflag [#allocation4], %s5937
        %s5939 = sand.u32 %s212, 1
        %s5940 = smul.addr %s5939, 128
        %s5941 = scalar_lea.vmem [#allocation10], %s5940
        // Predicated region
        $region61: #{tpu_custom_call.1} parent=43 // pred_check
          %p5942 = pneg %p222
        $region62: #{tpu_custom_call.1} parent=43 // pred_check_branch
          %5944 = sbr.rel (%p5942) target = $region64
        $region63: #{tpu_custom_call.1} parent=43 // pred_region
          %s5945 = smul.u32 4, %s32
          %s5947 = ssub.s32 2048, 2048
          %5948 = vsyncadd %s5938, %s5947
          %s5949 = smul.addr %s5945, 8
          %s5950 = smul.addr %s31, 64
          %s5951 = sadd.s32 %s5949, %s5950
          %s5952 = smul.addr %s5951, 64
          %s5953 = scalar_lea.hbm %s6, %s5952
          %s5954 = sshll.u32 %s5941, 4
          %s5955 = int_to_ptr.vmem [resolvable:$true] %s5954
          %5960 = dma.vmem_to_hbm [thread:$0]  %s5955, 2048, %s5953, %s5938, 64, 64, 4
        $region64: #{tpu_custom_call.1} parent=43 // pred_fallthru
          _
      $region44: #{tpu_custom_call.1} parent=5 // pred_fallthru
        _
      %p5961 = scmp.le.s32.totalorder 2, %s22
      // Predicated region
      $region65: #{tpu_custom_call.1} parent=5 // pred_check
        %p5962 = pneg %p5961
      $region66: #{tpu_custom_call.1} parent=5 // pred_check_branch
        %5964 = sbr.rel (%p5962) target = $region68
      $region67: #{tpu_custom_call.1} parent=5 // pred_region
        %s5965 = ssub.s32 %s22, 2
        // Predicated region
        $region69: #{tpu_custom_call.1} parent=67 // pred_check
          %p5966 = pneg %p228
        $region70: #{tpu_custom_call.1} parent=67 // pred_check_branch
          %5968 = sbr.rel (%p5966) target = $region72
        $region71: #{tpu_custom_call.1} parent=67 // pred_region
          %s5969 = sand.u32 %s213, 1
          %s5970 = scalar_lea.sflag [#allocation4], %s5969
          %s5971 = sand.u32 %s213, 1
          %s5972 = smul.addr %s5971, 128
          %s5973 = scalar_lea.vmem [#allocation10], %s5972
          %5974 = dma.done %s5970, 2048
        $region72: #{tpu_custom_call.1} parent=67 // pred_fallthru
          _
      $region68: #{tpu_custom_call.1} parent=5 // pred_fallthru
        _
    $region6: #{tpu_custom_call.1} parent=1 // loop_footer
      %s26 = sadd.s32 1, %s22
    $region7: #{tpu_custom_call.1} parent=1 // loop_footer_branch
      %21 = sbr.rel target = $region3
    $region8: #{tpu_custom_call.1} parent=1 // loop_exit
      _
    %5975 = vsyncpa [#allocation3], 1
    %s5976 = scalar_lea.sflag [#allocation3], 1
    %5977 = vsyncpa %s5976, 1
    %5978 = vsyncpa [#allocation6], 1
    %s5979 = scalar_lea.sflag [#allocation6], 1
    %5980 = vsyncpa %s5979, 1
    %5981 = vsyncpa [#allocation9], 1
    %5982 = vsyncpa [#allocation4], 1
    %s5983 = scalar_lea.sflag [#allocation4], 1
    %5984 = vsyncpa %s5983, 1

</llo_original>
